<compile_context>
chip_gen: v7x
topology: tpu7x:2x2x1
jax: 0.10.0
libtpu: 0.0.40
codegen_flags: <defaults>
</compile_context>

<pallas_src>
import functools
import math

import jax
import jax.numpy as jnp
from jax.experimental import pallas as pl
from jax.experimental.pallas import tpu as pltpu  # noqa: F401  (TPU backend; CompilerParams not needed for this grid-less kernel)


MM_DTYPE = jnp.bfloat16   # MXU operand dtype (accumulation stays f32)
NEG_INF = -1e9            # additive mask value (exp underflows to exactly 0)


# ----------------------------- kernel helpers -----------------------------

def _mm(a, b):
    """MXU matmul: bf16 operands, f32 accumulation."""
    return jnp.dot(a.astype(MM_DTYPE), b.astype(MM_DTYPE),
                   preferred_element_type=jnp.float32)


def _layernorm(x, g, b, eps):
    """PyTorch-style LayerNorm over the last dim, f32 math."""
    m = jnp.mean(x, axis=-1, keepdims=True)
    xc = x - m
    v = jnp.mean(xc * xc, axis=-1, keepdims=True)
    return xc * jax.lax.rsqrt(v + eps) * g + b


# ----------------------------- fused forward kernel -----------------------------

def _fused_forward_kernel(*refs, num_layers, num_heads, seq_len, eps):
    out_ref = refs[-1]
    it = iter(refs[:-1])

    task_ref = next(it)
    vm_ref = next(it)
    (te_w, te_b, tfe1_w, tfe1_b, tfe2_w, tfe2_b,
     vme_w, vme_b) = (next(it) for _ in range(8))
    layer_refs = [tuple(next(it) for _ in range(16)) for _ in range(num_layers)]
    (pr1_wg, pr1_wt, pr1_b, pr2_w, pr2_b,
     pr3_w, pr3_b) = (next(it) for _ in range(7))
    assert next(it, None) is None  # trace-time check: operand order matches

    R = task_ref.shape[0]          # B * S rows, natural (b outer, s inner) order
    H = num_heads

    # ---- task branch: embedding + feature enhance (Linear-ReLU-Linear) ----
    te = _mm(task_ref[...], te_w[...]) + te_b[...]
    t_enh = jnp.maximum(_mm(te, tfe1_w[...]) + tfe1_b[...], 0.0)
    t_enh = _mm(t_enh, tfe2_w[...]) + tfe2_b[...]

    # ---- vm branch: embedding ----
    x = _mm(vm_ref[...], vme_w[...]) + vme_b[...]          # (R, D) f32

    # Attention group mask.  The PyTorch module permutes (B,S,D)->(S,B,D)
    # before a batch_first encoder, i.e. self-attention mixes tokens that share
    # the same sequence position s over the original batch axis B.  With rows
    # flattened as r = b*S + s this is simply "r % S == c % S" — no data
    # movement (permute/reshape) needed, just a mask (computed once, reused by
    # every layer of this single kernel invocation).
    rows = jax.lax.broadcasted_iota(jnp.int32, (R, R), 0)
    cols = jax.lax.broadcasted_iota(jnp.int32, (R, R), 1)
    allowed = (rows % seq_len) == (cols % seq_len)

    contract_head_dim = (((1,), (1,)), ((), ()))           # q·kᵀ without transposing k

    # ---- transformer encoder layers (post-norm, ReLU FFN), fully unrolled ----
    for (q_w, k_w, v_w, q_b, k_b, v_b, out_w, out_b,
         ln1_g, ln1_b, ff1_w, ff1_b, ff2_w, ff2_b, ln2_g, ln2_b) in layer_refs:
        Dh = q_w.shape[2]
        scale = 1.0 / math.sqrt(Dh)

        # multi-head self-attention: all heads in this single invocation;
        # the output projection is folded into the head loop (no concat).
        attn = out_b[...]                                  # (1, D), broadcasts
        for h in range(H):
            q = _mm(x, q_w[h]) + q_b[h]                    # (R, Dh)
            k = _mm(x, k_w[h]) + k_b[h]
            v = _mm(x, v_w[h]) + v_b[h]
            s = jax.lax.dot_general(q.astype(MM_DTYPE), k.astype(MM_DTYPE),
                                    contract_head_dim,
                                    preferred_element_type=jnp.float32)
            s = s * scale
            s = jnp.where(allowed, s, NEG_INF)
            s = s - jnp.max(s, axis=-1, keepdims=True)     # f32 softmax
            p = jnp.exp(s)
            p = p * pl.reciprocal(jnp.sum(p, axis=-1, keepdims=True), approx=True)
            attn = attn + _mm(_mm(p, v), out_w[h])         # (R, D) accumulate

        # residual + LayerNorm, then FFN (ReLU) + residual + LayerNorm
        x = _layernorm(x + attn, ln1_g[...], ln1_b[...], eps)
        ff = jnp.maximum(_mm(x, ff1_w[...]) + ff1_b[...], 0.0)
        ff = _mm(ff, ff2_w[...]) + ff2_b[...]
        x = _layernorm(x + ff, ln2_g[...], ln2_b[...], eps)

    # ---- priority head: concat(global, task_enh) folded as two K-blocks ----
    h1 = _mm(x, pr1_wg[...]) + _mm(t_enh, pr1_wt[...]) + pr1_b[...]
    h1 = jnp.maximum(h1, 0.0)
    h2 = jnp.maximum(_mm(h1, pr2_w[...]) + pr2_b[...], 0.0)
    out = _mm(h2, pr3_w[...]) + pr3_b[...]                 # (R, padded_out) lane-dense
    out_ref[...] = out.astype(out_ref.dtype)


# ----------------------------- host wrapper -----------------------------

def _round_up(x, m):
    return ((x + m - 1) // m) * m


def prepare_kernel_params(params, d_model, num_heads, output_size):
    """One-time host-side re-layout of parameters into kernel operand order.

    All weights use (in_features, out_features) layout.  NOTE: a real PyTorch
    checkpoint stores nn.Linear weights as (out, in) and
    nn.MultiheadAttention.in_proj_weight as (3D, D); transpose before use.
    Attention weights are split per head into (H, ...) stacks so the kernel
    never needs sub-lane slicing; the final linear is zero-padded to a
    lane-dense (multiple of 128) output width.
    """
    D, H = d_model, num_heads
    Dh = D // H

    def b2(v):
        return jnp.asarray(v, jnp.float32).reshape(1, -1)

    def per_head(w_cols, b_cols):       # (D, D) block of in_w, (D,) block of in_b
        w = w_cols.reshape(D, H, Dh).transpose(1, 0, 2)    # (H, D, Dh)
        b = b_cols.reshape(H, 1, Dh)
        return w, b

    flat = [
        params["task_emb_w"], b2(params["task_emb_b"]),
        params["tfe1_w"], b2(params["tfe1_b"]),
        params["tfe2_w"], b2(params["tfe2_b"]),
        params["vm_emb_w"], b2(params["vm_emb_b"]),
    ]
    for lp in params["layers"]:
        in_w, in_b = lp["in_w"], lp["in_b"]                # (D, 3D), (3D,) packed [q|k|v]
        q_w, q_b = per_head(in_w[:, 0 * D:1 * D], in_b[0 * D:1 * D])
        k_w, k_b = per_head(in_w[:, 1 * D:2 * D], in_b[1 * D:2 * D])
        v_w, v_b = per_head(in_w[:, 2 * D:3 * D], in_b[2 * D:3 * D])
        out_w = lp["out_w"].reshape(H, Dh, D)              # head-major input rows
        flat += [q_w, k_w, v_w, q_b, k_b, v_b, out_w, b2(lp["out_b"]),
                 b2(lp["ln1_g"]), b2(lp["ln1_b"]),
                 lp["ff1_w"], b2(lp["ff1_b"]), lp["ff2_w"], b2(lp["ff2_b"]),
                 b2(lp["ln2_g"]), b2(lp["ln2_b"])]

    padded_out = _round_up(output_size, 128)
    pr3_w = jnp.zeros((params["pr3_w"].shape[0], padded_out), jnp.float32)
    pr3_w = pr3_w.at[:, :output_size].set(params["pr3_w"])
    pr3_b = jnp.zeros((1, padded_out), jnp.float32)
    pr3_b = pr3_b.at[:, :output_size].set(params["pr3_b"])
    pr1_w = params["pr1_w"]                                # (2D, 4D)
    flat += [pr1_w[:D, :], pr1_w[D:, :], b2(params["pr1_b"]),
             params["pr2_w"], b2(params["pr2_b"]), pr3_w, pr3_b]
    return tuple(flat), padded_out


def self_attention_encoder(kernel_params, task_info, vm_info, *,
                           num_heads, num_layers, output_size, padded_out):
    """Fused forward pass: one pallas_call for the whole module."""
    B, S, _ = task_info.shape
    R = B * S
    task2 = task_info.reshape(R, -1)
    vm2 = vm_info.reshape(R, -1)
    kernel = functools.partial(
        _fused_forward_kernel,
        num_layers=num_layers, num_heads=num_heads, seq_len=S, eps=1e-5)
    out = pl.pallas_call(
        kernel,
        out_shape=jax.ShapeDtypeStruct((R, padded_out), jnp.float32),
        # No grid: the whole (tiny) problem and all weights live in VMEM for a
        # single invocation.  TODO(synk): for large B*S, add a 'parallel' row
        # grid axis (dimension_semantics) so both v7x TensorCores get work and
        # re-derive the tile budget against 64 MiB VMEM.
    )(task2, vm2, *kernel_params)
    return out[:, :output_size].reshape(B, S, output_size)


# ----------------------------- pure-JAX reference (for a sanity check) -----------------------------

def _ref_ln(x, g, b, eps=1e-5):
    m = x.mean(-1, keepdims=True)
    v = ((x - m) ** 2).mean(-1, keepdims=True)
    return (x - m) / jnp.sqrt(v + eps) * g + b


def reference_forward(params, task_info, vm_info, num_heads):
    lin = lambda x, w, b: x @ w + b
    te = lin(task_info, params["task_emb_w"], params["task_emb_b"])
    t = jnp.maximum(lin(te, params["tfe1_w"], params["tfe1_b"]), 0.0)
    t_enh = lin(t, params["tfe2_w"], params["tfe2_b"])
    x = lin(vm_info, params["vm_emb_w"], params["vm_emb_b"])
    x = jnp.transpose(x, (1, 0, 2))                        # permute(1,0,2)
    Sd, Bd, D = x.shape
    H = num_heads
    Dh = D // H
    for lp in params["layers"]:
        qkv = lin(x, lp["in_w"], lp["in_b"])
        q, k, v = jnp.split(qkv, 3, axis=-1)
        heads = lambda a: a.reshape(Sd, Bd, H, Dh).transpose(0, 2, 1, 3)
        qh, kh, vh = heads(q), heads(k), heads(v)
        s = jnp.einsum("shbd,shcd->shbc", qh, kh) / math.sqrt(Dh)
        p = jax.nn.softmax(s, axis=-1)
        o = jnp.einsum("shbc,shcd->shbd", p, vh).transpose(0, 2, 1, 3).reshape(Sd, Bd, D)
        attn = lin(o, lp["out_w"], lp["out_b"])
        x = _ref_ln(x + attn, lp["ln1_g"], lp["ln1_b"])
        ff = jnp.maximum(lin(x, lp["ff1_w"], lp["ff1_b"]), 0.0)
        ff = lin(ff, lp["ff2_w"], lp["ff2_b"])
        x = _ref_ln(x + ff, lp["ln2_g"], lp["ln2_b"])
    g = jnp.transpose(x, (1, 0, 2))
    cat = jnp.concatenate([g, t_enh], axis=-1)
    h = jnp.maximum(lin(cat, params["pr1_w"], params["pr1_b"]), 0.0)
    h = jnp.maximum(lin(h, params["pr2_w"], params["pr2_b"]), 0.0)
    return lin(h, params["pr3_w"], params["pr3_b"])


# ----------------------------- deterministic init -----------------------------

def _init_linear(key, fan_in, fan_out):
    kw, kb = jax.random.split(key)
    lim = 1.0 / math.sqrt(fan_in)
    w = jax.random.uniform(kw, (fan_in, fan_out), jnp.float32, -lim, lim)
    b = jax.random.uniform(kb, (fan_out,), jnp.float32, -lim, lim)
    return w, b


def init_params(key, task_fea_size, vm_fea_size, output_size, d_model, num_en_layers, d_ff):
    keys = jax.random.split(key, 7 + num_en_layers)
    p = {}
    p["task_emb_w"], p["task_emb_b"] = _init_linear(keys[0], task_fea_size, d_model)
    p["tfe1_w"], p["tfe1_b"] = _init_linear(keys[1], d_model, 2 * d_model)
    p["tfe2_w"], p["tfe2_b"] = _init_linear(keys[2], 2 * d_model, d_model)
    p["vm_emb_w"], p["vm_emb_b"] = _init_linear(keys[3], vm_fea_size, d_model)
    p["pr1_w"], p["pr1_b"] = _init_linear(keys[4], 2 * d_model, 4 * d_model)
    p["pr2_w"], p["pr2_b"] = _init_linear(keys[5], 4 * d_model, 4 * d_model)
    p["pr3_w"], p["pr3_b"] = _init_linear(keys[6], 4 * d_model, output_size)
    layers = []
    for li in range(num_en_layers):
        lk = jax.random.split(keys[7 + li], 4)
        lp = {}
        lp["in_w"], lp["in_b"] = _init_linear(lk[0], d_model, 3 * d_model)   # packed q|k|v
        lp["out_w"], lp["out_b"] = _init_linear(lk[1], d_model, d_model)
        lp["ff1_w"], lp["ff1_b"] = _init_linear(lk[2], d_model, d_ff)
        lp["ff2_w"], lp["ff2_b"] = _init_linear(lk[3], d_ff, d_model)
        lp["ln1_g"] = jnp.ones((d_model,), jnp.float32)
        lp["ln1_b"] = jnp.zeros((d_model,), jnp.float32)
        lp["ln2_g"] = jnp.ones((d_model,), jnp.float32)
        lp["ln2_b"] = jnp.zeros((d_model,), jnp.float32)
        layers.append(lp)
    p["layers"] = layers
    return p


# ----------------------------- main -----------------------------

if __name__ == "__main__":
    B, S = 2, 8
    task_fea_size, vm_fea_size = 6, 5
    d_model, num_heads, num_en_layers, d_ff, output_size = 32, 4, 2, 64, 1

    key = jax.random.PRNGKey(0)
    kp, kt, kv = jax.random.split(key, 3)
    params = init_params(kp, task_fea_size, vm_fea_size, output_size,
                         d_model, num_en_layers, d_ff)
    kernel_params, padded_out = prepare_kernel_params(params, d_model, num_heads, output_size)
    task_info = jax.random.normal(kt, (B, S, task_fea_size), jnp.float32)
    vm_info = jax.random.normal(kv, (B, S, vm_fea_size), jnp.float32)

    fwd = jax.jit(functools.partial(
        self_attention_encoder, num_heads=num_heads, num_layers=num_en_layers,
        output_size=output_size, padded_out=padded_out))
    out = fwd(kernel_params, task_info, vm_info)
    jax.block_until_ready(out)
    assert out.shape == (B, S, output_size)

    # Sanity check against a pure-JAX (f32) reference.  Generous tolerance:
    # bf16 MXU operands + approx reciprocal introduce ~1e-2-level deviations.
    ref = reference_forward(params, task_info, vm_info, num_heads)
    max_err = float(jnp.max(jnp.abs(out - ref)))
    ref_scale = float(jnp.max(jnp.abs(ref)))
    assert max_err <= 0.05 + 0.1 * ref_scale, f"mismatch: {max_err} (ref scale {ref_scale})"

    print("KERNEL_OK")
</pallas_src>

<mosaic_0001>
module attributes {stable_mosaic.version = 11 : i64} {
  func.func @_fused_forward_kernel(%arg0: memref<16x6xf32, #tpu.memory_space<vmem>>, %arg1: memref<16x5xf32, #tpu.memory_space<vmem>>, %arg2: memref<6x32xf32, #tpu.memory_space<vmem>>, %arg3: memref<1x32xf32, #tpu.memory_space<vmem>>, %arg4: memref<32x64xf32, #tpu.memory_space<vmem>>, %arg5: memref<1x64xf32, #tpu.memory_space<vmem>>, %arg6: memref<64x32xf32, #tpu.memory_space<vmem>>, %arg7: memref<1x32xf32, #tpu.memory_space<vmem>>, %arg8: memref<5x32xf32, #tpu.memory_space<vmem>>, %arg9: memref<1x32xf32, #tpu.memory_space<vmem>>, %arg10: memref<4x32x8xf32, #tpu.memory_space<vmem>>, %arg11: memref<4x32x8xf32, #tpu.memory_space<vmem>>, %arg12: memref<4x32x8xf32, #tpu.memory_space<vmem>>, %arg13: memref<4x1x8xf32, #tpu.memory_space<vmem>>, %arg14: memref<4x1x8xf32, #tpu.memory_space<vmem>>, %arg15: memref<4x1x8xf32, #tpu.memory_space<vmem>>, %arg16: memref<4x8x32xf32, #tpu.memory_space<vmem>>, %arg17: memref<1x32xf32, #tpu.memory_space<vmem>>, %arg18: memref<1x32xf32, #tpu.memory_space<vmem>>, %arg19: memref<1x32xf32, #tpu.memory_space<vmem>>, %arg20: memref<32x64xf32, #tpu.memory_space<vmem>>, %arg21: memref<1x64xf32, #tpu.memory_space<vmem>>, %arg22: memref<64x32xf32, #tpu.memory_space<vmem>>, %arg23: memref<1x32xf32, #tpu.memory_space<vmem>>, %arg24: memref<1x32xf32, #tpu.memory_space<vmem>>, %arg25: memref<1x32xf32, #tpu.memory_space<vmem>>, %arg26: memref<4x32x8xf32, #tpu.memory_space<vmem>>, %arg27: memref<4x32x8xf32, #tpu.memory_space<vmem>>, %arg28: memref<4x32x8xf32, #tpu.memory_space<vmem>>, %arg29: memref<4x1x8xf32, #tpu.memory_space<vmem>>, %arg30: memref<4x1x8xf32, #tpu.memory_space<vmem>>, %arg31: memref<4x1x8xf32, #tpu.memory_space<vmem>>, %arg32: memref<4x8x32xf32, #tpu.memory_space<vmem>>, %arg33: memref<1x32xf32, #tpu.memory_space<vmem>>, %arg34: memref<1x32xf32, #tpu.memory_space<vmem>>, %arg35: memref<1x32xf32, #tpu.memory_space<vmem>>, %arg36: memref<32x64xf32, #tpu.memory_space<vmem>>, %arg37: memref<1x64xf32, #tpu.memory_space<vmem>>, %arg38: memref<64x32xf32, #tpu.memory_space<vmem>>, %arg39: memref<1x32xf32, #tpu.memory_space<vmem>>, %arg40: memref<1x32xf32, #tpu.memory_space<vmem>>, %arg41: memref<1x32xf32, #tpu.memory_space<vmem>>, %arg42: memref<32x128xf32, #tpu.memory_space<vmem>>, %arg43: memref<32x128xf32, #tpu.memory_space<vmem>>, %arg44: memref<1x128xf32, #tpu.memory_space<vmem>>, %arg45: memref<128x128xf32, #tpu.memory_space<vmem>>, %arg46: memref<1x128xf32, #tpu.memory_space<vmem>>, %arg47: memref<128x128xf32, #tpu.memory_space<vmem>>, %arg48: memref<1x128xf32, #tpu.memory_space<vmem>>, %arg49: memref<16x128xf32, #tpu.memory_space<vmem>>) attributes {dimension_semantics = [], scalar_prefetch = 0 : i64, scratch_operands = 0 : i64, tpu.core_type = #tpu.core_type<tc>} {
    %c0 = arith.constant 0 : index
    %c0_0 = arith.constant 0 : index
    %0 = vector.load %arg0[%c0, %c0_0] : memref<16x6xf32, #tpu.memory_space<vmem>>, vector<16x6xf32>
    %c0_1 = arith.constant 0 : index
    %c0_2 = arith.constant 0 : index
    %1 = vector.load %arg2[%c0_1, %c0_2] : memref<6x32xf32, #tpu.memory_space<vmem>>, vector<6x32xf32>
    %2 = arith.truncf %0 : vector<16x6xf32> to vector<16x6xbf16>
    %3 = arith.truncf %1 : vector<6x32xf32> to vector<6x32xbf16>
    %cst = arith.constant dense<0.000000e+00> : vector<16x32xf32>
    %4 = tpu.matmul %2, %3, %cst {dimension_numbers = #tpu.dot_dimension_numbers<[1], [0], [0], [1], [0, 0, 1, 1], [], []>} : vector<16x6xbf16>, vector<6x32xbf16>, vector<16x32xf32> -> vector<16x32xf32>
    %c0_3 = arith.constant 0 : index
    %c0_4 = arith.constant 0 : index
    %5 = vector.load %arg3[%c0_3, %c0_4] : memref<1x32xf32, #tpu.memory_space<vmem>>, vector<1x32xf32>
    %6 = vector.broadcast %5 : vector<1x32xf32> to vector<16x32xf32>
    %7 = arith.addf %4, %6 : vector<16x32xf32>
    %c0_5 = arith.constant 0 : index
    %c0_6 = arith.constant 0 : index
    %8 = vector.load %arg4[%c0_5, %c0_6] : memref<32x64xf32, #tpu.memory_space<vmem>>, vector<32x64xf32>
    %9 = arith.truncf %7 : vector<16x32xf32> to vector<16x32xbf16>
    %10 = arith.truncf %8 : vector<32x64xf32> to vector<32x64xbf16>
    %cst_7 = arith.constant dense<0.000000e+00> : vector<16x64xf32>
    %11 = tpu.matmul %9, %10, %cst_7 {dimension_numbers = #tpu.dot_dimension_numbers<[1], [0], [0], [1], [0, 0, 1, 1], [], []>} : vector<16x32xbf16>, vector<32x64xbf16>, vector<16x64xf32> -> vector<16x64xf32>
    %c0_8 = arith.constant 0 : index
    %c0_9 = arith.constant 0 : index
    %12 = vector.load %arg5[%c0_8, %c0_9] : memref<1x64xf32, #tpu.memory_space<vmem>>, vector<1x64xf32>
    %13 = vector.broadcast %12 : vector<1x64xf32> to vector<16x64xf32>
    %14 = arith.addf %11, %13 : vector<16x64xf32>
    %cst_10 = arith.constant 0.000000e+00 : f32
    %15 = vector.broadcast %cst_10 : f32 to vector<16x64xf32>
    %16 = arith.maximumf %14, %15 : vector<16x64xf32>
    %c0_11 = arith.constant 0 : index
    %c0_12 = arith.constant 0 : index
    %17 = vector.load %arg6[%c0_11, %c0_12] : memref<64x32xf32, #tpu.memory_space<vmem>>, vector<64x32xf32>
    %18 = arith.truncf %16 : vector<16x64xf32> to vector<16x64xbf16>
    %19 = arith.truncf %17 : vector<64x32xf32> to vector<64x32xbf16>
    %cst_13 = arith.constant dense<0.000000e+00> : vector<16x32xf32>
    %20 = tpu.matmul %18, %19, %cst_13 {dimension_numbers = #tpu.dot_dimension_numbers<[1], [0], [0], [1], [0, 0, 1, 1], [], []>} : vector<16x64xbf16>, vector<64x32xbf16>, vector<16x32xf32> -> vector<16x32xf32>
    %c0_14 = arith.constant 0 : index
    %c0_15 = arith.constant 0 : index
    %21 = vector.load %arg7[%c0_14, %c0_15] : memref<1x32xf32, #tpu.memory_space<vmem>>, vector<1x32xf32>
    %22 = vector.broadcast %21 : vector<1x32xf32> to vector<16x32xf32>
    %23 = arith.addf %20, %22 : vector<16x32xf32>
    %c0_16 = arith.constant 0 : index
    %c0_17 = arith.constant 0 : index
    %24 = vector.load %arg1[%c0_16, %c0_17] : memref<16x5xf32, #tpu.memory_space<vmem>>, vector<16x5xf32>
    %c0_18 = arith.constant 0 : index
    %c0_19 = arith.constant 0 : index
    %25 = vector.load %arg8[%c0_18, %c0_19] : memref<5x32xf32, #tpu.memory_space<vmem>>, vector<5x32xf32>
    %26 = arith.truncf %24 : vector<16x5xf32> to vector<16x5xbf16>
    %27 = arith.truncf %25 : vector<5x32xf32> to vector<5x32xbf16>
    %cst_20 = arith.constant dense<0.000000e+00> : vector<16x32xf32>
    %28 = tpu.matmul %26, %27, %cst_20 {dimension_numbers = #tpu.dot_dimension_numbers<[1], [0], [0], [1], [0, 0, 1, 1], [], []>} : vector<16x5xbf16>, vector<5x32xbf16>, vector<16x32xf32> -> vector<16x32xf32>
    %c0_21 = arith.constant 0 : index
    %c0_22 = arith.constant 0 : index
    %29 = vector.load %arg9[%c0_21, %c0_22] : memref<1x32xf32, #tpu.memory_space<vmem>>, vector<1x32xf32>
    %30 = vector.broadcast %29 : vector<1x32xf32> to vector<16x32xf32>
    %31 = arith.addf %28, %30 : vector<16x32xf32>
    %32 = tpu.iota {dimensions = array<i32: 0>} : vector<16x16xi32>
    %33 = tpu.iota {dimensions = array<i32: 1>} : vector<16x16xi32>
    %c8_i32 = arith.constant 8 : i32
    %c0_i32 = arith.constant 0 : i32
    %34 = arith.cmpi eq, %c8_i32, %c0_i32 : i32
    %c1_i32 = arith.constant 1 : i32
    %35 = arith.select %34, %c1_i32, %c8_i32 : i32
    %36 = vector.broadcast %35 : i32 to vector<16x16xi32>
    %37 = arith.remsi %32, %36 : vector<16x16xi32>
    %c0_i32_23 = arith.constant 0 : i32
    %38 = vector.broadcast %c0_i32_23 : i32 to vector<16x16xi32>
    %39 = arith.cmpi ne, %37, %38 : vector<16x16xi32>
    %c0_i32_24 = arith.constant 0 : i32
    %40 = vector.broadcast %c0_i32_24 : i32 to vector<16x16xi32>
    %41 = arith.cmpi slt, %37, %40 : vector<16x16xi32>
    %c0_i32_25 = arith.constant 0 : i32
    %42 = arith.cmpi slt, %35, %c0_i32_25 : i32
    %43 = vector.broadcast %42 : i1 to vector<16x16xi1>
    %44 = vector.broadcast %43 : vector<16x16xi1> to vector<16x16xi1>
    %45 = arith.xori %41, %44 : vector<16x16xi1>
    %46 = arith.andi %45, %39 : vector<16x16xi1>
    %47 = vector.broadcast %35 : i32 to vector<16x16xi32>
    %48 = arith.addi %37, %47 : vector<16x16xi32>
    %49 = arith.select %46, %48, %37 : vector<16x16xi1>, vector<16x16xi32>
    %c8_i32_26 = arith.constant 8 : i32
    %c0_i32_27 = arith.constant 0 : i32
    %50 = arith.cmpi eq, %c8_i32_26, %c0_i32_27 : i32
    %c1_i32_28 = arith.constant 1 : i32
    %51 = arith.select %50, %c1_i32_28, %c8_i32_26 : i32
    %52 = vector.broadcast %51 : i32 to vector<16x16xi32>
    %53 = arith.remsi %33, %52 : vector<16x16xi32>
    %c0_i32_29 = arith.constant 0 : i32
    %54 = vector.broadcast %c0_i32_29 : i32 to vector<16x16xi32>
    %55 = arith.cmpi ne, %53, %54 : vector<16x16xi32>
    %c0_i32_30 = arith.constant 0 : i32
    %56 = vector.broadcast %c0_i32_30 : i32 to vector<16x16xi32>
    %57 = arith.cmpi slt, %53, %56 : vector<16x16xi32>
    %c0_i32_31 = arith.constant 0 : i32
    %58 = arith.cmpi slt, %51, %c0_i32_31 : i32
    %59 = vector.broadcast %58 : i1 to vector<16x16xi1>
    %60 = vector.broadcast %59 : vector<16x16xi1> to vector<16x16xi1>
    %61 = arith.xori %57, %60 : vector<16x16xi1>
    %62 = arith.andi %61, %55 : vector<16x16xi1>
    %63 = vector.broadcast %51 : i32 to vector<16x16xi32>
    %64 = arith.addi %53, %63 : vector<16x16xi32>
    %65 = arith.select %62, %64, %53 : vector<16x16xi1>, vector<16x16xi32>
    %66 = arith.cmpi eq, %49, %65 : vector<16x16xi32>
    %c0_32 = arith.constant 0 : index
    %c0_33 = arith.constant 0 : index
    %67 = vector.load %arg17[%c0_32, %c0_33] : memref<1x32xf32, #tpu.memory_space<vmem>>, vector<1x32xf32>
    %c0_34 = arith.constant 0 : index
    %c0_35 = arith.constant 0 : index
    %c0_36 = arith.constant 0 : index
    %68 = vector.load %arg10[%c0_34, %c0_35, %c0_36] : memref<4x32x8xf32, #tpu.memory_space<vmem>>, vector<1x32x8xf32>
    %69 = vector.shape_cast %68 : vector<1x32x8xf32> to vector<32x8xf32>
    %70 = arith.truncf %31 : vector<16x32xf32> to vector<16x32xbf16>
    %71 = arith.truncf %69 : vector<32x8xf32> to vector<32x8xbf16>
    %cst_37 = arith.constant dense<0.000000e+00> : vector<16x8xf32>
    %72 = tpu.matmul %70, %71, %cst_37 {dimension_numbers = #tpu.dot_dimension_numbers<[1], [0], [0], [1], [0, 0, 1, 1], [], []>} : vector<16x32xbf16>, vector<32x8xbf16>, vector<16x8xf32> -> vector<16x8xf32>
    %c0_38 = arith.constant 0 : index
    %c0_39 = arith.constant 0 : index
    %c0_40 = arith.constant 0 : index
    %73 = vector.load %arg13[%c0_38, %c0_39, %c0_40] : memref<4x1x8xf32, #tpu.memory_space<vmem>>, vector<1x1x8xf32>
    %74 = vector.shape_cast %73 : vector<1x1x8xf32> to vector<1x8xf32>
    %75 = vector.broadcast %74 : vector<1x8xf32> to vector<16x8xf32>
    %76 = arith.addf %72, %75 : vector<16x8xf32>
    %c0_41 = arith.constant 0 : index
    %c0_42 = arith.constant 0 : index
    %c0_43 = arith.constant 0 : index
    %77 = vector.load %arg11[%c0_41, %c0_42, %c0_43] : memref<4x32x8xf32, #tpu.memory_space<vmem>>, vector<1x32x8xf32>
    %78 = vector.shape_cast %77 : vector<1x32x8xf32> to vector<32x8xf32>
    %79 = arith.truncf %31 : vector<16x32xf32> to vector<16x32xbf16>
    %80 = arith.truncf %78 : vector<32x8xf32> to vector<32x8xbf16>
    %cst_44 = arith.constant dense<0.000000e+00> : vector<16x8xf32>
    %81 = tpu.matmul %79, %80, %cst_44 {dimension_numbers = #tpu.dot_dimension_numbers<[1], [0], [0], [1], [0, 0, 1, 1], [], []>} : vector<16x32xbf16>, vector<32x8xbf16>, vector<16x8xf32> -> vector<16x8xf32>
    %c0_45 = arith.constant 0 : index
    %c0_46 = arith.constant 0 : index
    %c0_47 = arith.constant 0 : index
    %82 = vector.load %arg14[%c0_45, %c0_46, %c0_47] : memref<4x1x8xf32, #tpu.memory_space<vmem>>, vector<1x1x8xf32>
    %83 = vector.shape_cast %82 : vector<1x1x8xf32> to vector<1x8xf32>
    %84 = vector.broadcast %83 : vector<1x8xf32> to vector<16x8xf32>
    %85 = arith.addf %81, %84 : vector<16x8xf32>
    %c0_48 = arith.constant 0 : index
    %c0_49 = arith.constant 0 : index
    %c0_50 = arith.constant 0 : index
    %86 = vector.load %arg12[%c0_48, %c0_49, %c0_50] : memref<4x32x8xf32, #tpu.memory_space<vmem>>, vector<1x32x8xf32>
    %87 = vector.shape_cast %86 : vector<1x32x8xf32> to vector<32x8xf32>
    %88 = arith.truncf %31 : vector<16x32xf32> to vector<16x32xbf16>
    %89 = arith.truncf %87 : vector<32x8xf32> to vector<32x8xbf16>
    %cst_51 = arith.constant dense<0.000000e+00> : vector<16x8xf32>
    %90 = tpu.matmul %88, %89, %cst_51 {dimension_numbers = #tpu.dot_dimension_numbers<[1], [0], [0], [1], [0, 0, 1, 1], [], []>} : vector<16x32xbf16>, vector<32x8xbf16>, vector<16x8xf32> -> vector<16x8xf32>
    %c0_52 = arith.constant 0 : index
    %c0_53 = arith.constant 0 : index
    %c0_54 = arith.constant 0 : index
    %91 = vector.load %arg15[%c0_52, %c0_53, %c0_54] : memref<4x1x8xf32, #tpu.memory_space<vmem>>, vector<1x1x8xf32>
    %92 = vector.shape_cast %91 : vector<1x1x8xf32> to vector<1x8xf32>
    %93 = vector.broadcast %92 : vector<1x8xf32> to vector<16x8xf32>
    %94 = arith.addf %90, %93 : vector<16x8xf32>
    %95 = arith.truncf %76 : vector<16x8xf32> to vector<16x8xbf16>
    %96 = arith.truncf %85 : vector<16x8xf32> to vector<16x8xbf16>
    %cst_55 = arith.constant dense<0.000000e+00> : vector<16x16xf32>
    %97 = tpu.matmul %95, %96, %cst_55 {dimension_numbers = #tpu.dot_dimension_numbers<[1], [1], [0], [0], [0, 0, 1, 0], [], []>} : vector<16x8xbf16>, vector<16x8xbf16>, vector<16x16xf32> -> vector<16x16xf32>
    %cst_56 = arith.constant 0.353553385 : f32
    %98 = vector.broadcast %cst_56 : f32 to vector<16x16xf32>
    %99 = arith.mulf %97, %98 : vector<16x16xf32>
    %cst_57 = arith.constant -1.000000e+09 : f32
    %100 = vector.broadcast %cst_57 : f32 to vector<16x16xf32>
    %101 = arith.select %66, %99, %100 : vector<16x16xi1>, vector<16x16xf32>
    %cst_58 = arith.constant dense<0xFF800000> : vector<16xf32>
    %102 = vector.multi_reduction <maximumf>, %101, %cst_58 [1] : vector<16x16xf32> to vector<16xf32>
    %103 = vector.shape_cast %102 : vector<16xf32> to vector<16x1xf32>
    %104 = vector.broadcast %103 : vector<16x1xf32> to vector<16x16xf32>
    %105 = arith.subf %101, %104 : vector<16x16xf32>
    %106 = math.exp %105 : vector<16x16xf32>
    %cst_59 = arith.constant dense<0.000000e+00> : vector<16xf32>
    %107 = vector.multi_reduction <add>, %106, %cst_59 [1] : vector<16x16xf32> to vector<16xf32>
    %108 = vector.shape_cast %107 : vector<16xf32> to vector<16x1xf32>
    %109 = tpu.reciprocal %108 {approx = true} : vector<16x1xf32> -> vector<16x1xf32>
    %110 = vector.broadcast %109 : vector<16x1xf32> to vector<16x16xf32>
    %111 = arith.mulf %106, %110 : vector<16x16xf32>
    %112 = arith.truncf %111 : vector<16x16xf32> to vector<16x16xbf16>
    %113 = arith.truncf %94 : vector<16x8xf32> to vector<16x8xbf16>
    %cst_60 = arith.constant dense<0.000000e+00> : vector<16x8xf32>
    %114 = tpu.matmul %112, %113, %cst_60 {dimension_numbers = #tpu.dot_dimension_numbers<[1], [0], [0], [1], [0, 0, 1, 1], [], []>} : vector<16x16xbf16>, vector<16x8xbf16>, vector<16x8xf32> -> vector<16x8xf32>
    %c0_61 = arith.constant 0 : index
    %c0_62 = arith.constant 0 : index
    %c0_63 = arith.constant 0 : index
    %115 = vector.load %arg16[%c0_61, %c0_62, %c0_63] : memref<4x8x32xf32, #tpu.memory_space<vmem>>, vector<1x8x32xf32>
    %116 = vector.shape_cast %115 : vector<1x8x32xf32> to vector<8x32xf32>
    %117 = arith.truncf %114 : vector<16x8xf32> to vector<16x8xbf16>
    %118 = arith.truncf %116 : vector<8x32xf32> to vector<8x32xbf16>
    %cst_64 = arith.constant dense<0.000000e+00> : vector<16x32xf32>
    %119 = tpu.matmul %117, %118, %cst_64 {dimension_numbers = #tpu.dot_dimension_numbers<[1], [0], [0], [1], [0, 0, 1, 1], [], []>} : vector<16x8xbf16>, vector<8x32xbf16>, vector<16x32xf32> -> vector<16x32xf32>
    %120 = vector.broadcast %67 : vector<1x32xf32> to vector<16x32xf32>
    %121 = arith.addf %120, %119 : vector<16x32xf32>
    %c1 = arith.constant 1 : index
    %c0_65 = arith.constant 0 : index
    %c0_66 = arith.constant 0 : index
    %122 = vector.load %arg10[%c1, %c0_65, %c0_66] : memref<4x32x8xf32, #tpu.memory_space<vmem>>, vector<1x32x8xf32>
    %123 = vector.shape_cast %122 : vector<1x32x8xf32> to vector<32x8xf32>
    %124 = arith.truncf %31 : vector<16x32xf32> to vector<16x32xbf16>
    %125 = arith.truncf %123 : vector<32x8xf32> to vector<32x8xbf16>
    %cst_67 = arith.constant dense<0.000000e+00> : vector<16x8xf32>
    %126 = tpu.matmul %124, %125, %cst_67 {dimension_numbers = #tpu.dot_dimension_numbers<[1], [0], [0], [1], [0, 0, 1, 1], [], []>} : vector<16x32xbf16>, vector<32x8xbf16>, vector<16x8xf32> -> vector<16x8xf32>
    %c1_68 = arith.constant 1 : index
    %c0_69 = arith.constant 0 : index
    %c0_70 = arith.constant 0 : index
    %127 = vector.load %arg13[%c1_68, %c0_69, %c0_70] : memref<4x1x8xf32, #tpu.memory_space<vmem>>, vector<1x1x8xf32>
    %128 = vector.shape_cast %127 : vector<1x1x8xf32> to vector<1x8xf32>
    %129 = vector.broadcast %128 : vector<1x8xf32> to vector<16x8xf32>
    %130 = arith.addf %126, %129 : vector<16x8xf32>
    %c1_71 = arith.constant 1 : index
    %c0_72 = arith.constant 0 : index
    %c0_73 = arith.constant 0 : index
    %131 = vector.load %arg11[%c1_71, %c0_72, %c0_73] : memref<4x32x8xf32, #tpu.memory_space<vmem>>, vector<1x32x8xf32>
    %132 = vector.shape_cast %131 : vector<1x32x8xf32> to vector<32x8xf32>
    %133 = arith.truncf %31 : vector<16x32xf32> to vector<16x32xbf16>
    %134 = arith.truncf %132 : vector<32x8xf32> to vector<32x8xbf16>
    %cst_74 = arith.constant dense<0.000000e+00> : vector<16x8xf32>
    %135 = tpu.matmul %133, %134, %cst_74 {dimension_numbers = #tpu.dot_dimension_numbers<[1], [0], [0], [1], [0, 0, 1, 1], [], []>} : vector<16x32xbf16>, vector<32x8xbf16>, vector<16x8xf32> -> vector<16x8xf32>
    %c1_75 = arith.constant 1 : index
    %c0_76 = arith.constant 0 : index
    %c0_77 = arith.constant 0 : index
    %136 = vector.load %arg14[%c1_75, %c0_76, %c0_77] : memref<4x1x8xf32, #tpu.memory_space<vmem>>, vector<1x1x8xf32>
    %137 = vector.shape_cast %136 : vector<1x1x8xf32> to vector<1x8xf32>
    %138 = vector.broadcast %137 : vector<1x8xf32> to vector<16x8xf32>
    %139 = arith.addf %135, %138 : vector<16x8xf32>
    %c1_78 = arith.constant 1 : index
    %c0_79 = arith.constant 0 : index
    %c0_80 = arith.constant 0 : index
    %140 = vector.load %arg12[%c1_78, %c0_79, %c0_80] : memref<4x32x8xf32, #tpu.memory_space<vmem>>, vector<1x32x8xf32>
    %141 = vector.shape_cast %140 : vector<1x32x8xf32> to vector<32x8xf32>
    %142 = arith.truncf %31 : vector<16x32xf32> to vector<16x32xbf16>
    %143 = arith.truncf %141 : vector<32x8xf32> to vector<32x8xbf16>
    %cst_81 = arith.constant dense<0.000000e+00> : vector<16x8xf32>
    %144 = tpu.matmul %142, %143, %cst_81 {dimension_numbers = #tpu.dot_dimension_numbers<[1], [0], [0], [1], [0, 0, 1, 1], [], []>} : vector<16x32xbf16>, vector<32x8xbf16>, vector<16x8xf32> -> vector<16x8xf32>
    %c1_82 = arith.constant 1 : index
    %c0_83 = arith.constant 0 : index
    %c0_84 = arith.constant 0 : index
    %145 = vector.load %arg15[%c1_82, %c0_83, %c0_84] : memref<4x1x8xf32, #tpu.memory_space<vmem>>, vector<1x1x8xf32>
    %146 = vector.shape_cast %145 : vector<1x1x8xf32> to vector<1x8xf32>
    %147 = vector.broadcast %146 : vector<1x8xf32> to vector<16x8xf32>
    %148 = arith.addf %144, %147 : vector<16x8xf32>
    %149 = arith.truncf %130 : vector<16x8xf32> to vector<16x8xbf16>
    %150 = arith.truncf %139 : vector<16x8xf32> to vector<16x8xbf16>
    %cst_85 = arith.constant dense<0.000000e+00> : vector<16x16xf32>
    %151 = tpu.matmul %149, %150, %cst_85 {dimension_numbers = #tpu.dot_dimension_numbers<[1], [1], [0], [0], [0, 0, 1, 0], [], []>} : vector<16x8xbf16>, vector<16x8xbf16>, vector<16x16xf32> -> vector<16x16xf32>
    %cst_86 = arith.constant 0.353553385 : f32
    %152 = vector.broadcast %cst_86 : f32 to vector<16x16xf32>
    %153 = arith.mulf %151, %152 : vector<16x16xf32>
    %cst_87 = arith.constant -1.000000e+09 : f32
    %154 = vector.broadcast %cst_87 : f32 to vector<16x16xf32>
    %155 = arith.select %66, %153, %154 : vector<16x16xi1>, vector<16x16xf32>
    %cst_88 = arith.constant dense<0xFF800000> : vector<16xf32>
    %156 = vector.multi_reduction <maximumf>, %155, %cst_88 [1] : vector<16x16xf32> to vector<16xf32>
    %157 = vector.shape_cast %156 : vector<16xf32> to vector<16x1xf32>
    %158 = vector.broadcast %157 : vector<16x1xf32> to vector<16x16xf32>
    %159 = arith.subf %155, %158 : vector<16x16xf32>
    %160 = math.exp %159 : vector<16x16xf32>
    %cst_89 = arith.constant dense<0.000000e+00> : vector<16xf32>
    %161 = vector.multi_reduction <add>, %160, %cst_89 [1] : vector<16x16xf32> to vector<16xf32>
    %162 = vector.shape_cast %161 : vector<16xf32> to vector<16x1xf32>
    %163 = tpu.reciprocal %162 {approx = true} : vector<16x1xf32> -> vector<16x1xf32>
    %164 = vector.broadcast %163 : vector<16x1xf32> to vector<16x16xf32>
    %165 = arith.mulf %160, %164 : vector<16x16xf32>
    %166 = arith.truncf %165 : vector<16x16xf32> to vector<16x16xbf16>
    %167 = arith.truncf %148 : vector<16x8xf32> to vector<16x8xbf16>
    %cst_90 = arith.constant dense<0.000000e+00> : vector<16x8xf32>
    %168 = tpu.matmul %166, %167, %cst_90 {dimension_numbers = #tpu.dot_dimension_numbers<[1], [0], [0], [1], [0, 0, 1, 1], [], []>} : vector<16x16xbf16>, vector<16x8xbf16>, vector<16x8xf32> -> vector<16x8xf32>
    %c1_91 = arith.constant 1 : index
    %c0_92 = arith.constant 0 : index
    %c0_93 = arith.constant 0 : index
    %169 = vector.load %arg16[%c1_91, %c0_92, %c0_93] : memref<4x8x32xf32, #tpu.memory_space<vmem>>, vector<1x8x32xf32>
    %170 = vector.shape_cast %169 : vector<1x8x32xf32> to vector<8x32xf32>
    %171 = arith.truncf %168 : vector<16x8xf32> to vector<16x8xbf16>
    %172 = arith.truncf %170 : vector<8x32xf32> to vector<8x32xbf16>
    %cst_94 = arith.constant dense<0.000000e+00> : vector<16x32xf32>
    %173 = tpu.matmul %171, %172, %cst_94 {dimension_numbers = #tpu.dot_dimension_numbers<[1], [0], [0], [1], [0, 0, 1, 1], [], []>} : vector<16x8xbf16>, vector<8x32xbf16>, vector<16x32xf32> -> vector<16x32xf32>
    %174 = arith.addf %121, %173 : vector<16x32xf32>
    %c2 = arith.constant 2 : index
    %c0_95 = arith.constant 0 : index
    %c0_96 = arith.constant 0 : index
    %175 = vector.load %arg10[%c2, %c0_95, %c0_96] : memref<4x32x8xf32, #tpu.memory_space<vmem>>, vector<1x32x8xf32>
    %176 = vector.shape_cast %175 : vector<1x32x8xf32> to vector<32x8xf32>
    %177 = arith.truncf %31 : vector<16x32xf32> to vector<16x32xbf16>
    %178 = arith.truncf %176 : vector<32x8xf32> to vector<32x8xbf16>
    %cst_97 = arith.constant dense<0.000000e+00> : vector<16x8xf32>
    %179 = tpu.matmul %177, %178, %cst_97 {dimension_numbers = #tpu.dot_dimension_numbers<[1], [0], [0], [1], [0, 0, 1, 1], [], []>} : vector<16x32xbf16>, vector<32x8xbf16>, vector<16x8xf32> -> vector<16x8xf32>
    %c2_98 = arith.constant 2 : index
    %c0_99 = arith.constant 0 : index
    %c0_100 = arith.constant 0 : index
    %180 = vector.load %arg13[%c2_98, %c0_99, %c0_100] : memref<4x1x8xf32, #tpu.memory_space<vmem>>, vector<1x1x8xf32>
    %181 = vector.shape_cast %180 : vector<1x1x8xf32> to vector<1x8xf32>
    %182 = vector.broadcast %181 : vector<1x8xf32> to vector<16x8xf32>
    %183 = arith.addf %179, %182 : vector<16x8xf32>
    %c2_101 = arith.constant 2 : index
    %c0_102 = arith.constant 0 : index
    %c0_103 = arith.constant 0 : index
    %184 = vector.load %arg11[%c2_101, %c0_102, %c0_103] : memref<4x32x8xf32, #tpu.memory_space<vmem>>, vector<1x32x8xf32>
    %185 = vector.shape_cast %184 : vector<1x32x8xf32> to vector<32x8xf32>
    %186 = arith.truncf %31 : vector<16x32xf32> to vector<16x32xbf16>
    %187 = arith.truncf %185 : vector<32x8xf32> to vector<32x8xbf16>
    %cst_104 = arith.constant dense<0.000000e+00> : vector<16x8xf32>
    %188 = tpu.matmul %186, %187, %cst_104 {dimension_numbers = #tpu.dot_dimension_numbers<[1], [0], [0], [1], [0, 0, 1, 1], [], []>} : vector<16x32xbf16>, vector<32x8xbf16>, vector<16x8xf32> -> vector<16x8xf32>
    %c2_105 = arith.constant 2 : index
    %c0_106 = arith.constant 0 : index
    %c0_107 = arith.constant 0 : index
    %189 = vector.load %arg14[%c2_105, %c0_106, %c0_107] : memref<4x1x8xf32, #tpu.memory_space<vmem>>, vector<1x1x8xf32>
    %190 = vector.shape_cast %189 : vector<1x1x8xf32> to vector<1x8xf32>
    %191 = vector.broadcast %190 : vector<1x8xf32> to vector<16x8xf32>
    %192 = arith.addf %188, %191 : vector<16x8xf32>
    %c2_108 = arith.constant 2 : index
    %c0_109 = arith.constant 0 : index
    %c0_110 = arith.constant 0 : index
    %193 = vector.load %arg12[%c2_108, %c0_109, %c0_110] : memref<4x32x8xf32, #tpu.memory_space<vmem>>, vector<1x32x8xf32>
    %194 = vector.shape_cast %193 : vector<1x32x8xf32> to vector<32x8xf32>
    %195 = arith.truncf %31 : vector<16x32xf32> to vector<16x32xbf16>
    %196 = arith.truncf %194 : vector<32x8xf32> to vector<32x8xbf16>
    %cst_111 = arith.constant dense<0.000000e+00> : vector<16x8xf32>
    %197 = tpu.matmul %195, %196, %cst_111 {dimension_numbers = #tpu.dot_dimension_numbers<[1], [0], [0], [1], [0, 0, 1, 1], [], []>} : vector<16x32xbf16>, vector<32x8xbf16>, vector<16x8xf32> -> vector<16x8xf32>
    %c2_112 = arith.constant 2 : index
    %c0_113 = arith.constant 0 : index
    %c0_114 = arith.constant 0 : index
    %198 = vector.load %arg15[%c2_112, %c0_113, %c0_114] : memref<4x1x8xf32, #tpu.memory_space<vmem>>, vector<1x1x8xf32>
    %199 = vector.shape_cast %198 : vector<1x1x8xf32> to vector<1x8xf32>
    %200 = vector.broadcast %199 : vector<1x8xf32> to vector<16x8xf32>
    %201 = arith.addf %197, %200 : vector<16x8xf32>
    %202 = arith.truncf %183 : vector<16x8xf32> to vector<16x8xbf16>
    %203 = arith.truncf %192 : vector<16x8xf32> to vector<16x8xbf16>
    %cst_115 = arith.constant dense<0.000000e+00> : vector<16x16xf32>
    %204 = tpu.matmul %202, %203, %cst_115 {dimension_numbers = #tpu.dot_dimension_numbers<[1], [1], [0], [0], [0, 0, 1, 0], [], []>} : vector<16x8xbf16>, vector<16x8xbf16>, vector<16x16xf32> -> vector<16x16xf32>
    %cst_116 = arith.constant 0.353553385 : f32
    %205 = vector.broadcast %cst_116 : f32 to vector<16x16xf32>
    %206 = arith.mulf %204, %205 : vector<16x16xf32>
    %cst_117 = arith.constant -1.000000e+09 : f32
    %207 = vector.broadcast %cst_117 : f32 to vector<16x16xf32>
    %208 = arith.select %66, %206, %207 : vector<16x16xi1>, vector<16x16xf32>
    %cst_118 = arith.constant dense<0xFF800000> : vector<16xf32>
    %209 = vector.multi_reduction <maximumf>, %208, %cst_118 [1] : vector<16x16xf32> to vector<16xf32>
    %210 = vector.shape_cast %209 : vector<16xf32> to vector<16x1xf32>
    %211 = vector.broadcast %210 : vector<16x1xf32> to vector<16x16xf32>
    %212 = arith.subf %208, %211 : vector<16x16xf32>
    %213 = math.exp %212 : vector<16x16xf32>
    %cst_119 = arith.constant dense<0.000000e+00> : vector<16xf32>
    %214 = vector.multi_reduction <add>, %213, %cst_119 [1] : vector<16x16xf32> to vector<16xf32>
    %215 = vector.shape_cast %214 : vector<16xf32> to vector<16x1xf32>
    %216 = tpu.reciprocal %215 {approx = true} : vector<16x1xf32> -> vector<16x1xf32>
    %217 = vector.broadcast %216 : vector<16x1xf32> to vector<16x16xf32>
    %218 = arith.mulf %213, %217 : vector<16x16xf32>
    %219 = arith.truncf %218 : vector<16x16xf32> to vector<16x16xbf16>
    %220 = arith.truncf %201 : vector<16x8xf32> to vector<16x8xbf16>
    %cst_120 = arith.constant dense<0.000000e+00> : vector<16x8xf32>
    %221 = tpu.matmul %219, %220, %cst_120 {dimension_numbers = #tpu.dot_dimension_numbers<[1], [0], [0], [1], [0, 0, 1, 1], [], []>} : vector<16x16xbf16>, vector<16x8xbf16>, vector<16x8xf32> -> vector<16x8xf32>
    %c2_121 = arith.constant 2 : index
    %c0_122 = arith.constant 0 : index
    %c0_123 = arith.constant 0 : index
    %222 = vector.load %arg16[%c2_121, %c0_122, %c0_123] : memref<4x8x32xf32, #tpu.memory_space<vmem>>, vector<1x8x32xf32>
    %223 = vector.shape_cast %222 : vector<1x8x32xf32> to vector<8x32xf32>
    %224 = arith.truncf %221 : vector<16x8xf32> to vector<16x8xbf16>
    %225 = arith.truncf %223 : vector<8x32xf32> to vector<8x32xbf16>
    %cst_124 = arith.constant dense<0.000000e+00> : vector<16x32xf32>
    %226 = tpu.matmul %224, %225, %cst_124 {dimension_numbers = #tpu.dot_dimension_numbers<[1], [0], [0], [1], [0, 0, 1, 1], [], []>} : vector<16x8xbf16>, vector<8x32xbf16>, vector<16x32xf32> -> vector<16x32xf32>
    %227 = arith.addf %174, %226 : vector<16x32xf32>
    %c3 = arith.constant 3 : index
    %c0_125 = arith.constant 0 : index
    %c0_126 = arith.constant 0 : index
    %228 = vector.load %arg10[%c3, %c0_125, %c0_126] : memref<4x32x8xf32, #tpu.memory_space<vmem>>, vector<1x32x8xf32>
    %229 = vector.shape_cast %228 : vector<1x32x8xf32> to vector<32x8xf32>
    %230 = arith.truncf %31 : vector<16x32xf32> to vector<16x32xbf16>
    %231 = arith.truncf %229 : vector<32x8xf32> to vector<32x8xbf16>
    %cst_127 = arith.constant dense<0.000000e+00> : vector<16x8xf32>
    %232 = tpu.matmul %230, %231, %cst_127 {dimension_numbers = #tpu.dot_dimension_numbers<[1], [0], [0], [1], [0, 0, 1, 1], [], []>} : vector<16x32xbf16>, vector<32x8xbf16>, vector<16x8xf32> -> vector<16x8xf32>
    %c3_128 = arith.constant 3 : index
    %c0_129 = arith.constant 0 : index
    %c0_130 = arith.constant 0 : index
    %233 = vector.load %arg13[%c3_128, %c0_129, %c0_130] : memref<4x1x8xf32, #tpu.memory_space<vmem>>, vector<1x1x8xf32>
    %234 = vector.shape_cast %233 : vector<1x1x8xf32> to vector<1x8xf32>
    %235 = vector.broadcast %234 : vector<1x8xf32> to vector<16x8xf32>
    %236 = arith.addf %232, %235 : vector<16x8xf32>
    %c3_131 = arith.constant 3 : index
    %c0_132 = arith.constant 0 : index
    %c0_133 = arith.constant 0 : index
    %237 = vector.load %arg11[%c3_131, %c0_132, %c0_133] : memref<4x32x8xf32, #tpu.memory_space<vmem>>, vector<1x32x8xf32>
    %238 = vector.shape_cast %237 : vector<1x32x8xf32> to vector<32x8xf32>
    %239 = arith.truncf %31 : vector<16x32xf32> to vector<16x32xbf16>
    %240 = arith.truncf %238 : vector<32x8xf32> to vector<32x8xbf16>
    %cst_134 = arith.constant dense<0.000000e+00> : vector<16x8xf32>
    %241 = tpu.matmul %239, %240, %cst_134 {dimension_numbers = #tpu.dot_dimension_numbers<[1], [0], [0], [1], [0, 0, 1, 1], [], []>} : vector<16x32xbf16>, vector<32x8xbf16>, vector<16x8xf32> -> vector<16x8xf32>
    %c3_135 = arith.constant 3 : index
    %c0_136 = arith.constant 0 : index
    %c0_137 = arith.constant 0 : index
    %242 = vector.load %arg14[%c3_135, %c0_136, %c0_137] : memref<4x1x8xf32, #tpu.memory_space<vmem>>, vector<1x1x8xf32>
    %243 = vector.shape_cast %242 : vector<1x1x8xf32> to vector<1x8xf32>
    %244 = vector.broadcast %243 : vector<1x8xf32> to vector<16x8xf32>
    %245 = arith.addf %241, %244 : vector<16x8xf32>
    %c3_138 = arith.constant 3 : index
    %c0_139 = arith.constant 0 : index
    %c0_140 = arith.constant 0 : index
    %246 = vector.load %arg12[%c3_138, %c0_139, %c0_140] : memref<4x32x8xf32, #tpu.memory_space<vmem>>, vector<1x32x8xf32>
    %247 = vector.shape_cast %246 : vector<1x32x8xf32> to vector<32x8xf32>
    %248 = arith.truncf %31 : vector<16x32xf32> to vector<16x32xbf16>
    %249 = arith.truncf %247 : vector<32x8xf32> to vector<32x8xbf16>
    %cst_141 = arith.constant dense<0.000000e+00> : vector<16x8xf32>
    %250 = tpu.matmul %248, %249, %cst_141 {dimension_numbers = #tpu.dot_dimension_numbers<[1], [0], [0], [1], [0, 0, 1, 1], [], []>} : vector<16x32xbf16>, vector<32x8xbf16>, vector<16x8xf32> -> vector<16x8xf32>
    %c3_142 = arith.constant 3 : index
    %c0_143 = arith.constant 0 : index
    %c0_144 = arith.constant 0 : index
    %251 = vector.load %arg15[%c3_142, %c0_143, %c0_144] : memref<4x1x8xf32, #tpu.memory_space<vmem>>, vector<1x1x8xf32>
    %252 = vector.shape_cast %251 : vector<1x1x8xf32> to vector<1x8xf32>
    %253 = vector.broadcast %252 : vector<1x8xf32> to vector<16x8xf32>
    %254 = arith.addf %250, %253 : vector<16x8xf32>
    %255 = arith.truncf %236 : vector<16x8xf32> to vector<16x8xbf16>
    %256 = arith.truncf %245 : vector<16x8xf32> to vector<16x8xbf16>
    %cst_145 = arith.constant dense<0.000000e+00> : vector<16x16xf32>
    %257 = tpu.matmul %255, %256, %cst_145 {dimension_numbers = #tpu.dot_dimension_numbers<[1], [1], [0], [0], [0, 0, 1, 0], [], []>} : vector<16x8xbf16>, vector<16x8xbf16>, vector<16x16xf32> -> vector<16x16xf32>
    %cst_146 = arith.constant 0.353553385 : f32
    %258 = vector.broadcast %cst_146 : f32 to vector<16x16xf32>
    %259 = arith.mulf %257, %258 : vector<16x16xf32>
    %cst_147 = arith.constant -1.000000e+09 : f32
    %260 = vector.broadcast %cst_147 : f32 to vector<16x16xf32>
    %261 = arith.select %66, %259, %260 : vector<16x16xi1>, vector<16x16xf32>
    %cst_148 = arith.constant dense<0xFF800000> : vector<16xf32>
    %262 = vector.multi_reduction <maximumf>, %261, %cst_148 [1] : vector<16x16xf32> to vector<16xf32>
    %263 = vector.shape_cast %262 : vector<16xf32> to vector<16x1xf32>
    %264 = vector.broadcast %263 : vector<16x1xf32> to vector<16x16xf32>
    %265 = arith.subf %261, %264 : vector<16x16xf32>
    %266 = math.exp %265 : vector<16x16xf32>
    %cst_149 = arith.constant dense<0.000000e+00> : vector<16xf32>
    %267 = vector.multi_reduction <add>, %266, %cst_149 [1] : vector<16x16xf32> to vector<16xf32>
    %268 = vector.shape_cast %267 : vector<16xf32> to vector<16x1xf32>
    %269 = tpu.reciprocal %268 {approx = true} : vector<16x1xf32> -> vector<16x1xf32>
    %270 = vector.broadcast %269 : vector<16x1xf32> to vector<16x16xf32>
    %271 = arith.mulf %266, %270 : vector<16x16xf32>
    %272 = arith.truncf %271 : vector<16x16xf32> to vector<16x16xbf16>
    %273 = arith.truncf %254 : vector<16x8xf32> to vector<16x8xbf16>
    %cst_150 = arith.constant dense<0.000000e+00> : vector<16x8xf32>
    %274 = tpu.matmul %272, %273, %cst_150 {dimension_numbers = #tpu.dot_dimension_numbers<[1], [0], [0], [1], [0, 0, 1, 1], [], []>} : vector<16x16xbf16>, vector<16x8xbf16>, vector<16x8xf32> -> vector<16x8xf32>
    %c3_151 = arith.constant 3 : index
    %c0_152 = arith.constant 0 : index
    %c0_153 = arith.constant 0 : index
    %275 = vector.load %arg16[%c3_151, %c0_152, %c0_153] : memref<4x8x32xf32, #tpu.memory_space<vmem>>, vector<1x8x32xf32>
    %276 = vector.shape_cast %275 : vector<1x8x32xf32> to vector<8x32xf32>
    %277 = arith.truncf %274 : vector<16x8xf32> to vector<16x8xbf16>
    %278 = arith.truncf %276 : vector<8x32xf32> to vector<8x32xbf16>
    %cst_154 = arith.constant dense<0.000000e+00> : vector<16x32xf32>
    %279 = tpu.matmul %277, %278, %cst_154 {dimension_numbers = #tpu.dot_dimension_numbers<[1], [0], [0], [1], [0, 0, 1, 1], [], []>} : vector<16x8xbf16>, vector<8x32xbf16>, vector<16x32xf32> -> vector<16x32xf32>
    %280 = arith.addf %227, %279 : vector<16x32xf32>
    %281 = arith.addf %31, %280 : vector<16x32xf32>
    %c0_155 = arith.constant 0 : index
    %c0_156 = arith.constant 0 : index
    %282 = vector.load %arg18[%c0_155, %c0_156] : memref<1x32xf32, #tpu.memory_space<vmem>>, vector<1x32xf32>
    %c0_157 = arith.constant 0 : index
    %c0_158 = arith.constant 0 : index
    %283 = vector.load %arg19[%c0_157, %c0_158] : memref<1x32xf32, #tpu.memory_space<vmem>>, vector<1x32xf32>
    %cst_159 = arith.constant dense<0.000000e+00> : vector<16xf32>
    %284 = vector.multi_reduction <add>, %281, %cst_159 [1] : vector<16x32xf32> to vector<16xf32>
    %285 = vector.shape_cast %284 : vector<16xf32> to vector<16x1xf32>
    %cst_160 = arith.constant 3.200000e+01 : f32
    %286 = vector.broadcast %cst_160 : f32 to vector<16x1xf32>
    %287 = arith.divf %285, %286 : vector<16x1xf32>
    %288 = vector.broadcast %287 : vector<16x1xf32> to vector<16x32xf32>
    %289 = arith.subf %281, %288 : vector<16x32xf32>
    %290 = arith.mulf %289, %289 : vector<16x32xf32>
    %cst_161 = arith.constant dense<0.000000e+00> : vector<16xf32>
    %291 = vector.multi_reduction <add>, %290, %cst_161 [1] : vector<16x32xf32> to vector<16xf32>
    %292 = vector.shape_cast %291 : vector<16xf32> to vector<16x1xf32>
    %cst_162 = arith.constant 3.200000e+01 : f32
    %293 = vector.broadcast %cst_162 : f32 to vector<16x1xf32>
    %294 = arith.divf %292, %293 : vector<16x1xf32>
    %cst_163 = arith.constant 9.99999974E-6 : f32
    %295 = vector.broadcast %cst_163 : f32 to vector<16x1xf32>
    %296 = arith.addf %294, %295 : vector<16x1xf32>
    %297 = math.rsqrt %296 : vector<16x1xf32>
    %298 = vector.broadcast %297 : vector<16x1xf32> to vector<16x32xf32>
    %299 = arith.mulf %289, %298 : vector<16x32xf32>
    %300 = vector.broadcast %282 : vector<1x32xf32> to vector<16x32xf32>
    %301 = arith.mulf %299, %300 : vector<16x32xf32>
    %302 = vector.broadcast %283 : vector<1x32xf32> to vector<16x32xf32>
    %303 = arith.addf %301, %302 : vector<16x32xf32>
    %c0_164 = arith.constant 0 : index
    %c0_165 = arith.constant 0 : index
    %304 = vector.load %arg20[%c0_164, %c0_165] : memref<32x64xf32, #tpu.memory_space<vmem>>, vector<32x64xf32>
    %305 = arith.truncf %303 : vector<16x32xf32> to vector<16x32xbf16>
    %306 = arith.truncf %304 : vector<32x64xf32> to vector<32x64xbf16>
    %cst_166 = arith.constant dense<0.000000e+00> : vector<16x64xf32>
    %307 = tpu.matmul %305, %306, %cst_166 {dimension_numbers = #tpu.dot_dimension_numbers<[1], [0], [0], [1], [0, 0, 1, 1], [], []>} : vector<16x32xbf16>, vector<32x64xbf16>, vector<16x64xf32> -> vector<16x64xf32>
    %c0_167 = arith.constant 0 : index
    %c0_168 = arith.constant 0 : index
    %308 = vector.load %arg21[%c0_167, %c0_168] : memref<1x64xf32, #tpu.memory_space<vmem>>, vector<1x64xf32>
    %309 = vector.broadcast %308 : vector<1x64xf32> to vector<16x64xf32>
    %310 = arith.addf %307, %309 : vector<16x64xf32>
    %cst_169 = arith.constant 0.000000e+00 : f32
    %311 = vector.broadcast %cst_169 : f32 to vector<16x64xf32>
    %312 = arith.maximumf %310, %311 : vector<16x64xf32>
    %c0_170 = arith.constant 0 : index
    %c0_171 = arith.constant 0 : index
    %313 = vector.load %arg22[%c0_170, %c0_171] : memref<64x32xf32, #tpu.memory_space<vmem>>, vector<64x32xf32>
    %314 = arith.truncf %312 : vector<16x64xf32> to vector<16x64xbf16>
    %315 = arith.truncf %313 : vector<64x32xf32> to vector<64x32xbf16>
    %cst_172 = arith.constant dense<0.000000e+00> : vector<16x32xf32>
    %316 = tpu.matmul %314, %315, %cst_172 {dimension_numbers = #tpu.dot_dimension_numbers<[1], [0], [0], [1], [0, 0, 1, 1], [], []>} : vector<16x64xbf16>, vector<64x32xbf16>, vector<16x32xf32> -> vector<16x32xf32>
    %c0_173 = arith.constant 0 : index
    %c0_174 = arith.constant 0 : index
    %317 = vector.load %arg23[%c0_173, %c0_174] : memref<1x32xf32, #tpu.memory_space<vmem>>, vector<1x32xf32>
    %318 = vector.broadcast %317 : vector<1x32xf32> to vector<16x32xf32>
    %319 = arith.addf %316, %318 : vector<16x32xf32>
    %320 = arith.addf %303, %319 : vector<16x32xf32>
    %c0_175 = arith.constant 0 : index
    %c0_176 = arith.constant 0 : index
    %321 = vector.load %arg24[%c0_175, %c0_176] : memref<1x32xf32, #tpu.memory_space<vmem>>, vector<1x32xf32>
    %c0_177 = arith.constant 0 : index
    %c0_178 = arith.constant 0 : index
    %322 = vector.load %arg25[%c0_177, %c0_178] : memref<1x32xf32, #tpu.memory_space<vmem>>, vector<1x32xf32>
    %cst_179 = arith.constant dense<0.000000e+00> : vector<16xf32>
    %323 = vector.multi_reduction <add>, %320, %cst_179 [1] : vector<16x32xf32> to vector<16xf32>
    %324 = vector.shape_cast %323 : vector<16xf32> to vector<16x1xf32>
    %cst_180 = arith.constant 3.200000e+01 : f32
    %325 = vector.broadcast %cst_180 : f32 to vector<16x1xf32>
    %326 = arith.divf %324, %325 : vector<16x1xf32>
    %327 = vector.broadcast %326 : vector<16x1xf32> to vector<16x32xf32>
    %328 = arith.subf %320, %327 : vector<16x32xf32>
    %329 = arith.mulf %328, %328 : vector<16x32xf32>
    %cst_181 = arith.constant dense<0.000000e+00> : vector<16xf32>
    %330 = vector.multi_reduction <add>, %329, %cst_181 [1] : vector<16x32xf32> to vector<16xf32>
    %331 = vector.shape_cast %330 : vector<16xf32> to vector<16x1xf32>
    %cst_182 = arith.constant 3.200000e+01 : f32
    %332 = vector.broadcast %cst_182 : f32 to vector<16x1xf32>
    %333 = arith.divf %331, %332 : vector<16x1xf32>
    %cst_183 = arith.constant 9.99999974E-6 : f32
    %334 = vector.broadcast %cst_183 : f32 to vector<16x1xf32>
    %335 = arith.addf %333, %334 : vector<16x1xf32>
    %336 = math.rsqrt %335 : vector<16x1xf32>
    %337 = vector.broadcast %336 : vector<16x1xf32> to vector<16x32xf32>
    %338 = arith.mulf %328, %337 : vector<16x32xf32>
    %339 = vector.broadcast %321 : vector<1x32xf32> to vector<16x32xf32>
    %340 = arith.mulf %338, %339 : vector<16x32xf32>
    %341 = vector.broadcast %322 : vector<1x32xf32> to vector<16x32xf32>
    %342 = arith.addf %340, %341 : vector<16x32xf32>
    %c0_184 = arith.constant 0 : index
    %c0_185 = arith.constant 0 : index
    %343 = vector.load %arg33[%c0_184, %c0_185] : memref<1x32xf32, #tpu.memory_space<vmem>>, vector<1x32xf32>
    %c0_186 = arith.constant 0 : index
    %c0_187 = arith.constant 0 : index
    %c0_188 = arith.constant 0 : index
    %344 = vector.load %arg26[%c0_186, %c0_187, %c0_188] : memref<4x32x8xf32, #tpu.memory_space<vmem>>, vector<1x32x8xf32>
    %345 = vector.shape_cast %344 : vector<1x32x8xf32> to vector<32x8xf32>
    %346 = arith.truncf %342 : vector<16x32xf32> to vector<16x32xbf16>
    %347 = arith.truncf %345 : vector<32x8xf32> to vector<32x8xbf16>
    %cst_189 = arith.constant dense<0.000000e+00> : vector<16x8xf32>
    %348 = tpu.matmul %346, %347, %cst_189 {dimension_numbers = #tpu.dot_dimension_numbers<[1], [0], [0], [1], [0, 0, 1, 1], [], []>} : vector<16x32xbf16>, vector<32x8xbf16>, vector<16x8xf32> -> vector<16x8xf32>
    %c0_190 = arith.constant 0 : index
    %c0_191 = arith.constant 0 : index
    %c0_192 = arith.constant 0 : index
    %349 = vector.load %arg29[%c0_190, %c0_191, %c0_192] : memref<4x1x8xf32, #tpu.memory_space<vmem>>, vector<1x1x8xf32>
    %350 = vector.shape_cast %349 : vector<1x1x8xf32> to vector<1x8xf32>
    %351 = vector.broadcast %350 : vector<1x8xf32> to vector<16x8xf32>
    %352 = arith.addf %348, %351 : vector<16x8xf32>
    %c0_193 = arith.constant 0 : index
    %c0_194 = arith.constant 0 : index
    %c0_195 = arith.constant 0 : index
    %353 = vector.load %arg27[%c0_193, %c0_194, %c0_195] : memref<4x32x8xf32, #tpu.memory_space<vmem>>, vector<1x32x8xf32>
    %354 = vector.shape_cast %353 : vector<1x32x8xf32> to vector<32x8xf32>
    %355 = arith.truncf %342 : vector<16x32xf32> to vector<16x32xbf16>
    %356 = arith.truncf %354 : vector<32x8xf32> to vector<32x8xbf16>
    %cst_196 = arith.constant dense<0.000000e+00> : vector<16x8xf32>
    %357 = tpu.matmul %355, %356, %cst_196 {dimension_numbers = #tpu.dot_dimension_numbers<[1], [0], [0], [1], [0, 0, 1, 1], [], []>} : vector<16x32xbf16>, vector<32x8xbf16>, vector<16x8xf32> -> vector<16x8xf32>
    %c0_197 = arith.constant 0 : index
    %c0_198 = arith.constant 0 : index
    %c0_199 = arith.constant 0 : index
    %358 = vector.load %arg30[%c0_197, %c0_198, %c0_199] : memref<4x1x8xf32, #tpu.memory_space<vmem>>, vector<1x1x8xf32>
    %359 = vector.shape_cast %358 : vector<1x1x8xf32> to vector<1x8xf32>
    %360 = vector.broadcast %359 : vector<1x8xf32> to vector<16x8xf32>
    %361 = arith.addf %357, %360 : vector<16x8xf32>
    %c0_200 = arith.constant 0 : index
    %c0_201 = arith.constant 0 : index
    %c0_202 = arith.constant 0 : index
    %362 = vector.load %arg28[%c0_200, %c0_201, %c0_202] : memref<4x32x8xf32, #tpu.memory_space<vmem>>, vector<1x32x8xf32>
    %363 = vector.shape_cast %362 : vector<1x32x8xf32> to vector<32x8xf32>
    %364 = arith.truncf %342 : vector<16x32xf32> to vector<16x32xbf16>
    %365 = arith.truncf %363 : vector<32x8xf32> to vector<32x8xbf16>
    %cst_203 = arith.constant dense<0.000000e+00> : vector<16x8xf32>
    %366 = tpu.matmul %364, %365, %cst_203 {dimension_numbers = #tpu.dot_dimension_numbers<[1], [0], [0], [1], [0, 0, 1, 1], [], []>} : vector<16x32xbf16>, vector<32x8xbf16>, vector<16x8xf32> -> vector<16x8xf32>
    %c0_204 = arith.constant 0 : index
    %c0_205 = arith.constant 0 : index
    %c0_206 = arith.constant 0 : index
    %367 = vector.load %arg31[%c0_204, %c0_205, %c0_206] : memref<4x1x8xf32, #tpu.memory_space<vmem>>, vector<1x1x8xf32>
    %368 = vector.shape_cast %367 : vector<1x1x8xf32> to vector<1x8xf32>
    %369 = vector.broadcast %368 : vector<1x8xf32> to vector<16x8xf32>
    %370 = arith.addf %366, %369 : vector<16x8xf32>
    %371 = arith.truncf %352 : vector<16x8xf32> to vector<16x8xbf16>
    %372 = arith.truncf %361 : vector<16x8xf32> to vector<16x8xbf16>
    %cst_207 = arith.constant dense<0.000000e+00> : vector<16x16xf32>
    %373 = tpu.matmul %371, %372, %cst_207 {dimension_numbers = #tpu.dot_dimension_numbers<[1], [1], [0], [0], [0, 0, 1, 0], [], []>} : vector<16x8xbf16>, vector<16x8xbf16>, vector<16x16xf32> -> vector<16x16xf32>
    %cst_208 = arith.constant 0.353553385 : f32
    %374 = vector.broadcast %cst_208 : f32 to vector<16x16xf32>
    %375 = arith.mulf %373, %374 : vector<16x16xf32>
    %cst_209 = arith.constant -1.000000e+09 : f32
    %376 = vector.broadcast %cst_209 : f32 to vector<16x16xf32>
    %377 = arith.select %66, %375, %376 : vector<16x16xi1>, vector<16x16xf32>
    %cst_210 = arith.constant dense<0xFF800000> : vector<16xf32>
    %378 = vector.multi_reduction <maximumf>, %377, %cst_210 [1] : vector<16x16xf32> to vector<16xf32>
    %379 = vector.shape_cast %378 : vector<16xf32> to vector<16x1xf32>
    %380 = vector.broadcast %379 : vector<16x1xf32> to vector<16x16xf32>
    %381 = arith.subf %377, %380 : vector<16x16xf32>
    %382 = math.exp %381 : vector<16x16xf32>
    %cst_211 = arith.constant dense<0.000000e+00> : vector<16xf32>
    %383 = vector.multi_reduction <add>, %382, %cst_211 [1] : vector<16x16xf32> to vector<16xf32>
    %384 = vector.shape_cast %383 : vector<16xf32> to vector<16x1xf32>
    %385 = tpu.reciprocal %384 {approx = true} : vector<16x1xf32> -> vector<16x1xf32>
    %386 = vector.broadcast %385 : vector<16x1xf32> to vector<16x16xf32>
    %387 = arith.mulf %382, %386 : vector<16x16xf32>
    %388 = arith.truncf %387 : vector<16x16xf32> to vector<16x16xbf16>
    %389 = arith.truncf %370 : vector<16x8xf32> to vector<16x8xbf16>
    %cst_212 = arith.constant dense<0.000000e+00> : vector<16x8xf32>
    %390 = tpu.matmul %388, %389, %cst_212 {dimension_numbers = #tpu.dot_dimension_numbers<[1], [0], [0], [1], [0, 0, 1, 1], [], []>} : vector<16x16xbf16>, vector<16x8xbf16>, vector<16x8xf32> -> vector<16x8xf32>
    %c0_213 = arith.constant 0 : index
    %c0_214 = arith.constant 0 : index
    %c0_215 = arith.constant 0 : index
    %391 = vector.load %arg32[%c0_213, %c0_214, %c0_215] : memref<4x8x32xf32, #tpu.memory_space<vmem>>, vector<1x8x32xf32>
    %392 = vector.shape_cast %391 : vector<1x8x32xf32> to vector<8x32xf32>
    %393 = arith.truncf %390 : vector<16x8xf32> to vector<16x8xbf16>
    %394 = arith.truncf %392 : vector<8x32xf32> to vector<8x32xbf16>
    %cst_216 = arith.constant dense<0.000000e+00> : vector<16x32xf32>
    %395 = tpu.matmul %393, %394, %cst_216 {dimension_numbers = #tpu.dot_dimension_numbers<[1], [0], [0], [1], [0, 0, 1, 1], [], []>} : vector<16x8xbf16>, vector<8x32xbf16>, vector<16x32xf32> -> vector<16x32xf32>
    %396 = vector.broadcast %343 : vector<1x32xf32> to vector<16x32xf32>
    %397 = arith.addf %396, %395 : vector<16x32xf32>
    %c1_217 = arith.constant 1 : index
    %c0_218 = arith.constant 0 : index
    %c0_219 = arith.constant 0 : index
    %398 = vector.load %arg26[%c1_217, %c0_218, %c0_219] : memref<4x32x8xf32, #tpu.memory_space<vmem>>, vector<1x32x8xf32>
    %399 = vector.shape_cast %398 : vector<1x32x8xf32> to vector<32x8xf32>
    %400 = arith.truncf %342 : vector<16x32xf32> to vector<16x32xbf16>
    %401 = arith.truncf %399 : vector<32x8xf32> to vector<32x8xbf16>
    %cst_220 = arith.constant dense<0.000000e+00> : vector<16x8xf32>
    %402 = tpu.matmul %400, %401, %cst_220 {dimension_numbers = #tpu.dot_dimension_numbers<[1], [0], [0], [1], [0, 0, 1, 1], [], []>} : vector<16x32xbf16>, vector<32x8xbf16>, vector<16x8xf32> -> vector<16x8xf32>
    %c1_221 = arith.constant 1 : index
    %c0_222 = arith.constant 0 : index
    %c0_223 = arith.constant 0 : index
    %403 = vector.load %arg29[%c1_221, %c0_222, %c0_223] : memref<4x1x8xf32, #tpu.memory_space<vmem>>, vector<1x1x8xf32>
    %404 = vector.shape_cast %403 : vector<1x1x8xf32> to vector<1x8xf32>
    %405 = vector.broadcast %404 : vector<1x8xf32> to vector<16x8xf32>
    %406 = arith.addf %402, %405 : vector<16x8xf32>
    %c1_224 = arith.constant 1 : index
    %c0_225 = arith.constant 0 : index
    %c0_226 = arith.constant 0 : index
    %407 = vector.load %arg27[%c1_224, %c0_225, %c0_226] : memref<4x32x8xf32, #tpu.memory_space<vmem>>, vector<1x32x8xf32>
    %408 = vector.shape_cast %407 : vector<1x32x8xf32> to vector<32x8xf32>
    %409 = arith.truncf %342 : vector<16x32xf32> to vector<16x32xbf16>
    %410 = arith.truncf %408 : vector<32x8xf32> to vector<32x8xbf16>
    %cst_227 = arith.constant dense<0.000000e+00> : vector<16x8xf32>
    %411 = tpu.matmul %409, %410, %cst_227 {dimension_numbers = #tpu.dot_dimension_numbers<[1], [0], [0], [1], [0, 0, 1, 1], [], []>} : vector<16x32xbf16>, vector<32x8xbf16>, vector<16x8xf32> -> vector<16x8xf32>
    %c1_228 = arith.constant 1 : index
    %c0_229 = arith.constant 0 : index
    %c0_230 = arith.constant 0 : index
    %412 = vector.load %arg30[%c1_228, %c0_229, %c0_230] : memref<4x1x8xf32, #tpu.memory_space<vmem>>, vector<1x1x8xf32>
    %413 = vector.shape_cast %412 : vector<1x1x8xf32> to vector<1x8xf32>
    %414 = vector.broadcast %413 : vector<1x8xf32> to vector<16x8xf32>
    %415 = arith.addf %411, %414 : vector<16x8xf32>
    %c1_231 = arith.constant 1 : index
    %c0_232 = arith.constant 0 : index
    %c0_233 = arith.constant 0 : index
    %416 = vector.load %arg28[%c1_231, %c0_232, %c0_233] : memref<4x32x8xf32, #tpu.memory_space<vmem>>, vector<1x32x8xf32>
    %417 = vector.shape_cast %416 : vector<1x32x8xf32> to vector<32x8xf32>
    %418 = arith.truncf %342 : vector<16x32xf32> to vector<16x32xbf16>
    %419 = arith.truncf %417 : vector<32x8xf32> to vector<32x8xbf16>
    %cst_234 = arith.constant dense<0.000000e+00> : vector<16x8xf32>
    %420 = tpu.matmul %418, %419, %cst_234 {dimension_numbers = #tpu.dot_dimension_numbers<[1], [0], [0], [1], [0, 0, 1, 1], [], []>} : vector<16x32xbf16>, vector<32x8xbf16>, vector<16x8xf32> -> vector<16x8xf32>
    %c1_235 = arith.constant 1 : index
    %c0_236 = arith.constant 0 : index
    %c0_237 = arith.constant 0 : index
    %421 = vector.load %arg31[%c1_235, %c0_236, %c0_237] : memref<4x1x8xf32, #tpu.memory_space<vmem>>, vector<1x1x8xf32>
    %422 = vector.shape_cast %421 : vector<1x1x8xf32> to vector<1x8xf32>
    %423 = vector.broadcast %422 : vector<1x8xf32> to vector<16x8xf32>
    %424 = arith.addf %420, %423 : vector<16x8xf32>
    %425 = arith.truncf %406 : vector<16x8xf32> to vector<16x8xbf16>
    %426 = arith.truncf %415 : vector<16x8xf32> to vector<16x8xbf16>
    %cst_238 = arith.constant dense<0.000000e+00> : vector<16x16xf32>
    %427 = tpu.matmul %425, %426, %cst_238 {dimension_numbers = #tpu.dot_dimension_numbers<[1], [1], [0], [0], [0, 0, 1, 0], [], []>} : vector<16x8xbf16>, vector<16x8xbf16>, vector<16x16xf32> -> vector<16x16xf32>
    %cst_239 = arith.constant 0.353553385 : f32
    %428 = vector.broadcast %cst_239 : f32 to vector<16x16xf32>
    %429 = arith.mulf %427, %428 : vector<16x16xf32>
    %cst_240 = arith.constant -1.000000e+09 : f32
    %430 = vector.broadcast %cst_240 : f32 to vector<16x16xf32>
    %431 = arith.select %66, %429, %430 : vector<16x16xi1>, vector<16x16xf32>
    %cst_241 = arith.constant dense<0xFF800000> : vector<16xf32>
    %432 = vector.multi_reduction <maximumf>, %431, %cst_241 [1] : vector<16x16xf32> to vector<16xf32>
    %433 = vector.shape_cast %432 : vector<16xf32> to vector<16x1xf32>
    %434 = vector.broadcast %433 : vector<16x1xf32> to vector<16x16xf32>
    %435 = arith.subf %431, %434 : vector<16x16xf32>
    %436 = math.exp %435 : vector<16x16xf32>
    %cst_242 = arith.constant dense<0.000000e+00> : vector<16xf32>
    %437 = vector.multi_reduction <add>, %436, %cst_242 [1] : vector<16x16xf32> to vector<16xf32>
    %438 = vector.shape_cast %437 : vector<16xf32> to vector<16x1xf32>
    %439 = tpu.reciprocal %438 {approx = true} : vector<16x1xf32> -> vector<16x1xf32>
    %440 = vector.broadcast %439 : vector<16x1xf32> to vector<16x16xf32>
    %441 = arith.mulf %436, %440 : vector<16x16xf32>
    %442 = arith.truncf %441 : vector<16x16xf32> to vector<16x16xbf16>
    %443 = arith.truncf %424 : vector<16x8xf32> to vector<16x8xbf16>
    %cst_243 = arith.constant dense<0.000000e+00> : vector<16x8xf32>
    %444 = tpu.matmul %442, %443, %cst_243 {dimension_numbers = #tpu.dot_dimension_numbers<[1], [0], [0], [1], [0, 0, 1, 1], [], []>} : vector<16x16xbf16>, vector<16x8xbf16>, vector<16x8xf32> -> vector<16x8xf32>
    %c1_244 = arith.constant 1 : index
    %c0_245 = arith.constant 0 : index
    %c0_246 = arith.constant 0 : index
    %445 = vector.load %arg32[%c1_244, %c0_245, %c0_246] : memref<4x8x32xf32, #tpu.memory_space<vmem>>, vector<1x8x32xf32>
    %446 = vector.shape_cast %445 : vector<1x8x32xf32> to vector<8x32xf32>
    %447 = arith.truncf %444 : vector<16x8xf32> to vector<16x8xbf16>
    %448 = arith.truncf %446 : vector<8x32xf32> to vector<8x32xbf16>
    %cst_247 = arith.constant dense<0.000000e+00> : vector<16x32xf32>
    %449 = tpu.matmul %447, %448, %cst_247 {dimension_numbers = #tpu.dot_dimension_numbers<[1], [0], [0], [1], [0, 0, 1, 1], [], []>} : vector<16x8xbf16>, vector<8x32xbf16>, vector<16x32xf32> -> vector<16x32xf32>
    %450 = arith.addf %397, %449 : vector<16x32xf32>
    %c2_248 = arith.constant 2 : index
    %c0_249 = arith.constant 0 : index
    %c0_250 = arith.constant 0 : index
    %451 = vector.load %arg26[%c2_248, %c0_249, %c0_250] : memref<4x32x8xf32, #tpu.memory_space<vmem>>, vector<1x32x8xf32>
    %452 = vector.shape_cast %451 : vector<1x32x8xf32> to vector<32x8xf32>
    %453 = arith.truncf %342 : vector<16x32xf32> to vector<16x32xbf16>
    %454 = arith.truncf %452 : vector<32x8xf32> to vector<32x8xbf16>
    %cst_251 = arith.constant dense<0.000000e+00> : vector<16x8xf32>
    %455 = tpu.matmul %453, %454, %cst_251 {dimension_numbers = #tpu.dot_dimension_numbers<[1], [0], [0], [1], [0, 0, 1, 1], [], []>} : vector<16x32xbf16>, vector<32x8xbf16>, vector<16x8xf32> -> vector<16x8xf32>
    %c2_252 = arith.constant 2 : index
    %c0_253 = arith.constant 0 : index
    %c0_254 = arith.constant 0 : index
    %456 = vector.load %arg29[%c2_252, %c0_253, %c0_254] : memref<4x1x8xf32, #tpu.memory_space<vmem>>, vector<1x1x8xf32>
    %457 = vector.shape_cast %456 : vector<1x1x8xf32> to vector<1x8xf32>
    %458 = vector.broadcast %457 : vector<1x8xf32> to vector<16x8xf32>
    %459 = arith.addf %455, %458 : vector<16x8xf32>
    %c2_255 = arith.constant 2 : index
    %c0_256 = arith.constant 0 : index
    %c0_257 = arith.constant 0 : index
    %460 = vector.load %arg27[%c2_255, %c0_256, %c0_257] : memref<4x32x8xf32, #tpu.memory_space<vmem>>, vector<1x32x8xf32>
    %461 = vector.shape_cast %460 : vector<1x32x8xf32> to vector<32x8xf32>
    %462 = arith.truncf %342 : vector<16x32xf32> to vector<16x32xbf16>
    %463 = arith.truncf %461 : vector<32x8xf32> to vector<32x8xbf16>
    %cst_258 = arith.constant dense<0.000000e+00> : vector<16x8xf32>
    %464 = tpu.matmul %462, %463, %cst_258 {dimension_numbers = #tpu.dot_dimension_numbers<[1], [0], [0], [1], [0, 0, 1, 1], [], []>} : vector<16x32xbf16>, vector<32x8xbf16>, vector<16x8xf32> -> vector<16x8xf32>
    %c2_259 = arith.constant 2 : index
    %c0_260 = arith.constant 0 : index
    %c0_261 = arith.constant 0 : index
    %465 = vector.load %arg30[%c2_259, %c0_260, %c0_261] : memref<4x1x8xf32, #tpu.memory_space<vmem>>, vector<1x1x8xf32>
    %466 = vector.shape_cast %465 : vector<1x1x8xf32> to vector<1x8xf32>
    %467 = vector.broadcast %466 : vector<1x8xf32> to vector<16x8xf32>
    %468 = arith.addf %464, %467 : vector<16x8xf32>
    %c2_262 = arith.constant 2 : index
    %c0_263 = arith.constant 0 : index
    %c0_264 = arith.constant 0 : index
    %469 = vector.load %arg28[%c2_262, %c0_263, %c0_264] : memref<4x32x8xf32, #tpu.memory_space<vmem>>, vector<1x32x8xf32>
    %470 = vector.shape_cast %469 : vector<1x32x8xf32> to vector<32x8xf32>
    %471 = arith.truncf %342 : vector<16x32xf32> to vector<16x32xbf16>
    %472 = arith.truncf %470 : vector<32x8xf32> to vector<32x8xbf16>
    %cst_265 = arith.constant dense<0.000000e+00> : vector<16x8xf32>
    %473 = tpu.matmul %471, %472, %cst_265 {dimension_numbers = #tpu.dot_dimension_numbers<[1], [0], [0], [1], [0, 0, 1, 1], [], []>} : vector<16x32xbf16>, vector<32x8xbf16>, vector<16x8xf32> -> vector<16x8xf32>
    %c2_266 = arith.constant 2 : index
    %c0_267 = arith.constant 0 : index
    %c0_268 = arith.constant 0 : index
    %474 = vector.load %arg31[%c2_266, %c0_267, %c0_268] : memref<4x1x8xf32, #tpu.memory_space<vmem>>, vector<1x1x8xf32>
    %475 = vector.shape_cast %474 : vector<1x1x8xf32> to vector<1x8xf32>
    %476 = vector.broadcast %475 : vector<1x8xf32> to vector<16x8xf32>
    %477 = arith.addf %473, %476 : vector<16x8xf32>
    %478 = arith.truncf %459 : vector<16x8xf32> to vector<16x8xbf16>
    %479 = arith.truncf %468 : vector<16x8xf32> to vector<16x8xbf16>
    %cst_269 = arith.constant dense<0.000000e+00> : vector<16x16xf32>
    %480 = tpu.matmul %478, %479, %cst_269 {dimension_numbers = #tpu.dot_dimension_numbers<[1], [1], [0], [0], [0, 0, 1, 0], [], []>} : vector<16x8xbf16>, vector<16x8xbf16>, vector<16x16xf32> -> vector<16x16xf32>
    %cst_270 = arith.constant 0.353553385 : f32
    %481 = vector.broadcast %cst_270 : f32 to vector<16x16xf32>
    %482 = arith.mulf %480, %481 : vector<16x16xf32>
    %cst_271 = arith.constant -1.000000e+09 : f32
    %483 = vector.broadcast %cst_271 : f32 to vector<16x16xf32>
    %484 = arith.select %66, %482, %483 : vector<16x16xi1>, vector<16x16xf32>
    %cst_272 = arith.constant dense<0xFF800000> : vector<16xf32>
    %485 = vector.multi_reduction <maximumf>, %484, %cst_272 [1] : vector<16x16xf32> to vector<16xf32>
    %486 = vector.shape_cast %485 : vector<16xf32> to vector<16x1xf32>
    %487 = vector.broadcast %486 : vector<16x1xf32> to vector<16x16xf32>
    %488 = arith.subf %484, %487 : vector<16x16xf32>
    %489 = math.exp %488 : vector<16x16xf32>
    %cst_273 = arith.constant dense<0.000000e+00> : vector<16xf32>
    %490 = vector.multi_reduction <add>, %489, %cst_273 [1] : vector<16x16xf32> to vector<16xf32>
    %491 = vector.shape_cast %490 : vector<16xf32> to vector<16x1xf32>
    %492 = tpu.reciprocal %491 {approx = true} : vector<16x1xf32> -> vector<16x1xf32>
    %493 = vector.broadcast %492 : vector<16x1xf32> to vector<16x16xf32>
    %494 = arith.mulf %489, %493 : vector<16x16xf32>
    %495 = arith.truncf %494 : vector<16x16xf32> to vector<16x16xbf16>
    %496 = arith.truncf %477 : vector<16x8xf32> to vector<16x8xbf16>
    %cst_274 = arith.constant dense<0.000000e+00> : vector<16x8xf32>
    %497 = tpu.matmul %495, %496, %cst_274 {dimension_numbers = #tpu.dot_dimension_numbers<[1], [0], [0], [1], [0, 0, 1, 1], [], []>} : vector<16x16xbf16>, vector<16x8xbf16>, vector<16x8xf32> -> vector<16x8xf32>
    %c2_275 = arith.constant 2 : index
    %c0_276 = arith.constant 0 : index
    %c0_277 = arith.constant 0 : index
    %498 = vector.load %arg32[%c2_275, %c0_276, %c0_277] : memref<4x8x32xf32, #tpu.memory_space<vmem>>, vector<1x8x32xf32>
    %499 = vector.shape_cast %498 : vector<1x8x32xf32> to vector<8x32xf32>
    %500 = arith.truncf %497 : vector<16x8xf32> to vector<16x8xbf16>
    %501 = arith.truncf %499 : vector<8x32xf32> to vector<8x32xbf16>
    %cst_278 = arith.constant dense<0.000000e+00> : vector<16x32xf32>
    %502 = tpu.matmul %500, %501, %cst_278 {dimension_numbers = #tpu.dot_dimension_numbers<[1], [0], [0], [1], [0, 0, 1, 1], [], []>} : vector<16x8xbf16>, vector<8x32xbf16>, vector<16x32xf32> -> vector<16x32xf32>
    %503 = arith.addf %450, %502 : vector<16x32xf32>
    %c3_279 = arith.constant 3 : index
    %c0_280 = arith.constant 0 : index
    %c0_281 = arith.constant 0 : index
    %504 = vector.load %arg26[%c3_279, %c0_280, %c0_281] : memref<4x32x8xf32, #tpu.memory_space<vmem>>, vector<1x32x8xf32>
    %505 = vector.shape_cast %504 : vector<1x32x8xf32> to vector<32x8xf32>
    %506 = arith.truncf %342 : vector<16x32xf32> to vector<16x32xbf16>
    %507 = arith.truncf %505 : vector<32x8xf32> to vector<32x8xbf16>
    %cst_282 = arith.constant dense<0.000000e+00> : vector<16x8xf32>
    %508 = tpu.matmul %506, %507, %cst_282 {dimension_numbers = #tpu.dot_dimension_numbers<[1], [0], [0], [1], [0, 0, 1, 1], [], []>} : vector<16x32xbf16>, vector<32x8xbf16>, vector<16x8xf32> -> vector<16x8xf32>
    %c3_283 = arith.constant 3 : index
    %c0_284 = arith.constant 0 : index
    %c0_285 = arith.constant 0 : index
    %509 = vector.load %arg29[%c3_283, %c0_284, %c0_285] : memref<4x1x8xf32, #tpu.memory_space<vmem>>, vector<1x1x8xf32>
    %510 = vector.shape_cast %509 : vector<1x1x8xf32> to vector<1x8xf32>
    %511 = vector.broadcast %510 : vector<1x8xf32> to vector<16x8xf32>
    %512 = arith.addf %508, %511 : vector<16x8xf32>
    %c3_286 = arith.constant 3 : index
    %c0_287 = arith.constant 0 : index
    %c0_288 = arith.constant 0 : index
    %513 = vector.load %arg27[%c3_286, %c0_287, %c0_288] : memref<4x32x8xf32, #tpu.memory_space<vmem>>, vector<1x32x8xf32>
    %514 = vector.shape_cast %513 : vector<1x32x8xf32> to vector<32x8xf32>
    %515 = arith.truncf %342 : vector<16x32xf32> to vector<16x32xbf16>
    %516 = arith.truncf %514 : vector<32x8xf32> to vector<32x8xbf16>
    %cst_289 = arith.constant dense<0.000000e+00> : vector<16x8xf32>
    %517 = tpu.matmul %515, %516, %cst_289 {dimension_numbers = #tpu.dot_dimension_numbers<[1], [0], [0], [1], [0, 0, 1, 1], [], []>} : vector<16x32xbf16>, vector<32x8xbf16>, vector<16x8xf32> -> vector<16x8xf32>
    %c3_290 = arith.constant 3 : index
    %c0_291 = arith.constant 0 : index
    %c0_292 = arith.constant 0 : index
    %518 = vector.load %arg30[%c3_290, %c0_291, %c0_292] : memref<4x1x8xf32, #tpu.memory_space<vmem>>, vector<1x1x8xf32>
    %519 = vector.shape_cast %518 : vector<1x1x8xf32> to vector<1x8xf32>
    %520 = vector.broadcast %519 : vector<1x8xf32> to vector<16x8xf32>
    %521 = arith.addf %517, %520 : vector<16x8xf32>
    %c3_293 = arith.constant 3 : index
    %c0_294 = arith.constant 0 : index
    %c0_295 = arith.constant 0 : index
    %522 = vector.load %arg28[%c3_293, %c0_294, %c0_295] : memref<4x32x8xf32, #tpu.memory_space<vmem>>, vector<1x32x8xf32>
    %523 = vector.shape_cast %522 : vector<1x32x8xf32> to vector<32x8xf32>
    %524 = arith.truncf %342 : vector<16x32xf32> to vector<16x32xbf16>
    %525 = arith.truncf %523 : vector<32x8xf32> to vector<32x8xbf16>
    %cst_296 = arith.constant dense<0.000000e+00> : vector<16x8xf32>
    %526 = tpu.matmul %524, %525, %cst_296 {dimension_numbers = #tpu.dot_dimension_numbers<[1], [0], [0], [1], [0, 0, 1, 1], [], []>} : vector<16x32xbf16>, vector<32x8xbf16>, vector<16x8xf32> -> vector<16x8xf32>
    %c3_297 = arith.constant 3 : index
    %c0_298 = arith.constant 0 : index
    %c0_299 = arith.constant 0 : index
    %527 = vector.load %arg31[%c3_297, %c0_298, %c0_299] : memref<4x1x8xf32, #tpu.memory_space<vmem>>, vector<1x1x8xf32>
    %528 = vector.shape_cast %527 : vector<1x1x8xf32> to vector<1x8xf32>
    %529 = vector.broadcast %528 : vector<1x8xf32> to vector<16x8xf32>
    %530 = arith.addf %526, %529 : vector<16x8xf32>
    %531 = arith.truncf %512 : vector<16x8xf32> to vector<16x8xbf16>
    %532 = arith.truncf %521 : vector<16x8xf32> to vector<16x8xbf16>
    %cst_300 = arith.constant dense<0.000000e+00> : vector<16x16xf32>
    %533 = tpu.matmul %531, %532, %cst_300 {dimension_numbers = #tpu.dot_dimension_numbers<[1], [1], [0], [0], [0, 0, 1, 0], [], []>} : vector<16x8xbf16>, vector<16x8xbf16>, vector<16x16xf32> -> vector<16x16xf32>
    %cst_301 = arith.constant 0.353553385 : f32
    %534 = vector.broadcast %cst_301 : f32 to vector<16x16xf32>
    %535 = arith.mulf %533, %534 : vector<16x16xf32>
    %cst_302 = arith.constant -1.000000e+09 : f32
    %536 = vector.broadcast %cst_302 : f32 to vector<16x16xf32>
    %537 = arith.select %66, %535, %536 : vector<16x16xi1>, vector<16x16xf32>
    %cst_303 = arith.constant dense<0xFF800000> : vector<16xf32>
    %538 = vector.multi_reduction <maximumf>, %537, %cst_303 [1] : vector<16x16xf32> to vector<16xf32>
    %539 = vector.shape_cast %538 : vector<16xf32> to vector<16x1xf32>
    %540 = vector.broadcast %539 : vector<16x1xf32> to vector<16x16xf32>
    %541 = arith.subf %537, %540 : vector<16x16xf32>
    %542 = math.exp %541 : vector<16x16xf32>
    %cst_304 = arith.constant dense<0.000000e+00> : vector<16xf32>
    %543 = vector.multi_reduction <add>, %542, %cst_304 [1] : vector<16x16xf32> to vector<16xf32>
    %544 = vector.shape_cast %543 : vector<16xf32> to vector<16x1xf32>
    %545 = tpu.reciprocal %544 {approx = true} : vector<16x1xf32> -> vector<16x1xf32>
    %546 = vector.broadcast %545 : vector<16x1xf32> to vector<16x16xf32>
    %547 = arith.mulf %542, %546 : vector<16x16xf32>
    %548 = arith.truncf %547 : vector<16x16xf32> to vector<16x16xbf16>
    %549 = arith.truncf %530 : vector<16x8xf32> to vector<16x8xbf16>
    %cst_305 = arith.constant dense<0.000000e+00> : vector<16x8xf32>
    %550 = tpu.matmul %548, %549, %cst_305 {dimension_numbers = #tpu.dot_dimension_numbers<[1], [0], [0], [1], [0, 0, 1, 1], [], []>} : vector<16x16xbf16>, vector<16x8xbf16>, vector<16x8xf32> -> vector<16x8xf32>
    %c3_306 = arith.constant 3 : index
    %c0_307 = arith.constant 0 : index
    %c0_308 = arith.constant 0 : index
    %551 = vector.load %arg32[%c3_306, %c0_307, %c0_308] : memref<4x8x32xf32, #tpu.memory_space<vmem>>, vector<1x8x32xf32>
    %552 = vector.shape_cast %551 : vector<1x8x32xf32> to vector<8x32xf32>
    %553 = arith.truncf %550 : vector<16x8xf32> to vector<16x8xbf16>
    %554 = arith.truncf %552 : vector<8x32xf32> to vector<8x32xbf16>
    %cst_309 = arith.constant dense<0.000000e+00> : vector<16x32xf32>
    %555 = tpu.matmul %553, %554, %cst_309 {dimension_numbers = #tpu.dot_dimension_numbers<[1], [0], [0], [1], [0, 0, 1, 1], [], []>} : vector<16x8xbf16>, vector<8x32xbf16>, vector<16x32xf32> -> vector<16x32xf32>
    %556 = arith.addf %503, %555 : vector<16x32xf32>
    %557 = arith.addf %342, %556 : vector<16x32xf32>
    %c0_310 = arith.constant 0 : index
    %c0_311 = arith.constant 0 : index
    %558 = vector.load %arg34[%c0_310, %c0_311] : memref<1x32xf32, #tpu.memory_space<vmem>>, vector<1x32xf32>
    %c0_312 = arith.constant 0 : index
    %c0_313 = arith.constant 0 : index
    %559 = vector.load %arg35[%c0_312, %c0_313] : memref<1x32xf32, #tpu.memory_space<vmem>>, vector<1x32xf32>
    %cst_314 = arith.constant dense<0.000000e+00> : vector<16xf32>
    %560 = vector.multi_reduction <add>, %557, %cst_314 [1] : vector<16x32xf32> to vector<16xf32>
    %561 = vector.shape_cast %560 : vector<16xf32> to vector<16x1xf32>
    %cst_315 = arith.constant 3.200000e+01 : f32
    %562 = vector.broadcast %cst_315 : f32 to vector<16x1xf32>
    %563 = arith.divf %561, %562 : vector<16x1xf32>
    %564 = vector.broadcast %563 : vector<16x1xf32> to vector<16x32xf32>
    %565 = arith.subf %557, %564 : vector<16x32xf32>
    %566 = arith.mulf %565, %565 : vector<16x32xf32>
    %cst_316 = arith.constant dense<0.000000e+00> : vector<16xf32>
    %567 = vector.multi_reduction <add>, %566, %cst_316 [1] : vector<16x32xf32> to vector<16xf32>
    %568 = vector.shape_cast %567 : vector<16xf32> to vector<16x1xf32>
    %cst_317 = arith.constant 3.200000e+01 : f32
    %569 = vector.broadcast %cst_317 : f32 to vector<16x1xf32>
    %570 = arith.divf %568, %569 : vector<16x1xf32>
    %cst_318 = arith.constant 9.99999974E-6 : f32
    %571 = vector.broadcast %cst_318 : f32 to vector<16x1xf32>
    %572 = arith.addf %570, %571 : vector<16x1xf32>
    %573 = math.rsqrt %572 : vector<16x1xf32>
    %574 = vector.broadcast %573 : vector<16x1xf32> to vector<16x32xf32>
    %575 = arith.mulf %565, %574 : vector<16x32xf32>
    %576 = vector.broadcast %558 : vector<1x32xf32> to vector<16x32xf32>
    %577 = arith.mulf %575, %576 : vector<16x32xf32>
    %578 = vector.broadcast %559 : vector<1x32xf32> to vector<16x32xf32>
    %579 = arith.addf %577, %578 : vector<16x32xf32>
    %c0_319 = arith.constant 0 : index
    %c0_320 = arith.constant 0 : index
    %580 = vector.load %arg36[%c0_319, %c0_320] : memref<32x64xf32, #tpu.memory_space<vmem>>, vector<32x64xf32>
    %581 = arith.truncf %579 : vector<16x32xf32> to vector<16x32xbf16>
    %582 = arith.truncf %580 : vector<32x64xf32> to vector<32x64xbf16>
    %cst_321 = arith.constant dense<0.000000e+00> : vector<16x64xf32>
    %583 = tpu.matmul %581, %582, %cst_321 {dimension_numbers = #tpu.dot_dimension_numbers<[1], [0], [0], [1], [0, 0, 1, 1], [], []>} : vector<16x32xbf16>, vector<32x64xbf16>, vector<16x64xf32> -> vector<16x64xf32>
    %c0_322 = arith.constant 0 : index
    %c0_323 = arith.constant 0 : index
    %584 = vector.load %arg37[%c0_322, %c0_323] : memref<1x64xf32, #tpu.memory_space<vmem>>, vector<1x64xf32>
    %585 = vector.broadcast %584 : vector<1x64xf32> to vector<16x64xf32>
    %586 = arith.addf %583, %585 : vector<16x64xf32>
    %cst_324 = arith.constant 0.000000e+00 : f32
    %587 = vector.broadcast %cst_324 : f32 to vector<16x64xf32>
    %588 = arith.maximumf %586, %587 : vector<16x64xf32>
    %c0_325 = arith.constant 0 : index
    %c0_326 = arith.constant 0 : index
    %589 = vector.load %arg38[%c0_325, %c0_326] : memref<64x32xf32, #tpu.memory_space<vmem>>, vector<64x32xf32>
    %590 = arith.truncf %588 : vector<16x64xf32> to vector<16x64xbf16>
    %591 = arith.truncf %589 : vector<64x32xf32> to vector<64x32xbf16>
    %cst_327 = arith.constant dense<0.000000e+00> : vector<16x32xf32>
    %592 = tpu.matmul %590, %591, %cst_327 {dimension_numbers = #tpu.dot_dimension_numbers<[1], [0], [0], [1], [0, 0, 1, 1], [], []>} : vector<16x64xbf16>, vector<64x32xbf16>, vector<16x32xf32> -> vector<16x32xf32>
    %c0_328 = arith.constant 0 : index
    %c0_329 = arith.constant 0 : index
    %593 = vector.load %arg39[%c0_328, %c0_329] : memref<1x32xf32, #tpu.memory_space<vmem>>, vector<1x32xf32>
    %594 = vector.broadcast %593 : vector<1x32xf32> to vector<16x32xf32>
    %595 = arith.addf %592, %594 : vector<16x32xf32>
    %596 = arith.addf %579, %595 : vector<16x32xf32>
    %c0_330 = arith.constant 0 : index
    %c0_331 = arith.constant 0 : index
    %597 = vector.load %arg40[%c0_330, %c0_331] : memref<1x32xf32, #tpu.memory_space<vmem>>, vector<1x32xf32>
    %c0_332 = arith.constant 0 : index
    %c0_333 = arith.constant 0 : index
    %598 = vector.load %arg41[%c0_332, %c0_333] : memref<1x32xf32, #tpu.memory_space<vmem>>, vector<1x32xf32>
    %cst_334 = arith.constant dense<0.000000e+00> : vector<16xf32>
    %599 = vector.multi_reduction <add>, %596, %cst_334 [1] : vector<16x32xf32> to vector<16xf32>
    %600 = vector.shape_cast %599 : vector<16xf32> to vector<16x1xf32>
    %cst_335 = arith.constant 3.200000e+01 : f32
    %601 = vector.broadcast %cst_335 : f32 to vector<16x1xf32>
    %602 = arith.divf %600, %601 : vector<16x1xf32>
    %603 = vector.broadcast %602 : vector<16x1xf32> to vector<16x32xf32>
    %604 = arith.subf %596, %603 : vector<16x32xf32>
    %605 = arith.mulf %604, %604 : vector<16x32xf32>
    %cst_336 = arith.constant dense<0.000000e+00> : vector<16xf32>
    %606 = vector.multi_reduction <add>, %605, %cst_336 [1] : vector<16x32xf32> to vector<16xf32>
    %607 = vector.shape_cast %606 : vector<16xf32> to vector<16x1xf32>
    %cst_337 = arith.constant 3.200000e+01 : f32
    %608 = vector.broadcast %cst_337 : f32 to vector<16x1xf32>
    %609 = arith.divf %607, %608 : vector<16x1xf32>
    %cst_338 = arith.constant 9.99999974E-6 : f32
    %610 = vector.broadcast %cst_338 : f32 to vector<16x1xf32>
    %611 = arith.addf %609, %610 : vector<16x1xf32>
    %612 = math.rsqrt %611 : vector<16x1xf32>
    %613 = vector.broadcast %612 : vector<16x1xf32> to vector<16x32xf32>
    %614 = arith.mulf %604, %613 : vector<16x32xf32>
    %615 = vector.broadcast %597 : vector<1x32xf32> to vector<16x32xf32>
    %616 = arith.mulf %614, %615 : vector<16x32xf32>
    %617 = vector.broadcast %598 : vector<1x32xf32> to vector<16x32xf32>
    %618 = arith.addf %616, %617 : vector<16x32xf32>
    %c0_339 = arith.constant 0 : index
    %c0_340 = arith.constant 0 : index
    %619 = vector.load %arg42[%c0_339, %c0_340] : memref<32x128xf32, #tpu.memory_space<vmem>>, vector<32x128xf32>
    %620 = arith.truncf %618 : vector<16x32xf32> to vector<16x32xbf16>
    %621 = arith.truncf %619 : vector<32x128xf32> to vector<32x128xbf16>
    %cst_341 = arith.constant dense<0.000000e+00> : vector<16x128xf32>
    %622 = tpu.matmul %620, %621, %cst_341 {dimension_numbers = #tpu.dot_dimension_numbers<[1], [0], [0], [1], [0, 0, 1, 1], [], []>} : vector<16x32xbf16>, vector<32x128xbf16>, vector<16x128xf32> -> vector<16x128xf32>
    %c0_342 = arith.constant 0 : index
    %c0_343 = arith.constant 0 : index
    %623 = vector.load %arg43[%c0_342, %c0_343] : memref<32x128xf32, #tpu.memory_space<vmem>>, vector<32x128xf32>
    %624 = arith.truncf %23 : vector<16x32xf32> to vector<16x32xbf16>
    %625 = arith.truncf %623 : vector<32x128xf32> to vector<32x128xbf16>
    %cst_344 = arith.constant dense<0.000000e+00> : vector<16x128xf32>
    %626 = tpu.matmul %624, %625, %cst_344 {dimension_numbers = #tpu.dot_dimension_numbers<[1], [0], [0], [1], [0, 0, 1, 1], [], []>} : vector<16x32xbf16>, vector<32x128xbf16>, vector<16x128xf32> -> vector<16x128xf32>
    %627 = arith.addf %622, %626 : vector<16x128xf32>
    %c0_345 = arith.constant 0 : index
    %c0_346 = arith.constant 0 : index
    %628 = vector.load %arg44[%c0_345, %c0_346] : memref<1x128xf32, #tpu.memory_space<vmem>>, vector<1x128xf32>
    %629 = vector.broadcast %628 : vector<1x128xf32> to vector<16x128xf32>
    %630 = arith.addf %627, %629 : vector<16x128xf32>
    %cst_347 = arith.constant 0.000000e+00 : f32
    %631 = vector.broadcast %cst_347 : f32 to vector<16x128xf32>
    %632 = arith.maximumf %630, %631 : vector<16x128xf32>
    %c0_348 = arith.constant 0 : index
    %c0_349 = arith.constant 0 : index
    %633 = vector.load %arg45[%c0_348, %c0_349] : memref<128x128xf32, #tpu.memory_space<vmem>>, vector<128x128xf32>
    %634 = arith.truncf %632 : vector<16x128xf32> to vector<16x128xbf16>
    %635 = arith.truncf %633 : vector<128x128xf32> to vector<128x128xbf16>
    %cst_350 = arith.constant dense<0.000000e+00> : vector<16x128xf32>
    %636 = tpu.matmul %634, %635, %cst_350 {dimension_numbers = #tpu.dot_dimension_numbers<[1], [0], [0], [1], [0, 0, 1, 1], [], []>} : vector<16x128xbf16>, vector<128x128xbf16>, vector<16x128xf32> -> vector<16x128xf32>
    %c0_351 = arith.constant 0 : index
    %c0_352 = arith.constant 0 : index
    %637 = vector.load %arg46[%c0_351, %c0_352] : memref<1x128xf32, #tpu.memory_space<vmem>>, vector<1x128xf32>
    %638 = vector.broadcast %637 : vector<1x128xf32> to vector<16x128xf32>
    %639 = arith.addf %636, %638 : vector<16x128xf32>
    %cst_353 = arith.constant 0.000000e+00 : f32
    %640 = vector.broadcast %cst_353 : f32 to vector<16x128xf32>
    %641 = arith.maximumf %639, %640 : vector<16x128xf32>
    %c0_354 = arith.constant 0 : index
    %c0_355 = arith.constant 0 : index
    %642 = vector.load %arg47[%c0_354, %c0_355] : memref<128x128xf32, #tpu.memory_space<vmem>>, vector<128x128xf32>
    %643 = arith.truncf %641 : vector<16x128xf32> to vector<16x128xbf16>
    %644 = arith.truncf %642 : vector<128x128xf32> to vector<128x128xbf16>
    %cst_356 = arith.constant dense<0.000000e+00> : vector<16x128xf32>
    %645 = tpu.matmul %643, %644, %cst_356 {dimension_numbers = #tpu.dot_dimension_numbers<[1], [0], [0], [1], [0, 0, 1, 1], [], []>} : vector<16x128xbf16>, vector<128x128xbf16>, vector<16x128xf32> -> vector<16x128xf32>
    %c0_357 = arith.constant 0 : index
    %c0_358 = arith.constant 0 : index
    %646 = vector.load %arg48[%c0_357, %c0_358] : memref<1x128xf32, #tpu.memory_space<vmem>>, vector<1x128xf32>
    %647 = vector.broadcast %646 : vector<1x128xf32> to vector<16x128xf32>
    %648 = arith.addf %645, %647 : vector<16x128xf32>
    %c0_359 = arith.constant 0 : index
    %c0_360 = arith.constant 0 : index
    %649 = vector.load %arg49[%c0_359, %c0_360] : memref<16x128xf32, #tpu.memory_space<vmem>>, vector<16x128xf32>
    tpu.vector_store %arg49[%c0_359, %c0_360], %648 {strides = array<i32>} : memref<16x128xf32, #tpu.memory_space<vmem>>, vector<16x128xf32>,
    return
  }
}

</mosaic_0001>

<llo_original>
// kernel: self_attention_encoder.1
$region0: #{self_attention_encoder.1}
  #allocation0 [shape = 'u32[]', space=smem, size = 0x4, offset = 0x4, fixed_abs, tag = 'smem constant byte address 0x4 - core index']
  #allocation1 [shape = 'u32[144,128]{1,0:T(1,128)}', space=vmem, size = 0x12000, scoped, tag = 'internal scratch']
  %s0 = inlined_call_operand.smem [shape: u32[50], index: -1, kind: input, shape index: {}]
  %s1 = sld [smem:[%s0]]
  %s2 = scalar_lea.smem %s0, 1
  %s3 = sld [smem:[%s2]]
  %s4 = scalar_lea.smem %s0, 2
  %s5 = sld [smem:[%s4]]
  %s6 = scalar_lea.smem %s0, 3
  %s7 = sld [smem:[%s6]]
  %s8 = scalar_lea.smem %s0, 4
  %s9 = sld [smem:[%s8]]
  %s10 = scalar_lea.smem %s0, 5
  %s11 = sld [smem:[%s10]]
  %s12 = scalar_lea.smem %s0, 6
  %s13 = sld [smem:[%s12]]
  %s14 = scalar_lea.smem %s0, 7
  %s15 = sld [smem:[%s14]]
  %s16 = scalar_lea.smem %s0, 8
  %s17 = sld [smem:[%s16]]
  %s18 = scalar_lea.smem %s0, 9
  %s19 = sld [smem:[%s18]]
  %s20 = scalar_lea.smem %s0, 10
  %s21 = sld [smem:[%s20]]
  %s22 = scalar_lea.smem %s0, 11
  %s23 = sld [smem:[%s22]]
  %s24 = scalar_lea.smem %s0, 12
  %s25 = sld [smem:[%s24]]
  %s26 = scalar_lea.smem %s0, 13
  %s27 = sld [smem:[%s26]]
  %s28 = scalar_lea.smem %s0, 14
  %s29 = sld [smem:[%s28]]
  %s30 = scalar_lea.smem %s0, 15
  %s31 = sld [smem:[%s30]]
  %s32 = scalar_lea.smem %s0, 16
  %s33 = sld [smem:[%s32]]
  %s34 = scalar_lea.smem %s0, 17
  %s35 = sld [smem:[%s34]]
  %s36 = scalar_lea.smem %s0, 18
  %s37 = sld [smem:[%s36]]
  %s38 = scalar_lea.smem %s0, 19
  %s39 = sld [smem:[%s38]]
  %s40 = scalar_lea.smem %s0, 20
  %s41 = sld [smem:[%s40]]
  %s42 = scalar_lea.smem %s0, 21
  %s43 = sld [smem:[%s42]]
  %s44 = scalar_lea.smem %s0, 22
  %s45 = sld [smem:[%s44]]
  %s46 = scalar_lea.smem %s0, 23
  %s47 = sld [smem:[%s46]]
  %s48 = scalar_lea.smem %s0, 24
  %s49 = sld [smem:[%s48]]
  %s50 = scalar_lea.smem %s0, 25
  %s51 = sld [smem:[%s50]]
  %s52 = scalar_lea.smem %s0, 26
  %s53 = sld [smem:[%s52]]
  %s54 = scalar_lea.smem %s0, 27
  %s55 = sld [smem:[%s54]]
  %s56 = scalar_lea.smem %s0, 28
  %s57 = sld [smem:[%s56]]
  %s58 = scalar_lea.smem %s0, 29
  %s59 = sld [smem:[%s58]]
  %s60 = scalar_lea.smem %s0, 30
  %s61 = sld [smem:[%s60]]
  %s62 = scalar_lea.smem %s0, 31
  %s63 = sld [smem:[%s62]]
  %s64 = scalar_lea.smem %s0, 32
  %s65 = sld [smem:[%s64]]
  %s66 = scalar_lea.smem %s0, 33
  %s67 = sld [smem:[%s66]]
  %s68 = scalar_lea.smem %s0, 34
  %s69 = sld [smem:[%s68]]
  %s70 = scalar_lea.smem %s0, 35
  %s71 = sld [smem:[%s70]]
  %s72 = scalar_lea.smem %s0, 36
  %s73 = sld [smem:[%s72]]
  %s74 = scalar_lea.smem %s0, 37
  %s75 = sld [smem:[%s74]]
  %s76 = scalar_lea.smem %s0, 38
  %s77 = sld [smem:[%s76]]
  %s78 = scalar_lea.smem %s0, 39
  %s79 = sld [smem:[%s78]]
  %s80 = scalar_lea.smem %s0, 40
  %s81 = sld [smem:[%s80]]
  %s82 = scalar_lea.smem %s0, 41
  %s83 = sld [smem:[%s82]]
  %s84 = scalar_lea.smem %s0, 42
  %s85 = sld [smem:[%s84]]
  %s86 = scalar_lea.smem %s0, 43
  %s87 = sld [smem:[%s86]]
  %s88 = scalar_lea.smem %s0, 44
  %s89 = sld [smem:[%s88]]
  %s90 = scalar_lea.smem %s0, 45
  %s91 = sld [smem:[%s90]]
  %s92 = scalar_lea.smem %s0, 46
  %s93 = sld [smem:[%s92]]
  %s94 = scalar_lea.smem %s0, 47
  %s95 = sld [smem:[%s94]]
  %s96 = scalar_lea.smem %s0, 48
  %s97 = sld [smem:[%s96]]
  %s98 = scalar_lea.smem %s0, 49
  %s99 = sld [smem:[%s98]]
  %s100 = sld [smem:[#allocation0]]
  $region218: #{self_attention_encoder.1} parent=0
    _
  %s102 = ssub.s32 1, %s100
  %s103 = scalar_select 0, %s102, %s100
  $region1: #{self_attention_encoder.1} parent=0
    #allocation2 [shape = 'u8[512]{0}', space=vmem, size = 0x400, scoped, tag = 'input window, operand 44, single buffered']
    #allocation3 [shape = 's32[1]{0}', space=sflag, size = 0x4, scoped, tag = 'scoped memory for self_attention_encoder.1']
    #allocation4 [shape = 'u8[512]{0}', space=vmem, size = 0x400, scoped, tag = 'input window, operand 46, single buffered']
    #allocation5 [shape = 's32[1]{0}', space=sflag, size = 0x4, scoped, tag = 'scoped memory for self_attention_encoder.1']
    #allocation6 [shape = 'u8[512]{0}', space=vmem, size = 0x400, scoped, tag = 'input window, operand 48, single buffered']
    %104 = vsyncpa [#allocation3], 0
    %105 = vsyncpa [#allocation5], 0
    // Predicated region
    $region2: #{self_attention_encoder.1} parent=1 // pred_check
      _
    $region3: #{self_attention_encoder.1} parent=1 // pred_check_branch
      %107 = sbr.rel (0) target = $region5
    $region4: #{self_attention_encoder.1} parent=1 // pred_region
      _
    $region5: #{self_attention_encoder.1} parent=1 // pred_fallthru
      _
    // Predicated region
    $region6: #{self_attention_encoder.1} parent=1 // pred_check
      _
    $region7: #{self_attention_encoder.1} parent=1 // pred_check_branch
      %109 = sbr.rel (0) target = $region9
    $region8: #{self_attention_encoder.1} parent=1 // pred_region
      _
    $region9: #{self_attention_encoder.1} parent=1 // pred_fallthru
      _
    // Predicated region
    $region10: #{self_attention_encoder.1} parent=1 // pred_check
      _
    $region11: #{self_attention_encoder.1} parent=1 // pred_check_branch
      %111 = sbr.rel (0) target = $region13
    $region12: #{self_attention_encoder.1} parent=1 // pred_region
      _
    $region13: #{self_attention_encoder.1} parent=1 // pred_fallthru
      _
    // Predicated region
    $region14: #{self_attention_encoder.1} parent=1 // pred_check
      _
    $region15: #{self_attention_encoder.1} parent=1 // pred_check_branch
      %113 = sbr.rel (0) target = $region17
    $region16: #{self_attention_encoder.1} parent=1 // pred_region
      _
    $region17: #{self_attention_encoder.1} parent=1 // pred_fallthru
      _
    // Predicated region
    $region18: #{self_attention_encoder.1} parent=1 // pred_check
      _
    $region19: #{self_attention_encoder.1} parent=1 // pred_check_branch
      %115 = sbr.rel (0) target = $region21
    $region20: #{self_attention_encoder.1} parent=1 // pred_region
      _
    $region21: #{self_attention_encoder.1} parent=1 // pred_fallthru
      _
    // Predicated region
    $region22: #{self_attention_encoder.1} parent=1 // pred_check
      _
    $region23: #{self_attention_encoder.1} parent=1 // pred_check_branch
      %117 = sbr.rel (0) target = $region25
    $region24: #{self_attention_encoder.1} parent=1 // pred_region
      _
    $region25: #{self_attention_encoder.1} parent=1 // pred_fallthru
      _
    // Predicated region
    $region26: #{self_attention_encoder.1} parent=1 // pred_check
      _
    $region27: #{self_attention_encoder.1} parent=1 // pred_check_branch
      %119 = sbr.rel (0) target = $region29
    $region28: #{self_attention_encoder.1} parent=1 // pred_region
      _
    $region29: #{self_attention_encoder.1} parent=1 // pred_fallthru
      _
    // Predicated region
    $region30: #{self_attention_encoder.1} parent=1 // pred_check
      _
    $region31: #{self_attention_encoder.1} parent=1 // pred_check_branch
      %121 = sbr.rel (0) target = $region33
    $region32: #{self_attention_encoder.1} parent=1 // pred_region
      _
    $region33: #{self_attention_encoder.1} parent=1 // pred_fallthru
      _
    // Predicated region
    $region34: #{self_attention_encoder.1} parent=1 // pred_check
      _
    $region35: #{self_attention_encoder.1} parent=1 // pred_check_branch
      %123 = sbr.rel (0) target = $region37
    $region36: #{self_attention_encoder.1} parent=1 // pred_region
      _
    $region37: #{self_attention_encoder.1} parent=1 // pred_fallthru
      _
    // Predicated region
    $region38: #{self_attention_encoder.1} parent=1 // pred_check
      _
    $region39: #{self_attention_encoder.1} parent=1 // pred_check_branch
      %125 = sbr.rel (0) target = $region41
    $region40: #{self_attention_encoder.1} parent=1 // pred_region
      _
    $region41: #{self_attention_encoder.1} parent=1 // pred_fallthru
      _
    // Predicated region
    $region42: #{self_attention_encoder.1} parent=1 // pred_check
      _
    $region43: #{self_attention_encoder.1} parent=1 // pred_check_branch
      %127 = sbr.rel (0) target = $region45
    $region44: #{self_attention_encoder.1} parent=1 // pred_region
      _
    $region45: #{self_attention_encoder.1} parent=1 // pred_fallthru
      _
    // Predicated region
    $region46: #{self_attention_encoder.1} parent=1 // pred_check
      _
    $region47: #{self_attention_encoder.1} parent=1 // pred_check_branch
      %129 = sbr.rel (0) target = $region49
    $region48: #{self_attention_encoder.1} parent=1 // pred_region
      _
    $region49: #{self_attention_encoder.1} parent=1 // pred_fallthru
      _
    // Predicated region
    $region50: #{self_attention_encoder.1} parent=1 // pred_check
      _
    $region51: #{self_attention_encoder.1} parent=1 // pred_check_branch
      %131 = sbr.rel (0) target = $region53
    $region52: #{self_attention_encoder.1} parent=1 // pred_region
      _
    $region53: #{self_attention_encoder.1} parent=1 // pred_fallthru
      _
    // Predicated region
    $region54: #{self_attention_encoder.1} parent=1 // pred_check
      _
    $region55: #{self_attention_encoder.1} parent=1 // pred_check_branch
      %133 = sbr.rel (0) target = $region57
    $region56: #{self_attention_encoder.1} parent=1 // pred_region
      _
    $region57: #{self_attention_encoder.1} parent=1 // pred_fallthru
      _
    // Predicated region
    $region58: #{self_attention_encoder.1} parent=1 // pred_check
      _
    $region59: #{self_attention_encoder.1} parent=1 // pred_check_branch
      %135 = sbr.rel (0) target = $region61
    $region60: #{self_attention_encoder.1} parent=1 // pred_region
      _
    $region61: #{self_attention_encoder.1} parent=1 // pred_fallthru
      _
    // Predicated region
    $region62: #{self_attention_encoder.1} parent=1 // pred_check
      _
    $region63: #{self_attention_encoder.1} parent=1 // pred_check_branch
      %137 = sbr.rel (0) target = $region65
    $region64: #{self_attention_encoder.1} parent=1 // pred_region
      _
    $region65: #{self_attention_encoder.1} parent=1 // pred_fallthru
      _
    // Predicated region
    $region66: #{self_attention_encoder.1} parent=1 // pred_check
      _
    $region67: #{self_attention_encoder.1} parent=1 // pred_check_branch
      %139 = sbr.rel (0) target = $region69
    $region68: #{self_attention_encoder.1} parent=1 // pred_region
      _
    $region69: #{self_attention_encoder.1} parent=1 // pred_fallthru
      _
    // Predicated region
    $region70: #{self_attention_encoder.1} parent=1 // pred_check
      _
    $region71: #{self_attention_encoder.1} parent=1 // pred_check_branch
      %141 = sbr.rel (0) target = $region73
    $region72: #{self_attention_encoder.1} parent=1 // pred_region
      _
    $region73: #{self_attention_encoder.1} parent=1 // pred_fallthru
      _
    // Predicated region
    $region74: #{self_attention_encoder.1} parent=1 // pred_check
      _
    $region75: #{self_attention_encoder.1} parent=1 // pred_check_branch
      %143 = sbr.rel (0) target = $region77
    $region76: #{self_attention_encoder.1} parent=1 // pred_region
      _
    $region77: #{self_attention_encoder.1} parent=1 // pred_fallthru
      _
    // Predicated region
    $region78: #{self_attention_encoder.1} parent=1 // pred_check
      _
    $region79: #{self_attention_encoder.1} parent=1 // pred_check_branch
      %145 = sbr.rel (0) target = $region81
    $region80: #{self_attention_encoder.1} parent=1 // pred_region
      _
    $region81: #{self_attention_encoder.1} parent=1 // pred_fallthru
      _
    // Predicated region
    $region82: #{self_attention_encoder.1} parent=1 // pred_check
      _
    $region83: #{self_attention_encoder.1} parent=1 // pred_check_branch
      %147 = sbr.rel (0) target = $region85
    $region84: #{self_attention_encoder.1} parent=1 // pred_region
      _
    $region85: #{self_attention_encoder.1} parent=1 // pred_fallthru
      _
    // Predicated region
    $region86: #{self_attention_encoder.1} parent=1 // pred_check
      _
    $region87: #{self_attention_encoder.1} parent=1 // pred_check_branch
      %149 = sbr.rel (0) target = $region89
    $region88: #{self_attention_encoder.1} parent=1 // pred_region
      _
    $region89: #{self_attention_encoder.1} parent=1 // pred_fallthru
      _
    // Predicated region
    $region90: #{self_attention_encoder.1} parent=1 // pred_check
      _
    $region91: #{self_attention_encoder.1} parent=1 // pred_check_branch
      %151 = sbr.rel (0) target = $region93
    $region92: #{self_attention_encoder.1} parent=1 // pred_region
      _
    $region93: #{self_attention_encoder.1} parent=1 // pred_fallthru
      _
    // Predicated region
    $region94: #{self_attention_encoder.1} parent=1 // pred_check
      _
    $region95: #{self_attention_encoder.1} parent=1 // pred_check_branch
      %153 = sbr.rel (0) target = $region97
    $region96: #{self_attention_encoder.1} parent=1 // pred_region
      _
    $region97: #{self_attention_encoder.1} parent=1 // pred_fallthru
      _
    // Predicated region
    $region98: #{self_attention_encoder.1} parent=1 // pred_check
      _
    $region99: #{self_attention_encoder.1} parent=1 // pred_check_branch
      %155 = sbr.rel (0) target = $region101
    $region100: #{self_attention_encoder.1} parent=1 // pred_region
      _
    $region101: #{self_attention_encoder.1} parent=1 // pred_fallthru
      _
    // Predicated region
    $region102: #{self_attention_encoder.1} parent=1 // pred_check
      _
    $region103: #{self_attention_encoder.1} parent=1 // pred_check_branch
      %157 = sbr.rel (0) target = $region105
    $region104: #{self_attention_encoder.1} parent=1 // pred_region
      _
    $region105: #{self_attention_encoder.1} parent=1 // pred_fallthru
      _
    // Predicated region
    $region106: #{self_attention_encoder.1} parent=1 // pred_check
      _
    $region107: #{self_attention_encoder.1} parent=1 // pred_check_branch
      %159 = sbr.rel (0) target = $region109
    $region108: #{self_attention_encoder.1} parent=1 // pred_region
      _
    $region109: #{self_attention_encoder.1} parent=1 // pred_fallthru
      _
    // Predicated region
    $region110: #{self_attention_encoder.1} parent=1 // pred_check
      _
    $region111: #{self_attention_encoder.1} parent=1 // pred_check_branch
      %161 = sbr.rel (0) target = $region113
    $region112: #{self_attention_encoder.1} parent=1 // pred_region
      _
    $region113: #{self_attention_encoder.1} parent=1 // pred_fallthru
      _
    // Predicated region
    $region114: #{self_attention_encoder.1} parent=1 // pred_check
      _
    $region115: #{self_attention_encoder.1} parent=1 // pred_check_branch
      %163 = sbr.rel (0) target = $region117
    $region116: #{self_attention_encoder.1} parent=1 // pred_region
      _
    $region117: #{self_attention_encoder.1} parent=1 // pred_fallthru
      _
    // Predicated region
    $region118: #{self_attention_encoder.1} parent=1 // pred_check
      _
    $region119: #{self_attention_encoder.1} parent=1 // pred_check_branch
      %165 = sbr.rel (0) target = $region121
    $region120: #{self_attention_encoder.1} parent=1 // pred_region
      _
    $region121: #{self_attention_encoder.1} parent=1 // pred_fallthru
      _
    // Predicated region
    $region122: #{self_attention_encoder.1} parent=1 // pred_check
      _
    $region123: #{self_attention_encoder.1} parent=1 // pred_check_branch
      %167 = sbr.rel (0) target = $region125
    $region124: #{self_attention_encoder.1} parent=1 // pred_region
      _
    $region125: #{self_attention_encoder.1} parent=1 // pred_fallthru
      _
    // Predicated region
    $region126: #{self_attention_encoder.1} parent=1 // pred_check
      _
    $region127: #{self_attention_encoder.1} parent=1 // pred_check_branch
      %169 = sbr.rel (0) target = $region129
    $region128: #{self_attention_encoder.1} parent=1 // pred_region
      _
    $region129: #{self_attention_encoder.1} parent=1 // pred_fallthru
      _
    // Predicated region
    $region130: #{self_attention_encoder.1} parent=1 // pred_check
      _
    $region131: #{self_attention_encoder.1} parent=1 // pred_check_branch
      %171 = sbr.rel (0) target = $region133
    $region132: #{self_attention_encoder.1} parent=1 // pred_region
      _
    $region133: #{self_attention_encoder.1} parent=1 // pred_fallthru
      _
    // Predicated region
    $region134: #{self_attention_encoder.1} parent=1 // pred_check
      _
    $region135: #{self_attention_encoder.1} parent=1 // pred_check_branch
      %173 = sbr.rel (0) target = $region137
    $region136: #{self_attention_encoder.1} parent=1 // pred_region
      _
    $region137: #{self_attention_encoder.1} parent=1 // pred_fallthru
      _
    // Predicated region
    $region138: #{self_attention_encoder.1} parent=1 // pred_check
      _
    $region139: #{self_attention_encoder.1} parent=1 // pred_check_branch
      %175 = sbr.rel (0) target = $region141
    $region140: #{self_attention_encoder.1} parent=1 // pred_region
      _
    $region141: #{self_attention_encoder.1} parent=1 // pred_fallthru
      _
    // Predicated region
    $region142: #{self_attention_encoder.1} parent=1 // pred_check
      _
    $region143: #{self_attention_encoder.1} parent=1 // pred_check_branch
      %177 = sbr.rel (0) target = $region145
    $region144: #{self_attention_encoder.1} parent=1 // pred_region
      _
    $region145: #{self_attention_encoder.1} parent=1 // pred_fallthru
      _
    // Predicated region
    $region146: #{self_attention_encoder.1} parent=1 // pred_check
      _
    $region147: #{self_attention_encoder.1} parent=1 // pred_check_branch
      %179 = sbr.rel (0) target = $region149
    $region148: #{self_attention_encoder.1} parent=1 // pred_region
      _
    $region149: #{self_attention_encoder.1} parent=1 // pred_fallthru
      _
    // Predicated region
    $region150: #{self_attention_encoder.1} parent=1 // pred_check
      _
    $region151: #{self_attention_encoder.1} parent=1 // pred_check_branch
      %181 = sbr.rel (0) target = $region153
    $region152: #{self_attention_encoder.1} parent=1 // pred_region
      _
    $region153: #{self_attention_encoder.1} parent=1 // pred_fallthru
      _
    // Predicated region
    $region154: #{self_attention_encoder.1} parent=1 // pred_check
      _
    $region155: #{self_attention_encoder.1} parent=1 // pred_check_branch
      %183 = sbr.rel (0) target = $region157
    $region156: #{self_attention_encoder.1} parent=1 // pred_region
      _
    $region157: #{self_attention_encoder.1} parent=1 // pred_fallthru
      _
    // Predicated region
    $region158: #{self_attention_encoder.1} parent=1 // pred_check
      _
    $region159: #{self_attention_encoder.1} parent=1 // pred_check_branch
      %185 = sbr.rel (0) target = $region161
    $region160: #{self_attention_encoder.1} parent=1 // pred_region
      _
    $region161: #{self_attention_encoder.1} parent=1 // pred_fallthru
      _
    // Predicated region
    $region162: #{self_attention_encoder.1} parent=1 // pred_check
      _
    $region163: #{self_attention_encoder.1} parent=1 // pred_check_branch
      %187 = sbr.rel (0) target = $region165
    $region164: #{self_attention_encoder.1} parent=1 // pred_region
      _
    $region165: #{self_attention_encoder.1} parent=1 // pred_fallthru
      _
    // Predicated region
    $region166: #{self_attention_encoder.1} parent=1 // pred_check
      _
    $region167: #{self_attention_encoder.1} parent=1 // pred_check_branch
      %189 = sbr.rel (0) target = $region169
    $region168: #{self_attention_encoder.1} parent=1 // pred_region
      _
    $region169: #{self_attention_encoder.1} parent=1 // pred_fallthru
      _
    // Predicated region
    $region170: #{self_attention_encoder.1} parent=1 // pred_check
      _
    $region171: #{self_attention_encoder.1} parent=1 // pred_check_branch
      %191 = sbr.rel (0) target = $region173
    $region172: #{self_attention_encoder.1} parent=1 // pred_region
      _
    $region173: #{self_attention_encoder.1} parent=1 // pred_fallthru
      _
    // Predicated region
    $region174: #{self_attention_encoder.1} parent=1 // pred_check
      _
    $region175: #{self_attention_encoder.1} parent=1 // pred_check_branch
      %193 = sbr.rel (0) target = $region177
    $region176: #{self_attention_encoder.1} parent=1 // pred_region
      _
    $region177: #{self_attention_encoder.1} parent=1 // pred_fallthru
      _
    // Predicated region
    $region178: #{self_attention_encoder.1} parent=1 // pred_check
      _
    $region179: #{self_attention_encoder.1} parent=1 // pred_check_branch
      %195 = sbr.rel (0) target = $region181
    $region180: #{self_attention_encoder.1} parent=1 // pred_region
      %s197 = ssub.s32 16, 16
      %198 = vsyncadd [#allocation3], %s197
      %s200 = sshll.u32 [#allocation2], 4
      %s201 = int_to_ptr.vmem [resolvable:$true] %s200
      %203 = dma.hbm_to_vmem [thread:$0]  %s89, 16, %s201, [#allocation3]
    $region181: #{self_attention_encoder.1} parent=1 // pred_fallthru
      _
    // Predicated region
    $region182: #{self_attention_encoder.1} parent=1 // pred_check
      _
    $region183: #{self_attention_encoder.1} parent=1 // pred_check_branch
      %205 = sbr.rel (0) target = $region185
    $region184: #{self_attention_encoder.1} parent=1 // pred_region
      _
    $region185: #{self_attention_encoder.1} parent=1 // pred_fallthru
      _
    // Predicated region
    $region186: #{self_attention_encoder.1} parent=1 // pred_check
      _
    $region187: #{self_attention_encoder.1} parent=1 // pred_check_branch
      %207 = sbr.rel (0) target = $region189
    $region188: #{self_attention_encoder.1} parent=1 // pred_region
      %s209 = ssub.s32 16, 16
      %210 = vsyncadd [#allocation5], %s209
      %s212 = sshll.u32 [#allocation4], 4
      %s213 = int_to_ptr.vmem [resolvable:$true] %s212
      %215 = dma.hbm_to_vmem [thread:$0]  %s93, 16, %s213, [#allocation5]
    $region189: #{self_attention_encoder.1} parent=1 // pred_fallthru
      _
    // Predicated region
    $region190: #{self_attention_encoder.1} parent=1 // pred_check
      _
    $region191: #{self_attention_encoder.1} parent=1 // pred_check_branch
      %217 = sbr.rel (0) target = $region193
    $region192: #{self_attention_encoder.1} parent=1 // pred_region
      _
    $region193: #{self_attention_encoder.1} parent=1 // pred_fallthru
      _
    // Predicated region
    $region194: #{self_attention_encoder.1} parent=1 // pred_check
      _
    $region195: #{self_attention_encoder.1} parent=1 // pred_check_branch
      %219 = sbr.rel (0) target = $region197
    $region196: #{self_attention_encoder.1} parent=1 // pred_region
      %s221 = ssub.s32 16, 16
      %222 = vsyncadd [#allocation5], %s221
      %s224 = sshll.u32 [#allocation6], 4
      %s225 = int_to_ptr.vmem [resolvable:$true] %s224
      %227 = dma.hbm_to_vmem [thread:$0]  %s97, 16, %s225, [#allocation5]
    $region197: #{self_attention_encoder.1} parent=1 // pred_fallthru
      _
    // Predicated region
    $region198: #{self_attention_encoder.1} parent=1 // pred_check
      _
    $region199: #{self_attention_encoder.1} parent=1 // pred_check_branch
      %229 = sbr.rel (0) target = $region201
    $region200: #{self_attention_encoder.1} parent=1 // pred_region
      %230 = dma.done [#allocation3], 16
    $region201: #{self_attention_encoder.1} parent=1 // pred_fallthru
      _
    // Predicated region
    $region202: #{self_attention_encoder.1} parent=1 // pred_check
      _
    $region203: #{self_attention_encoder.1} parent=1 // pred_check_branch
      %232 = sbr.rel (0) target = $region205
    $region204: #{self_attention_encoder.1} parent=1 // pred_region
      %233 = dma.done [#allocation5], 16
    $region205: #{self_attention_encoder.1} parent=1 // pred_fallthru
      _
    // Predicated region
    $region206: #{self_attention_encoder.1} parent=1 // pred_check
      _
    $region207: #{self_attention_encoder.1} parent=1 // pred_check_branch
      %235 = sbr.rel (0) target = $region209
    $region208: #{self_attention_encoder.1} parent=1 // pred_region
      %236 = dma.done [#allocation5], 16
    $region209: #{self_attention_encoder.1} parent=1 // pred_fallthru
      _
    %v238 = vld [vmem:[%s1] sm:$0xff]
    %v239 = vld [vmem:[%s1 + $0x8] sm:$0xff]
    %v240 = vld [vmem:[%s5] sm:$0x3f]
    %v241 = vpack.c.bf16 %v239, %v238
    %v242 = vpack.c.bf16 %v240, %v240
    %v243 = vld [vmem:[%s7] sm:$0x1]
    %v245 = vlaneseq
    %v246 = vshrl.u32 %v245, 7
    %v247 = vsub.s32 0, %v246
    %v248 = vrot.slane %v243, %v247
    %vm250 = vcmask 48128
    %v252 = vsel %vm250, %v241, 0
    %vm254 = vcmask 1042432
    %v256 = vsel %vm254, %v242, 0
    %258 = vmatprep.subr.bf16.mxu0 0
    %259 = vmatpush1.bf16.msra.mxu0 %v256
    %260 = vmatprep.subr.bf16.mxu0 0
    %261 = vmatpush1.bf16.msra.mxu0 0
    %262 = vmatprep.subr.bf16.mxu0 0
    %263 = vmatpush1.bf16.msra.mxu0 0
    %264 = vmatprep.subr.bf16.mxu0 0
    %265 = vmatpush1.bf16.msra.mxu0 0
    %266 = vmatprep.subr.bf16.mxu0 0
    %267 = vmatpush1.bf16.msra.mxu0 0
    %268 = vmatprep.subr.bf16.mxu0 0
    %269 = vmatpush1.bf16.msra.mxu0 0
    %270 = vmatprep.subr.bf16.mxu0 0
    %271 = vmatpush1.bf16.msra.mxu0 0
    %272 = vmatprep.subr.bf16.mxu0 0
    %273 = vmatpush1.bf16.msra.mxu0 0
    %274 = vmatprep.subr.bf16.mxu0 0
    %275 = vmatpush1.bf16.msra.mxu0 0
    %276 = vmatprep.subr.bf16.mxu0 0
    %277 = vmatpush1.bf16.msra.mxu0 0
    %278 = vmatprep.subr.bf16.mxu0 0
    %279 = vmatpush1.bf16.msra.mxu0 0
    %280 = vmatprep.subr.bf16.mxu0 0
    %281 = vmatpush1.bf16.msra.mxu0 0
    %282 = vmatprep.subr.bf16.mxu0 0
    %283 = vmatpush1.bf16.msra.mxu0 0
    %284 = vmatprep.subr.bf16.mxu0 0
    %285 = vmatpush1.bf16.msra.mxu0 0
    %286 = vmatprep.subr.bf16.mxu0 0
    %287 = vmatpush1.bf16.msra.mxu0 0
    %288 = vmatprep.subr.bf16.mxu0 0
    %289 = vmatpush1.bf16.msra.mxu0 0
    %290 = vmatprep.mubr.bf16.mxu0 0
    %291 = vmatmul.mubr.bf16.gmra.mrb[0].mxu0 %v252
    %v292 = vpop.f32.mrb[0].mxu0
    %v293 = vadd.f32 %v248, %v292
    %v294 = vpop.f32.mrb[0].mxu0
    %v295 = vpop.f32.mrb[0].mxu0
    %v296 = vadd.f32 %v248, %v295
    %v297 = vpop.f32.mrb[0].mxu0
    %298 = vdwg.mxu0
    %v299 = vld [vmem:[%s9] sm:$0xff]
    %v300 = vld [vmem:[%s9 + $0x8] sm:$0xff]
    %v301 = vld [vmem:[%s9 + $0x10] sm:$0xff]
    %v302 = vld [vmem:[%s9 + $0x18] sm:$0xff]
    %v303 = vpack.c.bf16 %v296, %v293
    %v304 = vpack.c.bf16 %v300, %v299
    %v305 = vpack.c.bf16 %v302, %v301
    %v306 = vld [vmem:[%s11] sm:$0x1]
    %v308 = vlaneseq
    %v309 = vshrl.u32 %v308, 7
    %v310 = vsub.s32 0, %v309
    %v311 = vrot.slane %v306, %v310
    %vm313 = vcmask 261120
    %v315 = vsel %vm313, %v303, 0
    %317 = vmatprep.subr.bf16.mxu0 0
    %318 = vmatpush1.bf16.msra.mxu0 %v304
    %319 = vmatprep.subr.bf16.mxu0 0
    %320 = vmatpush1.bf16.msra.mxu0 %v305
    %321 = vmatprep.subr.bf16.mxu0 0
    %322 = vmatpush1.bf16.msra.mxu0 0
    %323 = vmatprep.subr.bf16.mxu0 0
    %324 = vmatpush1.bf16.msra.mxu0 0
    %325 = vmatprep.subr.bf16.mxu0 0
    %326 = vmatpush1.bf16.msra.mxu0 0
    %327 = vmatprep.subr.bf16.mxu0 0
    %328 = vmatpush1.bf16.msra.mxu0 0
    %329 = vmatprep.subr.bf16.mxu0 0
    %330 = vmatpush1.bf16.msra.mxu0 0
    %331 = vmatprep.subr.bf16.mxu0 0
    %332 = vmatpush1.bf16.msra.mxu0 0
    %333 = vmatprep.subr.bf16.mxu0 0
    %334 = vmatpush1.bf16.msra.mxu0 0
    %335 = vmatprep.subr.bf16.mxu0 0
    %336 = vmatpush1.bf16.msra.mxu0 0
    %337 = vmatprep.subr.bf16.mxu0 0
    %338 = vmatpush1.bf16.msra.mxu0 0
    %339 = vmatprep.subr.bf16.mxu0 0
    %340 = vmatpush1.bf16.msra.mxu0 0
    %341 = vmatprep.subr.bf16.mxu0 0
    %342 = vmatpush1.bf16.msra.mxu0 0
    %343 = vmatprep.subr.bf16.mxu0 0
    %344 = vmatpush1.bf16.msra.mxu0 0
    %345 = vmatprep.subr.bf16.mxu0 0
    %346 = vmatpush1.bf16.msra.mxu0 0
    %347 = vmatprep.subr.bf16.mxu0 0
    %348 = vmatpush1.bf16.msra.mxu0 0
    %349 = vmatprep.mubr.bf16.mxu0 0
    %350 = vmatmul.mubr.bf16.gmra.mrb[0].mxu0 %v315
    %v351 = vpop.f32.mrb[0].mxu0
    %v352 = vadd.f32 %v311, %v351
    %v353 = vpop.f32.mrb[0].mxu0
    %v354 = vpop.f32.mrb[0].mxu0
    %v355 = vadd.f32 %v311, %v354
    %v356 = vpop.f32.mrb[0].mxu0
    %357 = vdwg.mxu0
    %v358 = vmax.f32 %v352, 0.0
    %v359 = vmax.f32 %v355, 0.0
    %v360 = vld [vmem:[%s13] sm:$0xff]
    %v361 = vld [vmem:[%s13 + $0x8] sm:$0xff]
    %v362 = vld [vmem:[%s13 + $0x10] sm:$0xff]
    %v363 = vld [vmem:[%s13 + $0x18] sm:$0xff]
    %v364 = vld [vmem:[%s13 + $0x20] sm:$0xff]
    %v365 = vld [vmem:[%s13 + $0x28] sm:$0xff]
    %v366 = vld [vmem:[%s13 + $0x30] sm:$0xff]
    %v367 = vld [vmem:[%s13 + $0x38] sm:$0xff]
    %v368 = vpack.c.bf16 %v359, %v358
    %v369 = vpack.c.bf16 %v361, %v360
    %v370 = vpack.c.bf16 %v363, %v362
    %v371 = vpack.c.bf16 %v365, %v364
    %v372 = vpack.c.bf16 %v367, %v366
    %v373 = vld [vmem:[%s15] sm:$0x1]
    %v375 = vlaneseq
    %v376 = vshrl.u32 %v375, 7
    %v377 = vsub.s32 0, %v376
    %v378 = vrot.slane %v373, %v377
    %vm380 = vcmask 523264
    %v382 = vsel %vm380, %v368, 0
    %384 = vmatprep.subr.bf16.mxu0 0
    %385 = vmatpush1.bf16.msra.mxu0 %v369
    %386 = vmatprep.subr.bf16.mxu0 0
    %387 = vmatpush1.bf16.msra.mxu0 %v370
    %388 = vmatprep.subr.bf16.mxu0 0
    %389 = vmatpush1.bf16.msra.mxu0 %v371
    %390 = vmatprep.subr.bf16.mxu0 0
    %391 = vmatpush1.bf16.msra.mxu0 %v372
    %392 = vmatprep.subr.bf16.mxu0 0
    %393 = vmatpush1.bf16.msra.mxu0 0
    %394 = vmatprep.subr.bf16.mxu0 0
    %395 = vmatpush1.bf16.msra.mxu0 0
    %396 = vmatprep.subr.bf16.mxu0 0
    %397 = vmatpush1.bf16.msra.mxu0 0
    %398 = vmatprep.subr.bf16.mxu0 0
    %399 = vmatpush1.bf16.msra.mxu0 0
    %400 = vmatprep.subr.bf16.mxu0 0
    %401 = vmatpush1.bf16.msra.mxu0 0
    %402 = vmatprep.subr.bf16.mxu0 0
    %403 = vmatpush1.bf16.msra.mxu0 0
    %404 = vmatprep.subr.bf16.mxu0 0
    %405 = vmatpush1.bf16.msra.mxu0 0
    %406 = vmatprep.subr.bf16.mxu0 0
    %407 = vmatpush1.bf16.msra.mxu0 0
    %408 = vmatprep.subr.bf16.mxu0 0
    %409 = vmatpush1.bf16.msra.mxu0 0
    %410 = vmatprep.subr.bf16.mxu0 0
    %411 = vmatpush1.bf16.msra.mxu0 0
    %412 = vmatprep.subr.bf16.mxu0 0
    %413 = vmatpush1.bf16.msra.mxu0 0
    %414 = vmatprep.subr.bf16.mxu0 0
    %415 = vmatpush1.bf16.msra.mxu0 0
    %416 = vmatprep.mubr.bf16.mxu0 0
    %417 = vmatmul.mubr.bf16.gmra.mrb[0].mxu0 %v382
    %v418 = vpop.f32.mrb[0].mxu0
    %v419 = vadd.f32 %v378, %v418
    %v420 = vpop.f32.mrb[0].mxu0
    %v421 = vpop.f32.mrb[0].mxu0
    %v422 = vadd.f32 %v378, %v421
    %v423 = vpop.f32.mrb[0].mxu0
    %424 = vdwg.mxu0
    %v425 = vld [vmem:[%s3] sm:$0xff]
    %v426 = vld [vmem:[%s3 + $0x8] sm:$0xff]
    %v427 = vld [vmem:[%s17] sm:$0x1f]
    %v428 = vpack.c.bf16 %v426, %v425
    %v429 = vpack.c.bf16 %v427, %v427
    %v430 = vld [vmem:[%s19] sm:$0x1]
    %v432 = vlaneseq
    %v433 = vshrl.u32 %v432, 7
    %v434 = vsub.s32 0, %v433
    %v435 = vrot.slane %v430, %v434
    %vm437 = vcmask 39936
    %v439 = vsel %vm437, %v428, 0
    %vm441 = vcmask 1041408
    %v442 = vsel %vm441, 4294967295, 65535
    %v443 = vsel %vm254, %v442, 0
    %v445 = vand.u32 %v429, %v443
    %447 = vmatprep.subr.bf16.mxu0 0
    %448 = vmatpush1.bf16.msra.mxu0 %v445
    %449 = vmatprep.subr.bf16.mxu0 0
    %450 = vmatpush1.bf16.msra.mxu0 0
    %451 = vmatprep.subr.bf16.mxu0 0
    %452 = vmatpush1.bf16.msra.mxu0 0
    %453 = vmatprep.subr.bf16.mxu0 0
    %454 = vmatpush1.bf16.msra.mxu0 0
    %455 = vmatprep.subr.bf16.mxu0 0
    %456 = vmatpush1.bf16.msra.mxu0 0
    %457 = vmatprep.subr.bf16.mxu0 0
    %458 = vmatpush1.bf16.msra.mxu0 0
    %459 = vmatprep.subr.bf16.mxu0 0
    %460 = vmatpush1.bf16.msra.mxu0 0
    %461 = vmatprep.subr.bf16.mxu0 0
    %462 = vmatpush1.bf16.msra.mxu0 0
    %463 = vmatprep.subr.bf16.mxu0 0
    %464 = vmatpush1.bf16.msra.mxu0 0
    %465 = vmatprep.subr.bf16.mxu0 0
    %466 = vmatpush1.bf16.msra.mxu0 0
    %467 = vmatprep.subr.bf16.mxu0 0
    %468 = vmatpush1.bf16.msra.mxu0 0
    %469 = vmatprep.subr.bf16.mxu0 0
    %470 = vmatpush1.bf16.msra.mxu0 0
    %471 = vmatprep.subr.bf16.mxu0 0
    %472 = vmatpush1.bf16.msra.mxu0 0
    %473 = vmatprep.subr.bf16.mxu0 0
    %474 = vmatpush1.bf16.msra.mxu0 0
    %475 = vmatprep.subr.bf16.mxu0 0
    %476 = vmatpush1.bf16.msra.mxu0 0
    %477 = vmatprep.subr.bf16.mxu0 0
    %478 = vmatpush1.bf16.msra.mxu0 0
    %479 = vmatprep.mubr.bf16.mxu0 0
    %480 = vmatmul.mubr.bf16.gmra.mrb[0].mxu0 %v439
    %v481 = vpop.f32.mrb[0].mxu0
    %v482 = vadd.f32 %v435, %v481
    %v483 = vpop.f32.mrb[0].mxu0
    %v484 = vpop.f32.mrb[0].mxu0
    %v485 = vadd.f32 %v435, %v484
    %v486 = vpop.f32.mrb[0].mxu0
    %487 = vdwg.mxu0
    %v488 = vlaneseq
    %v489 = vshrl.u32 %v488, 7
    %v490 = vadd.s32 %v489, 8
    %v491 = vlaneseq
    %v492 = vand.u32 %v491, 127
    %vm493 = vcmp.lt.s32.totalorder %v489, 0
    %v494 = vsub.s32 0, %v489
    %v495 = vsel %vm493, %v494, %v489
    %v496 = vshrl.u32 %v495, 3
    %v497 = vand.u32 %v495, 7
    %v498 = vsub.s32 0, %v497
    %v499 = vsel %vm493, %v498, %v497
    %vm500 = vcmp.lt.s32.totalorder %v490, 0
    %v501 = vsub.s32 0, %v490
    %v502 = vsel %vm500, %v501, %v490
    %v503 = vshrl.u32 %v502, 3
    %v504 = vand.u32 %v502, 7
    %v505 = vsub.s32 0, %v504
    %v506 = vsel %vm500, %v505, %v504
    %vm507 = vcmp.ne.s32.totalorder %v499, 0
    %vm508 = vcmp.ne.s32.totalorder %v506, 0
    %vm509 = vcmp.lt.s32.totalorder %v499, 0
    %vm510 = vcmp.lt.s32.totalorder %v506, 0
    %vm511 = vmand %vm509, %vm507
    %vm512 = vmand %vm510, %vm508
    %v513 = vadd.s32 %v499, 8
    %v514 = vadd.s32 %v506, 8
    %v515 = vsel %vm511, %v513, %v499
    %v516 = vsel %vm512, %v514, %v506
    %vm517 = vcmp.lt.s32.totalorder %v492, 0
    %v518 = vsub.s32 0, %v492
    %v519 = vsel %vm517, %v518, %v492
    %v520 = vshrl.u32 %v519, 3
    %v521 = vand.u32 %v519, 7
    %v522 = vsub.s32 0, %v521
    %v523 = vsel %vm517, %v522, %v521
    %vm524 = vcmp.ne.s32.totalorder %v523, 0
    %vm525 = vcmp.lt.s32.totalorder %v523, 0
    %vm526 = vmand %vm525, %vm524
    %v527 = vadd.s32 %v523, 8
    %v528 = vsel %vm526, %v527, %v523
    %vm529 = vcmp.eq.s32.totalorder %v515, %v528
    %vm530 = vcmp.eq.s32.totalorder %v516, %v528
    %v531 = vld [vmem:[%s35] sm:$0x1]
    %v532 = vld [vmem:[%s21] sm:$0xff]
    %v533 = vld [vmem:[%s21 + $0x8] sm:$0xff]
    %v534 = vld [vmem:[%s21 + $0x10] sm:$0xff]
    %v535 = vld [vmem:[%s21 + $0x18] sm:$0xff]
    %v536 = vpack.c.bf16 %v485, %v482
    %v537 = vpack.c.bf16 %v533, %v532
    %v538 = vpack.c.bf16 %v535, %v534
    %v539 = vld [vmem:[%s27] sm:$0x1]
    %v541 = vlaneseq
    %v542 = vshrl.u32 %v541, 7
    %v543 = vsub.s32 0, %v542
    %v544 = vrot.slane %v539, %v543
    %v547 = vsel %vm313, %v536, 0
    %549 = vmatprep.subr.bf16.mxu0 0
    %550 = vmatpush1.bf16.msra.mxu0 %v537
    %551 = vmatprep.subr.bf16.mxu0 0
    %552 = vmatpush1.bf16.msra.mxu0 %v538
    %553 = vmatprep.subr.bf16.mxu0 0
    %554 = vmatpush1.bf16.msra.mxu0 0
    %555 = vmatprep.subr.bf16.mxu0 0
    %556 = vmatpush1.bf16.msra.mxu0 0
    %557 = vmatprep.subr.bf16.mxu0 0
    %558 = vmatpush1.bf16.msra.mxu0 0
    %559 = vmatprep.subr.bf16.mxu0 0
    %560 = vmatpush1.bf16.msra.mxu0 0
    %561 = vmatprep.subr.bf16.mxu0 0
    %562 = vmatpush1.bf16.msra.mxu0 0
    %563 = vmatprep.subr.bf16.mxu0 0
    %564 = vmatpush1.bf16.msra.mxu0 0
    %565 = vmatprep.subr.bf16.mxu0 0
    %566 = vmatpush1.bf16.msra.mxu0 0
    %567 = vmatprep.subr.bf16.mxu0 0
    %568 = vmatpush1.bf16.msra.mxu0 0
    %569 = vmatprep.subr.bf16.mxu0 0
    %570 = vmatpush1.bf16.msra.mxu0 0
    %571 = vmatprep.subr.bf16.mxu0 0
    %572 = vmatpush1.bf16.msra.mxu0 0
    %573 = vmatprep.subr.bf16.mxu0 0
    %574 = vmatpush1.bf16.msra.mxu0 0
    %575 = vmatprep.subr.bf16.mxu0 0
    %576 = vmatpush1.bf16.msra.mxu0 0
    %577 = vmatprep.subr.bf16.mxu0 0
    %578 = vmatpush1.bf16.msra.mxu0 0
    %579 = vmatprep.subr.bf16.mxu0 0
    %580 = vmatpush1.bf16.msra.mxu0 0
    %581 = vmatprep.mubr.bf16.mxu0 0
    %582 = vmatmul.mubr.bf16.gmra.mrb[0].mxu0 %v547
    %v583 = vpop.f32.mrb[0].mxu0
    %v584 = vadd.f32 %v544, %v583
    %v585 = vpop.f32.mrb[0].mxu0
    %v586 = vpop.f32.mrb[0].mxu0
    %v587 = vadd.f32 %v544, %v586
    %v588 = vpop.f32.mrb[0].mxu0
    %589 = vdwg.mxu0
    %v590 = vld [vmem:[%s23] sm:$0xff]
    %v591 = vld [vmem:[%s23 + $0x8] sm:$0xff]
    %v592 = vld [vmem:[%s23 + $0x10] sm:$0xff]
    %v593 = vld [vmem:[%s23 + $0x18] sm:$0xff]
    %v594 = vpack.c.bf16 %v591, %v590
    %v595 = vpack.c.bf16 %v593, %v592
    %v596 = vld [vmem:[%s29] sm:$0x1]
    %v598 = vlaneseq
    %v599 = vshrl.u32 %v598, 7
    %v600 = vsub.s32 0, %v599
    %v601 = vrot.slane %v596, %v600
    %603 = vmatprep.subr.bf16.mxu0 0
    %604 = vmatpush1.bf16.msra.mxu0 %v594
    %605 = vmatprep.subr.bf16.mxu0 0
    %606 = vmatpush1.bf16.msra.mxu0 %v595
    %607 = vmatprep.subr.bf16.mxu0 0
    %608 = vmatpush1.bf16.msra.mxu0 0
    %609 = vmatprep.subr.bf16.mxu0 0
    %610 = vmatpush1.bf16.msra.mxu0 0
    %611 = vmatprep.subr.bf16.mxu0 0
    %612 = vmatpush1.bf16.msra.mxu0 0
    %613 = vmatprep.subr.bf16.mxu0 0
    %614 = vmatpush1.bf16.msra.mxu0 0
    %615 = vmatprep.subr.bf16.mxu0 0
    %616 = vmatpush1.bf16.msra.mxu0 0
    %617 = vmatprep.subr.bf16.mxu0 0
    %618 = vmatpush1.bf16.msra.mxu0 0
    %619 = vmatprep.subr.bf16.mxu0 0
    %620 = vmatpush1.bf16.msra.mxu0 0
    %621 = vmatprep.subr.bf16.mxu0 0
    %622 = vmatpush1.bf16.msra.mxu0 0
    %623 = vmatprep.subr.bf16.mxu0 0
    %624 = vmatpush1.bf16.msra.mxu0 0
    %625 = vmatprep.subr.bf16.mxu0 0
    %626 = vmatpush1.bf16.msra.mxu0 0
    %627 = vmatprep.subr.bf16.mxu0 0
    %628 = vmatpush1.bf16.msra.mxu0 0
    %629 = vmatprep.subr.bf16.mxu0 0
    %630 = vmatpush1.bf16.msra.mxu0 0
    %631 = vmatprep.subr.bf16.mxu0 0
    %632 = vmatpush1.bf16.msra.mxu0 0
    %633 = vmatprep.subr.bf16.mxu0 0
    %634 = vmatpush1.bf16.msra.mxu0 0
    %635 = vmatprep.mubr.bf16.mxu0 0
    %636 = vmatmul.mubr.bf16.gmra.mrb[0].mxu0 %v547
    %v637 = vpop.f32.mrb[0].mxu0
    %v638 = vadd.f32 %v601, %v637
    %v639 = vpop.f32.mrb[0].mxu0
    %v640 = vpop.f32.mrb[0].mxu0
    %v641 = vadd.f32 %v601, %v640
    %v642 = vpop.f32.mrb[0].mxu0
    %643 = vdwg.mxu0
    %v644 = vld [vmem:[%s25] sm:$0xff]
    %v645 = vld [vmem:[%s25 + $0x8] sm:$0xff]
    %v646 = vld [vmem:[%s25 + $0x10] sm:$0xff]
    %v647 = vld [vmem:[%s25 + $0x18] sm:$0xff]
    %v648 = vpack.c.bf16 %v645, %v644
    %v649 = vpack.c.bf16 %v647, %v646
    %v650 = vld [vmem:[%s31] sm:$0x1]
    %v652 = vlaneseq
    %v653 = vshrl.u32 %v652, 7
    %v654 = vsub.s32 0, %v653
    %v655 = vrot.slane %v650, %v654
    %657 = vmatprep.subr.bf16.mxu0 0
    %658 = vmatpush1.bf16.msra.mxu0 %v648
    %659 = vmatprep.subr.bf16.mxu0 0
    %660 = vmatpush1.bf16.msra.mxu0 %v649
    %661 = vmatprep.subr.bf16.mxu0 0
    %662 = vmatpush1.bf16.msra.mxu0 0
    %663 = vmatprep.subr.bf16.mxu0 0
    %664 = vmatpush1.bf16.msra.mxu0 0
    %665 = vmatprep.subr.bf16.mxu0 0
    %666 = vmatpush1.bf16.msra.mxu0 0
    %667 = vmatprep.subr.bf16.mxu0 0
    %668 = vmatpush1.bf16.msra.mxu0 0
    %669 = vmatprep.subr.bf16.mxu0 0
    %670 = vmatpush1.bf16.msra.mxu0 0
    %671 = vmatprep.subr.bf16.mxu0 0
    %672 = vmatpush1.bf16.msra.mxu0 0
    %673 = vmatprep.subr.bf16.mxu0 0
    %674 = vmatpush1.bf16.msra.mxu0 0
    %675 = vmatprep.subr.bf16.mxu0 0
    %676 = vmatpush1.bf16.msra.mxu0 0
    %677 = vmatprep.subr.bf16.mxu0 0
    %678 = vmatpush1.bf16.msra.mxu0 0
    %679 = vmatprep.subr.bf16.mxu0 0
    %680 = vmatpush1.bf16.msra.mxu0 0
    %681 = vmatprep.subr.bf16.mxu0 0
    %682 = vmatpush1.bf16.msra.mxu0 0
    %683 = vmatprep.subr.bf16.mxu0 0
    %684 = vmatpush1.bf16.msra.mxu0 0
    %685 = vmatprep.subr.bf16.mxu0 0
    %686 = vmatpush1.bf16.msra.mxu0 0
    %687 = vmatprep.subr.bf16.mxu0 0
    %688 = vmatpush1.bf16.msra.mxu0 0
    %689 = vmatprep.mubr.bf16.mxu0 0
    %690 = vmatmul.mubr.bf16.gmra.mrb[0].mxu0 %v547
    %v691 = vpop.f32.mrb[0].mxu0
    %v692 = vadd.f32 %v655, %v691
    %v693 = vpop.f32.mrb[0].mxu0
    %v694 = vpop.f32.mrb[0].mxu0
    %v695 = vadd.f32 %v655, %v694
    %v696 = vpop.f32.mrb[0].mxu0
    %697 = vdwg.mxu0
    %v698 = vpack.c.bf16 %v587, %v584
    %v699 = vpack.c.bf16 %v641, %v638
    %vm700 = vcmask 64512
    %v702 = vsel %vm700, %v698, 0
    %v705 = vsel %vm700, %v699, 0
    %707 = vmatprep.subr.bf16.mxu0 0
    %708 = vmatpush1.bf16.xpose.msra.mxu0 %v705
    %709 = vmatprep.subr.bf16.mxu0 0
    %710 = vmatpush1.bf16.xpose.msra.mxu0 0
    %711 = vmatprep.subr.bf16.mxu0 0
    %712 = vmatpush1.bf16.xpose.msra.mxu0 0
    %713 = vmatprep.subr.bf16.mxu0 0
    %714 = vmatpush1.bf16.xpose.msra.mxu0 0
    %715 = vmatprep.subr.bf16.mxu0 0
    %716 = vmatpush1.bf16.xpose.msra.mxu0 0
    %717 = vmatprep.subr.bf16.mxu0 0
    %718 = vmatpush1.bf16.xpose.msra.mxu0 0
    %719 = vmatprep.subr.bf16.mxu0 0
    %720 = vmatpush1.bf16.xpose.msra.mxu0 0
    %721 = vmatprep.subr.bf16.mxu0 0
    %722 = vmatpush1.bf16.xpose.msra.mxu0 0
    %723 = vmatprep.subr.bf16.mxu0 0
    %724 = vmatpush1.bf16.xpose.msra.mxu0 0
    %725 = vmatprep.subr.bf16.mxu0 0
    %726 = vmatpush1.bf16.xpose.msra.mxu0 0
    %727 = vmatprep.subr.bf16.mxu0 0
    %728 = vmatpush1.bf16.xpose.msra.mxu0 0
    %729 = vmatprep.subr.bf16.mxu0 0
    %730 = vmatpush1.bf16.xpose.msra.mxu0 0
    %731 = vmatprep.subr.bf16.mxu0 0
    %732 = vmatpush1.bf16.xpose.msra.mxu0 0
    %733 = vmatprep.subr.bf16.mxu0 0
    %734 = vmatpush1.bf16.xpose.msra.mxu0 0
    %735 = vmatprep.subr.bf16.mxu0 0
    %736 = vmatpush1.bf16.xpose.msra.mxu0 0
    %737 = vmatprep.subr.bf16.mxu0 0
    %738 = vmatpush1.bf16.xpose.msra.mxu0 0
    %739 = vmatprep.mubr.bf16.mxu0 0
    %740 = vmatmul.mubr.bf16.gmra.mrb[0].mxu0 %v702
    %v741 = vpop.f32.mrb[0].mxu0
    %v742 = vadd.f32 0.0, %v741
    %v743 = vpop.f32.mrb[0].mxu0
    %v744 = vpop.f32.mrb[0].mxu0
    %v745 = vadd.f32 0.0, %v744
    %v746 = vpop.f32.mrb[0].mxu0
    %747 = vdwg.mxu0
    %v748 = vmul.f32 %v742, 0.35355338
    %v749 = vmul.f32 %v745, 0.35355338
    %v750 = vsel %vm529, %v748, -1e+09
    %v751 = vsel %vm530, %v749, -1e+09
    %vm752 = vcmask 130048
    %v753 = vsel %vm752, %v750, -inf
    %754 = vmax.xlane.f32.xlu0 %v753
    %v755 = vpop.xlane.xlu0 %754
    %v756 = vsel %vm752, %v751, -inf
    %757 = vmax.xlane.f32.xlu0 %v756
    %v758 = vpop.xlane.xlu0 %757
    %v759 = vsub.f32 %v750, %v755
    %v760 = vsub.f32 %v751, %v758
    %v761 = vmul.f32 %v759, 1.442695
    %v762 = vpow.pop %v761
    %v763 = vmul.f32 %v760, 1.442695
    %v764 = vpow.pop %v763
    %v765 = vsel %vm752, %v762, 0.0
    %766 = vadd.xlane.f32.xlu0 %v765
    %v767 = vpop.xlane.xlu0 %766
    %v768 = vsel %vm752, %v764, 0.0
    %769 = vadd.xlane.f32.xlu0 %v768
    %v770 = vpop.xlane.xlu0 %769
    %v771 = vrcp.pop %v767
    %v772 = vrcp.pop %v770
    %v773 = vmul.f32 %v762, %v771
    %v774 = vmul.f32 %v764, %v772
    %v775 = vpack.c.bf16 %v774, %v773
    %v776 = vpack.c.bf16 %v695, %v692
    %v778 = vsel %vm752, %v775, 0
    %780 = vmatprep.subr.bf16.mxu0 0
    %781 = vmatpush1.bf16.msra.mxu0 %v776
    %782 = vmatprep.subr.bf16.mxu0 0
    %783 = vmatpush1.bf16.msra.mxu0 0
    %784 = vmatprep.subr.bf16.mxu0 0
    %785 = vmatpush1.bf16.msra.mxu0 0
    %786 = vmatprep.subr.bf16.mxu0 0
    %787 = vmatpush1.bf16.msra.mxu0 0
    %788 = vmatprep.subr.bf16.mxu0 0
    %789 = vmatpush1.bf16.msra.mxu0 0
    %790 = vmatprep.subr.bf16.mxu0 0
    %791 = vmatpush1.bf16.msra.mxu0 0
    %792 = vmatprep.subr.bf16.mxu0 0
    %793 = vmatpush1.bf16.msra.mxu0 0
    %794 = vmatprep.subr.bf16.mxu0 0
    %795 = vmatpush1.bf16.msra.mxu0 0
    %796 = vmatprep.subr.bf16.mxu0 0
    %797 = vmatpush1.bf16.msra.mxu0 0
    %798 = vmatprep.subr.bf16.mxu0 0
    %799 = vmatpush1.bf16.msra.mxu0 0
    %800 = vmatprep.subr.bf16.mxu0 0
    %801 = vmatpush1.bf16.msra.mxu0 0
    %802 = vmatprep.subr.bf16.mxu0 0
    %803 = vmatpush1.bf16.msra.mxu0 0
    %804 = vmatprep.subr.bf16.mxu0 0
    %805 = vmatpush1.bf16.msra.mxu0 0
    %806 = vmatprep.subr.bf16.mxu0 0
    %807 = vmatpush1.bf16.msra.mxu0 0
    %808 = vmatprep.subr.bf16.mxu0 0
    %809 = vmatpush1.bf16.msra.mxu0 0
    %810 = vmatprep.subr.bf16.mxu0 0
    %811 = vmatpush1.bf16.msra.mxu0 0
    %812 = vmatprep.mubr.bf16.mxu0 0
    %813 = vmatmul.mubr.bf16.gmra.mrb[0].mxu0 %v778
    %v814 = vpop.f32.mrb[0].mxu0
    %v815 = vadd.f32 0.0, %v814
    %v816 = vpop.f32.mrb[0].mxu0
    %v817 = vpop.f32.mrb[0].mxu0
    %v818 = vadd.f32 0.0, %v817
    %v819 = vpop.f32.mrb[0].mxu0
    %820 = vdwg.mxu0
    %v821 = vld [vmem:[%s33] sm:$0xff]
    %v822 = vpack.c.bf16 %v818, %v815
    %v823 = vpack.c.bf16 %v821, %v821
    %v825 = vsel %vm700, %v822, 0
    %vm827 = vcmask 1043456
    %v829 = vsel %vm827, %v823, 0
    %831 = vmatprep.subr.bf16.mxu0 0
    %832 = vmatpush1.bf16.msra.mxu0 %v829
    %833 = vmatprep.subr.bf16.mxu0 0
    %834 = vmatpush1.bf16.msra.mxu0 0
    %835 = vmatprep.subr.bf16.mxu0 0
    %836 = vmatpush1.bf16.msra.mxu0 0
    %837 = vmatprep.subr.bf16.mxu0 0
    %838 = vmatpush1.bf16.msra.mxu0 0
    %839 = vmatprep.subr.bf16.mxu0 0
    %840 = vmatpush1.bf16.msra.mxu0 0
    %841 = vmatprep.subr.bf16.mxu0 0
    %842 = vmatpush1.bf16.msra.mxu0 0
    %843 = vmatprep.subr.bf16.mxu0 0
    %844 = vmatpush1.bf16.msra.mxu0 0
    %845 = vmatprep.subr.bf16.mxu0 0
    %846 = vmatpush1.bf16.msra.mxu0 0
    %847 = vmatprep.subr.bf16.mxu0 0
    %848 = vmatpush1.bf16.msra.mxu0 0
    %849 = vmatprep.subr.bf16.mxu0 0
    %850 = vmatpush1.bf16.msra.mxu0 0
    %851 = vmatprep.subr.bf16.mxu0 0
    %852 = vmatpush1.bf16.msra.mxu0 0
    %853 = vmatprep.subr.bf16.mxu0 0
    %854 = vmatpush1.bf16.msra.mxu0 0
    %855 = vmatprep.subr.bf16.mxu0 0
    %856 = vmatpush1.bf16.msra.mxu0 0
    %857 = vmatprep.subr.bf16.mxu0 0
    %858 = vmatpush1.bf16.msra.mxu0 0
    %859 = vmatprep.subr.bf16.mxu0 0
    %860 = vmatpush1.bf16.msra.mxu0 0
    %861 = vmatprep.subr.bf16.mxu0 0
    %862 = vmatpush1.bf16.msra.mxu0 0
    %863 = vmatprep.mubr.bf16.mxu0 0
    %864 = vmatmul.mubr.bf16.gmra.mrb[0].mxu0 %v825
    %v865 = vpop.f32.mrb[0].mxu0
    %v866 = vadd.f32 0.0, %v865
    %v867 = vpop.f32.mrb[0].mxu0
    %v868 = vpop.f32.mrb[0].mxu0
    %v869 = vadd.f32 0.0, %v868
    %v870 = vpop.f32.mrb[0].mxu0
    %871 = vdwg.mxu0
    %v873 = vlaneseq
    %v874 = vshrl.u32 %v873, 7
    %v875 = vsub.s32 0, %v874
    %v876 = vrot.slane %v531, %v875
    %v878 = vadd.f32 %v876, %v866
    %v879 = vadd.f32 %v876, %v869
    %s880 = scalar_lea.vmem %s21, 32
    %v881 = vld [vmem:[%s880] sm:$0xff]
    %v882 = vld [vmem:[%s880 + $0x8] sm:$0xff]
    %v883 = vld [vmem:[%s880 + $0x10] sm:$0xff]
    %v884 = vld [vmem:[%s880 + $0x18] sm:$0xff]
    %v885 = vpack.c.bf16 %v882, %v881
    %v886 = vpack.c.bf16 %v884, %v883
    %s887 = scalar_lea.vmem %s27, 1
    %v888 = vld [vmem:[%s887] sm:$0x1]
    %v890 = vlaneseq
    %v891 = vshrl.u32 %v890, 7
    %v892 = vsub.s32 0, %v891
    %v893 = vrot.slane %v888, %v892
    %895 = vmatprep.subr.bf16.mxu0 0
    %896 = vmatpush1.bf16.msra.mxu0 %v885
    %897 = vmatprep.subr.bf16.mxu0 0
    %898 = vmatpush1.bf16.msra.mxu0 %v886
    %899 = vmatprep.subr.bf16.mxu0 0
    %900 = vmatpush1.bf16.msra.mxu0 0
    %901 = vmatprep.subr.bf16.mxu0 0
    %902 = vmatpush1.bf16.msra.mxu0 0
    %903 = vmatprep.subr.bf16.mxu0 0
    %904 = vmatpush1.bf16.msra.mxu0 0
    %905 = vmatprep.subr.bf16.mxu0 0
    %906 = vmatpush1.bf16.msra.mxu0 0
    %907 = vmatprep.subr.bf16.mxu0 0
    %908 = vmatpush1.bf16.msra.mxu0 0
    %909 = vmatprep.subr.bf16.mxu0 0
    %910 = vmatpush1.bf16.msra.mxu0 0
    %911 = vmatprep.subr.bf16.mxu0 0
    %912 = vmatpush1.bf16.msra.mxu0 0
    %913 = vmatprep.subr.bf16.mxu0 0
    %914 = vmatpush1.bf16.msra.mxu0 0
    %915 = vmatprep.subr.bf16.mxu0 0
    %916 = vmatpush1.bf16.msra.mxu0 0
    %917 = vmatprep.subr.bf16.mxu0 0
    %918 = vmatpush1.bf16.msra.mxu0 0
    %919 = vmatprep.subr.bf16.mxu0 0
    %920 = vmatpush1.bf16.msra.mxu0 0
    %921 = vmatprep.subr.bf16.mxu0 0
    %922 = vmatpush1.bf16.msra.mxu0 0
    %923 = vmatprep.subr.bf16.mxu0 0
    %924 = vmatpush1.bf16.msra.mxu0 0
    %925 = vmatprep.subr.bf16.mxu0 0
    %926 = vmatpush1.bf16.msra.mxu0 0
    %927 = vmatprep.mubr.bf16.mxu0 0
    %928 = vmatmul.mubr.bf16.gmra.mrb[0].mxu0 %v547
    %v929 = vpop.f32.mrb[0].mxu0
    %v930 = vadd.f32 %v893, %v929
    %v931 = vpop.f32.mrb[0].mxu0
    %v932 = vpop.f32.mrb[0].mxu0
    %v933 = vadd.f32 %v893, %v932
    %v934 = vpop.f32.mrb[0].mxu0
    %935 = vdwg.mxu0
    %s936 = scalar_lea.vmem %s23, 32
    %v937 = vld [vmem:[%s936] sm:$0xff]
    %v938 = vld [vmem:[%s936 + $0x8] sm:$0xff]
    %v939 = vld [vmem:[%s936 + $0x10] sm:$0xff]
    %v940 = vld [vmem:[%s936 + $0x18] sm:$0xff]
    %v941 = vpack.c.bf16 %v938, %v937
    %v942 = vpack.c.bf16 %v940, %v939
    %s943 = scalar_lea.vmem %s29, 1
    %v944 = vld [vmem:[%s943] sm:$0x1]
    %v946 = vlaneseq
    %v947 = vshrl.u32 %v946, 7
    %v948 = vsub.s32 0, %v947
    %v949 = vrot.slane %v944, %v948
    %951 = vmatprep.subr.bf16.mxu0 0
    %952 = vmatpush1.bf16.msra.mxu0 %v941
    %953 = vmatprep.subr.bf16.mxu0 0
    %954 = vmatpush1.bf16.msra.mxu0 %v942
    %955 = vmatprep.subr.bf16.mxu0 0
    %956 = vmatpush1.bf16.msra.mxu0 0
    %957 = vmatprep.subr.bf16.mxu0 0
    %958 = vmatpush1.bf16.msra.mxu0 0
    %959 = vmatprep.subr.bf16.mxu0 0
    %960 = vmatpush1.bf16.msra.mxu0 0
    %961 = vmatprep.subr.bf16.mxu0 0
    %962 = vmatpush1.bf16.msra.mxu0 0
    %963 = vmatprep.subr.bf16.mxu0 0
    %964 = vmatpush1.bf16.msra.mxu0 0
    %965 = vmatprep.subr.bf16.mxu0 0
    %966 = vmatpush1.bf16.msra.mxu0 0
    %967 = vmatprep.subr.bf16.mxu0 0
    %968 = vmatpush1.bf16.msra.mxu0 0
    %969 = vmatprep.subr.bf16.mxu0 0
    %970 = vmatpush1.bf16.msra.mxu0 0
    %971 = vmatprep.subr.bf16.mxu0 0
    %972 = vmatpush1.bf16.msra.mxu0 0
    %973 = vmatprep.subr.bf16.mxu0 0
    %974 = vmatpush1.bf16.msra.mxu0 0
    %975 = vmatprep.subr.bf16.mxu0 0
    %976 = vmatpush1.bf16.msra.mxu0 0
    %977 = vmatprep.subr.bf16.mxu0 0
    %978 = vmatpush1.bf16.msra.mxu0 0
    %979 = vmatprep.subr.bf16.mxu0 0
    %980 = vmatpush1.bf16.msra.mxu0 0
    %981 = vmatprep.subr.bf16.mxu0 0
    %982 = vmatpush1.bf16.msra.mxu0 0
    %983 = vmatprep.mubr.bf16.mxu0 0
    %984 = vmatmul.mubr.bf16.gmra.mrb[0].mxu0 %v547
    %v985 = vpop.f32.mrb[0].mxu0
    %v986 = vadd.f32 %v949, %v985
    %v987 = vpop.f32.mrb[0].mxu0
    %v988 = vpop.f32.mrb[0].mxu0
    %v989 = vadd.f32 %v949, %v988
    %v990 = vpop.f32.mrb[0].mxu0
    %991 = vdwg.mxu0
    %s992 = scalar_lea.vmem %s25, 32
    %v993 = vld [vmem:[%s992] sm:$0xff]
    %v994 = vld [vmem:[%s992 + $0x8] sm:$0xff]
    %v995 = vld [vmem:[%s992 + $0x10] sm:$0xff]
    %v996 = vld [vmem:[%s992 + $0x18] sm:$0xff]
    %v997 = vpack.c.bf16 %v994, %v993
    %v998 = vpack.c.bf16 %v996, %v995
    %s999 = scalar_lea.vmem %s31, 1
    %v1000 = vld [vmem:[%s999] sm:$0x1]
    %v1002 = vlaneseq
    %v1003 = vshrl.u32 %v1002, 7
    %v1004 = vsub.s32 0, %v1003
    %v1005 = vrot.slane %v1000, %v1004
    %1007 = vmatprep.subr.bf16.mxu0 0
    %1008 = vmatpush1.bf16.msra.mxu0 %v997
    %1009 = vmatprep.subr.bf16.mxu0 0
    %1010 = vmatpush1.bf16.msra.mxu0 %v998
    %1011 = vmatprep.subr.bf16.mxu0 0
    %1012 = vmatpush1.bf16.msra.mxu0 0
    %1013 = vmatprep.subr.bf16.mxu0 0
    %1014 = vmatpush1.bf16.msra.mxu0 0
    %1015 = vmatprep.subr.bf16.mxu0 0
    %1016 = vmatpush1.bf16.msra.mxu0 0
    %1017 = vmatprep.subr.bf16.mxu0 0
    %1018 = vmatpush1.bf16.msra.mxu0 0
    %1019 = vmatprep.subr.bf16.mxu0 0
    %1020 = vmatpush1.bf16.msra.mxu0 0
    %1021 = vmatprep.subr.bf16.mxu0 0
    %1022 = vmatpush1.bf16.msra.mxu0 0
    %1023 = vmatprep.subr.bf16.mxu0 0
    %1024 = vmatpush1.bf16.msra.mxu0 0
    %1025 = vmatprep.subr.bf16.mxu0 0
    %1026 = vmatpush1.bf16.msra.mxu0 0
    %1027 = vmatprep.subr.bf16.mxu0 0
    %1028 = vmatpush1.bf16.msra.mxu0 0
    %1029 = vmatprep.subr.bf16.mxu0 0
    %1030 = vmatpush1.bf16.msra.mxu0 0
    %1031 = vmatprep.subr.bf16.mxu0 0
    %1032 = vmatpush1.bf16.msra.mxu0 0
    %1033 = vmatprep.subr.bf16.mxu0 0
    %1034 = vmatpush1.bf16.msra.mxu0 0
    %1035 = vmatprep.subr.bf16.mxu0 0
    %1036 = vmatpush1.bf16.msra.mxu0 0
    %1037 = vmatprep.subr.bf16.mxu0 0
    %1038 = vmatpush1.bf16.msra.mxu0 0
    %1039 = vmatprep.mubr.bf16.mxu0 0
    %1040 = vmatmul.mubr.bf16.gmra.mrb[0].mxu0 %v547
    %v1041 = vpop.f32.mrb[0].mxu0
    %v1042 = vadd.f32 %v1005, %v1041
    %v1043 = vpop.f32.mrb[0].mxu0
    %v1044 = vpop.f32.mrb[0].mxu0
    %v1045 = vadd.f32 %v1005, %v1044
    %v1046 = vpop.f32.mrb[0].mxu0
    %1047 = vdwg.mxu0
    %v1048 = vpack.c.bf16 %v933, %v930
    %v1049 = vpack.c.bf16 %v989, %v986
    %v1051 = vsel %vm700, %v1048, 0
    %v1054 = vsel %vm700, %v1049, 0
    %1056 = vmatprep.subr.bf16.mxu0 0
    %1057 = vmatpush1.bf16.xpose.msra.mxu0 %v1054
    %1058 = vmatprep.subr.bf16.mxu0 0
    %1059 = vmatpush1.bf16.xpose.msra.mxu0 0
    %1060 = vmatprep.subr.bf16.mxu0 0
    %1061 = vmatpush1.bf16.xpose.msra.mxu0 0
    %1062 = vmatprep.subr.bf16.mxu0 0
    %1063 = vmatpush1.bf16.xpose.msra.mxu0 0
    %1064 = vmatprep.subr.bf16.mxu0 0
    %1065 = vmatpush1.bf16.xpose.msra.mxu0 0
    %1066 = vmatprep.subr.bf16.mxu0 0
    %1067 = vmatpush1.bf16.xpose.msra.mxu0 0
    %1068 = vmatprep.subr.bf16.mxu0 0
    %1069 = vmatpush1.bf16.xpose.msra.mxu0 0
    %1070 = vmatprep.subr.bf16.mxu0 0
    %1071 = vmatpush1.bf16.xpose.msra.mxu0 0
    %1072 = vmatprep.subr.bf16.mxu0 0
    %1073 = vmatpush1.bf16.xpose.msra.mxu0 0
    %1074 = vmatprep.subr.bf16.mxu0 0
    %1075 = vmatpush1.bf16.xpose.msra.mxu0 0
    %1076 = vmatprep.subr.bf16.mxu0 0
    %1077 = vmatpush1.bf16.xpose.msra.mxu0 0
    %1078 = vmatprep.subr.bf16.mxu0 0
    %1079 = vmatpush1.bf16.xpose.msra.mxu0 0
    %1080 = vmatprep.subr.bf16.mxu0 0
    %1081 = vmatpush1.bf16.xpose.msra.mxu0 0
    %1082 = vmatprep.subr.bf16.mxu0 0
    %1083 = vmatpush1.bf16.xpose.msra.mxu0 0
    %1084 = vmatprep.subr.bf16.mxu0 0
    %1085 = vmatpush1.bf16.xpose.msra.mxu0 0
    %1086 = vmatprep.subr.bf16.mxu0 0
    %1087 = vmatpush1.bf16.xpose.msra.mxu0 0
    %1088 = vmatprep.mubr.bf16.mxu0 0
    %1089 = vmatmul.mubr.bf16.gmra.mrb[0].mxu0 %v1051
    %v1090 = vpop.f32.mrb[0].mxu0
    %v1091 = vadd.f32 0.0, %v1090
    %v1092 = vpop.f32.mrb[0].mxu0
    %v1093 = vpop.f32.mrb[0].mxu0
    %v1094 = vadd.f32 0.0, %v1093
    %v1095 = vpop.f32.mrb[0].mxu0
    %1096 = vdwg.mxu0
    %v1097 = vmul.f32 %v1091, 0.35355338
    %v1098 = vmul.f32 %v1094, 0.35355338
    %v1099 = vsel %vm529, %v1097, -1e+09
    %v1100 = vsel %vm530, %v1098, -1e+09
    %v1101 = vsel %vm752, %v1099, -inf
    %1102 = vmax.xlane.f32.xlu0 %v1101
    %v1103 = vpop.xlane.xlu0 %1102
    %v1104 = vsel %vm752, %v1100, -inf
    %1105 = vmax.xlane.f32.xlu0 %v1104
    %v1106 = vpop.xlane.xlu0 %1105
    %v1107 = vsub.f32 %v1099, %v1103
    %v1108 = vsub.f32 %v1100, %v1106
    %v1109 = vmul.f32 %v1107, 1.442695
    %v1110 = vpow.pop %v1109
    %v1111 = vmul.f32 %v1108, 1.442695
    %v1112 = vpow.pop %v1111
    %v1113 = vsel %vm752, %v1110, 0.0
    %1114 = vadd.xlane.f32.xlu0 %v1113
    %v1115 = vpop.xlane.xlu0 %1114
    %v1116 = vsel %vm752, %v1112, 0.0
    %1117 = vadd.xlane.f32.xlu0 %v1116
    %v1118 = vpop.xlane.xlu0 %1117
    %v1119 = vrcp.pop %v1115
    %v1120 = vrcp.pop %v1118
    %v1121 = vmul.f32 %v1110, %v1119
    %v1122 = vmul.f32 %v1112, %v1120
    %v1123 = vpack.c.bf16 %v1122, %v1121
    %v1124 = vpack.c.bf16 %v1045, %v1042
    %v1126 = vsel %vm752, %v1123, 0
    %1128 = vmatprep.subr.bf16.mxu0 0
    %1129 = vmatpush1.bf16.msra.mxu0 %v1124
    %1130 = vmatprep.subr.bf16.mxu0 0
    %1131 = vmatpush1.bf16.msra.mxu0 0
    %1132 = vmatprep.subr.bf16.mxu0 0
    %1133 = vmatpush1.bf16.msra.mxu0 0
    %1134 = vmatprep.subr.bf16.mxu0 0
    %1135 = vmatpush1.bf16.msra.mxu0 0
    %1136 = vmatprep.subr.bf16.mxu0 0
    %1137 = vmatpush1.bf16.msra.mxu0 0
    %1138 = vmatprep.subr.bf16.mxu0 0
    %1139 = vmatpush1.bf16.msra.mxu0 0
    %1140 = vmatprep.subr.bf16.mxu0 0
    %1141 = vmatpush1.bf16.msra.mxu0 0
    %1142 = vmatprep.subr.bf16.mxu0 0
    %1143 = vmatpush1.bf16.msra.mxu0 0
    %1144 = vmatprep.subr.bf16.mxu0 0
    %1145 = vmatpush1.bf16.msra.mxu0 0
    %1146 = vmatprep.subr.bf16.mxu0 0
    %1147 = vmatpush1.bf16.msra.mxu0 0
    %1148 = vmatprep.subr.bf16.mxu0 0
    %1149 = vmatpush1.bf16.msra.mxu0 0
    %1150 = vmatprep.subr.bf16.mxu0 0
    %1151 = vmatpush1.bf16.msra.mxu0 0
    %1152 = vmatprep.subr.bf16.mxu0 0
    %1153 = vmatpush1.bf16.msra.mxu0 0
    %1154 = vmatprep.subr.bf16.mxu0 0
    %1155 = vmatpush1.bf16.msra.mxu0 0
    %1156 = vmatprep.subr.bf16.mxu0 0
    %1157 = vmatpush1.bf16.msra.mxu0 0
    %1158 = vmatprep.subr.bf16.mxu0 0
    %1159 = vmatpush1.bf16.msra.mxu0 0
    %1160 = vmatprep.mubr.bf16.mxu0 0
    %1161 = vmatmul.mubr.bf16.gmra.mrb[0].mxu0 %v1126
    %v1162 = vpop.f32.mrb[0].mxu0
    %v1163 = vadd.f32 0.0, %v1162
    %v1164 = vpop.f32.mrb[0].mxu0
    %v1165 = vpop.f32.mrb[0].mxu0
    %v1166 = vadd.f32 0.0, %v1165
    %v1167 = vpop.f32.mrb[0].mxu0
    %1168 = vdwg.mxu0
    %s1169 = scalar_lea.vmem %s33, 8
    %v1170 = vld [vmem:[%s1169] sm:$0xff]
    %v1171 = vpack.c.bf16 %v1166, %v1163
    %v1172 = vpack.c.bf16 %v1170, %v1170
    %v1174 = vsel %vm700, %v1171, 0
    %v1177 = vsel %vm827, %v1172, 0
    %1179 = vmatprep.subr.bf16.mxu0 0
    %1180 = vmatpush1.bf16.msra.mxu0 %v1177
    %1181 = vmatprep.subr.bf16.mxu0 0
    %1182 = vmatpush1.bf16.msra.mxu0 0
    %1183 = vmatprep.subr.bf16.mxu0 0
    %1184 = vmatpush1.bf16.msra.mxu0 0
    %1185 = vmatprep.subr.bf16.mxu0 0
    %1186 = vmatpush1.bf16.msra.mxu0 0
    %1187 = vmatprep.subr.bf16.mxu0 0
    %1188 = vmatpush1.bf16.msra.mxu0 0
    %1189 = vmatprep.subr.bf16.mxu0 0
    %1190 = vmatpush1.bf16.msra.mxu0 0
    %1191 = vmatprep.subr.bf16.mxu0 0
    %1192 = vmatpush1.bf16.msra.mxu0 0
    %1193 = vmatprep.subr.bf16.mxu0 0
    %1194 = vmatpush1.bf16.msra.mxu0 0
    %1195 = vmatprep.subr.bf16.mxu0 0
    %1196 = vmatpush1.bf16.msra.mxu0 0
    %1197 = vmatprep.subr.bf16.mxu0 0
    %1198 = vmatpush1.bf16.msra.mxu0 0
    %1199 = vmatprep.subr.bf16.mxu0 0
    %1200 = vmatpush1.bf16.msra.mxu0 0
    %1201 = vmatprep.subr.bf16.mxu0 0
    %1202 = vmatpush1.bf16.msra.mxu0 0
    %1203 = vmatprep.subr.bf16.mxu0 0
    %1204 = vmatpush1.bf16.msra.mxu0 0
    %1205 = vmatprep.subr.bf16.mxu0 0
    %1206 = vmatpush1.bf16.msra.mxu0 0
    %1207 = vmatprep.subr.bf16.mxu0 0
    %1208 = vmatpush1.bf16.msra.mxu0 0
    %1209 = vmatprep.subr.bf16.mxu0 0
    %1210 = vmatpush1.bf16.msra.mxu0 0
    %1211 = vmatprep.mubr.bf16.mxu0 0
    %1212 = vmatmul.mubr.bf16.gmra.mrb[0].mxu0 %v1174
    %v1213 = vpop.f32.mrb[0].mxu0
    %v1214 = vadd.f32 0.0, %v1213
    %v1215 = vpop.f32.mrb[0].mxu0
    %v1216 = vpop.f32.mrb[0].mxu0
    %v1217 = vadd.f32 0.0, %v1216
    %v1218 = vpop.f32.mrb[0].mxu0
    %1219 = vdwg.mxu0
    %v1220 = vadd.f32 %v878, %v1214
    %v1221 = vadd.f32 %v879, %v1217
    %s1222 = scalar_lea.vmem %s21, 64
    %v1223 = vld [vmem:[%s1222] sm:$0xff]
    %v1224 = vld [vmem:[%s1222 + $0x8] sm:$0xff]
    %v1225 = vld [vmem:[%s1222 + $0x10] sm:$0xff]
    %v1226 = vld [vmem:[%s1222 + $0x18] sm:$0xff]
    %v1227 = vpack.c.bf16 %v1224, %v1223
    %v1228 = vpack.c.bf16 %v1226, %v1225
    %s1229 = scalar_lea.vmem %s27, 2
    %v1230 = vld [vmem:[%s1229] sm:$0x1]
    %v1232 = vlaneseq
    %v1233 = vshrl.u32 %v1232, 7
    %v1234 = vsub.s32 0, %v1233
    %v1235 = vrot.slane %v1230, %v1234
    %1237 = vmatprep.subr.bf16.mxu0 0
    %1238 = vmatpush1.bf16.msra.mxu0 %v1227
    %1239 = vmatprep.subr.bf16.mxu0 0
    %1240 = vmatpush1.bf16.msra.mxu0 %v1228
    %1241 = vmatprep.subr.bf16.mxu0 0
    %1242 = vmatpush1.bf16.msra.mxu0 0
    %1243 = vmatprep.subr.bf16.mxu0 0
    %1244 = vmatpush1.bf16.msra.mxu0 0
    %1245 = vmatprep.subr.bf16.mxu0 0
    %1246 = vmatpush1.bf16.msra.mxu0 0
    %1247 = vmatprep.subr.bf16.mxu0 0
    %1248 = vmatpush1.bf16.msra.mxu0 0
    %1249 = vmatprep.subr.bf16.mxu0 0
    %1250 = vmatpush1.bf16.msra.mxu0 0
    %1251 = vmatprep.subr.bf16.mxu0 0
    %1252 = vmatpush1.bf16.msra.mxu0 0
    %1253 = vmatprep.subr.bf16.mxu0 0
    %1254 = vmatpush1.bf16.msra.mxu0 0
    %1255 = vmatprep.subr.bf16.mxu0 0
    %1256 = vmatpush1.bf16.msra.mxu0 0
    %1257 = vmatprep.subr.bf16.mxu0 0
    %1258 = vmatpush1.bf16.msra.mxu0 0
    %1259 = vmatprep.subr.bf16.mxu0 0
    %1260 = vmatpush1.bf16.msra.mxu0 0
    %1261 = vmatprep.subr.bf16.mxu0 0
    %1262 = vmatpush1.bf16.msra.mxu0 0
    %1263 = vmatprep.subr.bf16.mxu0 0
    %1264 = vmatpush1.bf16.msra.mxu0 0
    %1265 = vmatprep.subr.bf16.mxu0 0
    %1266 = vmatpush1.bf16.msra.mxu0 0
    %1267 = vmatprep.subr.bf16.mxu0 0
    %1268 = vmatpush1.bf16.msra.mxu0 0
    %1269 = vmatprep.mubr.bf16.mxu0 0
    %1270 = vmatmul.mubr.bf16.gmra.mrb[0].mxu0 %v547
    %v1271 = vpop.f32.mrb[0].mxu0
    %v1272 = vadd.f32 %v1235, %v1271
    %v1273 = vpop.f32.mrb[0].mxu0
    %v1274 = vpop.f32.mrb[0].mxu0
    %v1275 = vadd.f32 %v1235, %v1274
    %v1276 = vpop.f32.mrb[0].mxu0
    %1277 = vdwg.mxu0
    %s1278 = scalar_lea.vmem %s23, 64
    %v1279 = vld [vmem:[%s1278] sm:$0xff]
    %v1280 = vld [vmem:[%s1278 + $0x8] sm:$0xff]
    %v1281 = vld [vmem:[%s1278 + $0x10] sm:$0xff]
    %v1282 = vld [vmem:[%s1278 + $0x18] sm:$0xff]
    %v1283 = vpack.c.bf16 %v1280, %v1279
    %v1284 = vpack.c.bf16 %v1282, %v1281
    %s1285 = scalar_lea.vmem %s29, 2
    %v1286 = vld [vmem:[%s1285] sm:$0x1]
    %v1288 = vlaneseq
    %v1289 = vshrl.u32 %v1288, 7
    %v1290 = vsub.s32 0, %v1289
    %v1291 = vrot.slane %v1286, %v1290
    %1293 = vmatprep.subr.bf16.mxu0 0
    %1294 = vmatpush1.bf16.msra.mxu0 %v1283
    %1295 = vmatprep.subr.bf16.mxu0 0
    %1296 = vmatpush1.bf16.msra.mxu0 %v1284
    %1297 = vmatprep.subr.bf16.mxu0 0
    %1298 = vmatpush1.bf16.msra.mxu0 0
    %1299 = vmatprep.subr.bf16.mxu0 0
    %1300 = vmatpush1.bf16.msra.mxu0 0
    %1301 = vmatprep.subr.bf16.mxu0 0
    %1302 = vmatpush1.bf16.msra.mxu0 0
    %1303 = vmatprep.subr.bf16.mxu0 0
    %1304 = vmatpush1.bf16.msra.mxu0 0
    %1305 = vmatprep.subr.bf16.mxu0 0
    %1306 = vmatpush1.bf16.msra.mxu0 0
    %1307 = vmatprep.subr.bf16.mxu0 0
    %1308 = vmatpush1.bf16.msra.mxu0 0
    %1309 = vmatprep.subr.bf16.mxu0 0
    %1310 = vmatpush1.bf16.msra.mxu0 0
    %1311 = vmatprep.subr.bf16.mxu0 0
    %1312 = vmatpush1.bf16.msra.mxu0 0
    %1313 = vmatprep.subr.bf16.mxu0 0
    %1314 = vmatpush1.bf16.msra.mxu0 0
    %1315 = vmatprep.subr.bf16.mxu0 0
    %1316 = vmatpush1.bf16.msra.mxu0 0
    %1317 = vmatprep.subr.bf16.mxu0 0
    %1318 = vmatpush1.bf16.msra.mxu0 0
    %1319 = vmatprep.subr.bf16.mxu0 0
    %1320 = vmatpush1.bf16.msra.mxu0 0
    %1321 = vmatprep.subr.bf16.mxu0 0
    %1322 = vmatpush1.bf16.msra.mxu0 0
    %1323 = vmatprep.subr.bf16.mxu0 0
    %1324 = vmatpush1.bf16.msra.mxu0 0
    %1325 = vmatprep.mubr.bf16.mxu0 0
    %1326 = vmatmul.mubr.bf16.gmra.mrb[0].mxu0 %v547
    %v1327 = vpop.f32.mrb[0].mxu0
    %v1328 = vadd.f32 %v1291, %v1327
    %v1329 = vpop.f32.mrb[0].mxu0
    %v1330 = vpop.f32.mrb[0].mxu0
    %v1331 = vadd.f32 %v1291, %v1330
    %v1332 = vpop.f32.mrb[0].mxu0
    %1333 = vdwg.mxu0
    %s1334 = scalar_lea.vmem %s25, 64
    %v1335 = vld [vmem:[%s1334] sm:$0xff]
    %v1336 = vld [vmem:[%s1334 + $0x8] sm:$0xff]
    %v1337 = vld [vmem:[%s1334 + $0x10] sm:$0xff]
    %v1338 = vld [vmem:[%s1334 + $0x18] sm:$0xff]
    %v1339 = vpack.c.bf16 %v1336, %v1335
    %v1340 = vpack.c.bf16 %v1338, %v1337
    %s1341 = scalar_lea.vmem %s31, 2
    %v1342 = vld [vmem:[%s1341] sm:$0x1]
    %v1344 = vlaneseq
    %v1345 = vshrl.u32 %v1344, 7
    %v1346 = vsub.s32 0, %v1345
    %v1347 = vrot.slane %v1342, %v1346
    %1349 = vmatprep.subr.bf16.mxu0 0
    %1350 = vmatpush1.bf16.msra.mxu0 %v1339
    %1351 = vmatprep.subr.bf16.mxu0 0
    %1352 = vmatpush1.bf16.msra.mxu0 %v1340
    %1353 = vmatprep.subr.bf16.mxu0 0
    %1354 = vmatpush1.bf16.msra.mxu0 0
    %1355 = vmatprep.subr.bf16.mxu0 0
    %1356 = vmatpush1.bf16.msra.mxu0 0
    %1357 = vmatprep.subr.bf16.mxu0 0
    %1358 = vmatpush1.bf16.msra.mxu0 0
    %1359 = vmatprep.subr.bf16.mxu0 0
    %1360 = vmatpush1.bf16.msra.mxu0 0
    %1361 = vmatprep.subr.bf16.mxu0 0
    %1362 = vmatpush1.bf16.msra.mxu0 0
    %1363 = vmatprep.subr.bf16.mxu0 0
    %1364 = vmatpush1.bf16.msra.mxu0 0
    %1365 = vmatprep.subr.bf16.mxu0 0
    %1366 = vmatpush1.bf16.msra.mxu0 0
    %1367 = vmatprep.subr.bf16.mxu0 0
    %1368 = vmatpush1.bf16.msra.mxu0 0
    %1369 = vmatprep.subr.bf16.mxu0 0
    %1370 = vmatpush1.bf16.msra.mxu0 0
    %1371 = vmatprep.subr.bf16.mxu0 0
    %1372 = vmatpush1.bf16.msra.mxu0 0
    %1373 = vmatprep.subr.bf16.mxu0 0
    %1374 = vmatpush1.bf16.msra.mxu0 0
    %1375 = vmatprep.subr.bf16.mxu0 0
    %1376 = vmatpush1.bf16.msra.mxu0 0
    %1377 = vmatprep.subr.bf16.mxu0 0
    %1378 = vmatpush1.bf16.msra.mxu0 0
    %1379 = vmatprep.subr.bf16.mxu0 0
    %1380 = vmatpush1.bf16.msra.mxu0 0
    %1381 = vmatprep.mubr.bf16.mxu0 0
    %1382 = vmatmul.mubr.bf16.gmra.mrb[0].mxu0 %v547
    %v1383 = vpop.f32.mrb[0].mxu0
    %v1384 = vadd.f32 %v1347, %v1383
    %v1385 = vpop.f32.mrb[0].mxu0
    %v1386 = vpop.f32.mrb[0].mxu0
    %v1387 = vadd.f32 %v1347, %v1386
    %v1388 = vpop.f32.mrb[0].mxu0
    %1389 = vdwg.mxu0
    %v1390 = vpack.c.bf16 %v1275, %v1272
    %v1391 = vpack.c.bf16 %v1331, %v1328
    %v1393 = vsel %vm700, %v1390, 0
    %v1396 = vsel %vm700, %v1391, 0
    %1398 = vmatprep.subr.bf16.mxu0 0
    %1399 = vmatpush1.bf16.xpose.msra.mxu0 %v1396
    %1400 = vmatprep.subr.bf16.mxu0 0
    %1401 = vmatpush1.bf16.xpose.msra.mxu0 0
    %1402 = vmatprep.subr.bf16.mxu0 0
    %1403 = vmatpush1.bf16.xpose.msra.mxu0 0
    %1404 = vmatprep.subr.bf16.mxu0 0
    %1405 = vmatpush1.bf16.xpose.msra.mxu0 0
    %1406 = vmatprep.subr.bf16.mxu0 0
    %1407 = vmatpush1.bf16.xpose.msra.mxu0 0
    %1408 = vmatprep.subr.bf16.mxu0 0
    %1409 = vmatpush1.bf16.xpose.msra.mxu0 0
    %1410 = vmatprep.subr.bf16.mxu0 0
    %1411 = vmatpush1.bf16.xpose.msra.mxu0 0
    %1412 = vmatprep.subr.bf16.mxu0 0
    %1413 = vmatpush1.bf16.xpose.msra.mxu0 0
    %1414 = vmatprep.subr.bf16.mxu0 0
    %1415 = vmatpush1.bf16.xpose.msra.mxu0 0
    %1416 = vmatprep.subr.bf16.mxu0 0
    %1417 = vmatpush1.bf16.xpose.msra.mxu0 0
    %1418 = vmatprep.subr.bf16.mxu0 0
    %1419 = vmatpush1.bf16.xpose.msra.mxu0 0
    %1420 = vmatprep.subr.bf16.mxu0 0
    %1421 = vmatpush1.bf16.xpose.msra.mxu0 0
    %1422 = vmatprep.subr.bf16.mxu0 0
    %1423 = vmatpush1.bf16.xpose.msra.mxu0 0
    %1424 = vmatprep.subr.bf16.mxu0 0
    %1425 = vmatpush1.bf16.xpose.msra.mxu0 0
    %1426 = vmatprep.subr.bf16.mxu0 0
    %1427 = vmatpush1.bf16.xpose.msra.mxu0 0
    %1428 = vmatprep.subr.bf16.mxu0 0
    %1429 = vmatpush1.bf16.xpose.msra.mxu0 0
    %1430 = vmatprep.mubr.bf16.mxu0 0
    %1431 = vmatmul.mubr.bf16.gmra.mrb[0].mxu0 %v1393
    %v1432 = vpop.f32.mrb[0].mxu0
    %v1433 = vadd.f32 0.0, %v1432
    %v1434 = vpop.f32.mrb[0].mxu0
    %v1435 = vpop.f32.mrb[0].mxu0
    %v1436 = vadd.f32 0.0, %v1435
    %v1437 = vpop.f32.mrb[0].mxu0
    %1438 = vdwg.mxu0
    %v1439 = vmul.f32 %v1433, 0.35355338
    %v1440 = vmul.f32 %v1436, 0.35355338
    %v1441 = vsel %vm529, %v1439, -1e+09
    %v1442 = vsel %vm530, %v1440, -1e+09
    %v1443 = vsel %vm752, %v1441, -inf
    %1444 = vmax.xlane.f32.xlu0 %v1443
    %v1445 = vpop.xlane.xlu0 %1444
    %v1446 = vsel %vm752, %v1442, -inf
    %1447 = vmax.xlane.f32.xlu0 %v1446
    %v1448 = vpop.xlane.xlu0 %1447
    %v1449 = vsub.f32 %v1441, %v1445
    %v1450 = vsub.f32 %v1442, %v1448
    %v1451 = vmul.f32 %v1449, 1.442695
    %v1452 = vpow.pop %v1451
    %v1453 = vmul.f32 %v1450, 1.442695
    %v1454 = vpow.pop %v1453
    %v1455 = vsel %vm752, %v1452, 0.0
    %1456 = vadd.xlane.f32.xlu0 %v1455
    %v1457 = vpop.xlane.xlu0 %1456
    %v1458 = vsel %vm752, %v1454, 0.0
    %1459 = vadd.xlane.f32.xlu0 %v1458
    %v1460 = vpop.xlane.xlu0 %1459
    %v1461 = vrcp.pop %v1457
    %v1462 = vrcp.pop %v1460
    %v1463 = vmul.f32 %v1452, %v1461
    %v1464 = vmul.f32 %v1454, %v1462
    %v1465 = vpack.c.bf16 %v1464, %v1463
    %v1466 = vpack.c.bf16 %v1387, %v1384
    %v1468 = vsel %vm752, %v1465, 0
    %1470 = vmatprep.subr.bf16.mxu0 0
    %1471 = vmatpush1.bf16.msra.mxu0 %v1466
    %1472 = vmatprep.subr.bf16.mxu0 0
    %1473 = vmatpush1.bf16.msra.mxu0 0
    %1474 = vmatprep.subr.bf16.mxu0 0
    %1475 = vmatpush1.bf16.msra.mxu0 0
    %1476 = vmatprep.subr.bf16.mxu0 0
    %1477 = vmatpush1.bf16.msra.mxu0 0
    %1478 = vmatprep.subr.bf16.mxu0 0
    %1479 = vmatpush1.bf16.msra.mxu0 0
    %1480 = vmatprep.subr.bf16.mxu0 0
    %1481 = vmatpush1.bf16.msra.mxu0 0
    %1482 = vmatprep.subr.bf16.mxu0 0
    %1483 = vmatpush1.bf16.msra.mxu0 0
    %1484 = vmatprep.subr.bf16.mxu0 0
    %1485 = vmatpush1.bf16.msra.mxu0 0
    %1486 = vmatprep.subr.bf16.mxu0 0
    %1487 = vmatpush1.bf16.msra.mxu0 0
    %1488 = vmatprep.subr.bf16.mxu0 0
    %1489 = vmatpush1.bf16.msra.mxu0 0
    %1490 = vmatprep.subr.bf16.mxu0 0
    %1491 = vmatpush1.bf16.msra.mxu0 0
    %1492 = vmatprep.subr.bf16.mxu0 0
    %1493 = vmatpush1.bf16.msra.mxu0 0
    %1494 = vmatprep.subr.bf16.mxu0 0
    %1495 = vmatpush1.bf16.msra.mxu0 0
    %1496 = vmatprep.subr.bf16.mxu0 0
    %1497 = vmatpush1.bf16.msra.mxu0 0
    %1498 = vmatprep.subr.bf16.mxu0 0
    %1499 = vmatpush1.bf16.msra.mxu0 0
    %1500 = vmatprep.subr.bf16.mxu0 0
    %1501 = vmatpush1.bf16.msra.mxu0 0
    %1502 = vmatprep.mubr.bf16.mxu0 0
    %1503 = vmatmul.mubr.bf16.gmra.mrb[0].mxu0 %v1468
    %v1504 = vpop.f32.mrb[0].mxu0
    %v1505 = vadd.f32 0.0, %v1504
    %v1506 = vpop.f32.mrb[0].mxu0
    %v1507 = vpop.f32.mrb[0].mxu0
    %v1508 = vadd.f32 0.0, %v1507
    %v1509 = vpop.f32.mrb[0].mxu0
    %1510 = vdwg.mxu0
    %s1511 = scalar_lea.vmem %s33, 16
    %v1512 = vld [vmem:[%s1511] sm:$0xff]
    %v1513 = vpack.c.bf16 %v1508, %v1505
    %v1514 = vpack.c.bf16 %v1512, %v1512
    %v1516 = vsel %vm700, %v1513, 0
    %v1519 = vsel %vm827, %v1514, 0
    %1521 = vmatprep.subr.bf16.mxu0 0
    %1522 = vmatpush1.bf16.msra.mxu0 %v1519
    %1523 = vmatprep.subr.bf16.mxu0 0
    %1524 = vmatpush1.bf16.msra.mxu0 0
    %1525 = vmatprep.subr.bf16.mxu0 0
    %1526 = vmatpush1.bf16.msra.mxu0 0
    %1527 = vmatprep.subr.bf16.mxu0 0
    %1528 = vmatpush1.bf16.msra.mxu0 0
    %1529 = vmatprep.subr.bf16.mxu0 0
    %1530 = vmatpush1.bf16.msra.mxu0 0
    %1531 = vmatprep.subr.bf16.mxu0 0
    %1532 = vmatpush1.bf16.msra.mxu0 0
    %1533 = vmatprep.subr.bf16.mxu0 0
    %1534 = vmatpush1.bf16.msra.mxu0 0
    %1535 = vmatprep.subr.bf16.mxu0 0
    %1536 = vmatpush1.bf16.msra.mxu0 0
    %1537 = vmatprep.subr.bf16.mxu0 0
    %1538 = vmatpush1.bf16.msra.mxu0 0
    %1539 = vmatprep.subr.bf16.mxu0 0
    %1540 = vmatpush1.bf16.msra.mxu0 0
    %1541 = vmatprep.subr.bf16.mxu0 0
    %1542 = vmatpush1.bf16.msra.mxu0 0
    %1543 = vmatprep.subr.bf16.mxu0 0
    %1544 = vmatpush1.bf16.msra.mxu0 0
    %1545 = vmatprep.subr.bf16.mxu0 0
    %1546 = vmatpush1.bf16.msra.mxu0 0
    %1547 = vmatprep.subr.bf16.mxu0 0
    %1548 = vmatpush1.bf16.msra.mxu0 0
    %1549 = vmatprep.subr.bf16.mxu0 0
    %1550 = vmatpush1.bf16.msra.mxu0 0
    %1551 = vmatprep.subr.bf16.mxu0 0
    %1552 = vmatpush1.bf16.msra.mxu0 0
    %1553 = vmatprep.mubr.bf16.mxu0 0
    %1554 = vmatmul.mubr.bf16.gmra.mrb[0].mxu0 %v1516
    %v1555 = vpop.f32.mrb[0].mxu0
    %v1556 = vadd.f32 0.0, %v1555
    %v1557 = vpop.f32.mrb[0].mxu0
    %v1558 = vpop.f32.mrb[0].mxu0
    %v1559 = vadd.f32 0.0, %v1558
    %v1560 = vpop.f32.mrb[0].mxu0
    %1561 = vdwg.mxu0
    %v1562 = vadd.f32 %v1220, %v1556
    %v1563 = vadd.f32 %v1221, %v1559
    %s1564 = scalar_lea.vmem %s21, 96
    %v1565 = vld [vmem:[%s1564] sm:$0xff]
    %v1566 = vld [vmem:[%s1564 + $0x8] sm:$0xff]
    %v1567 = vld [vmem:[%s1564 + $0x10] sm:$0xff]
    %v1568 = vld [vmem:[%s1564 + $0x18] sm:$0xff]
    %v1569 = vpack.c.bf16 %v1566, %v1565
    %v1570 = vpack.c.bf16 %v1568, %v1567
    %s1571 = scalar_lea.vmem %s27, 3
    %v1572 = vld [vmem:[%s1571] sm:$0x1]
    %v1574 = vlaneseq
    %v1575 = vshrl.u32 %v1574, 7
    %v1576 = vsub.s32 0, %v1575
    %v1577 = vrot.slane %v1572, %v1576
    %1579 = vmatprep.subr.bf16.mxu0 0
    %1580 = vmatpush1.bf16.msra.mxu0 %v1569
    %1581 = vmatprep.subr.bf16.mxu0 0
    %1582 = vmatpush1.bf16.msra.mxu0 %v1570
    %1583 = vmatprep.subr.bf16.mxu0 0
    %1584 = vmatpush1.bf16.msra.mxu0 0
    %1585 = vmatprep.subr.bf16.mxu0 0
    %1586 = vmatpush1.bf16.msra.mxu0 0
    %1587 = vmatprep.subr.bf16.mxu0 0
    %1588 = vmatpush1.bf16.msra.mxu0 0
    %1589 = vmatprep.subr.bf16.mxu0 0
    %1590 = vmatpush1.bf16.msra.mxu0 0
    %1591 = vmatprep.subr.bf16.mxu0 0
    %1592 = vmatpush1.bf16.msra.mxu0 0
    %1593 = vmatprep.subr.bf16.mxu0 0
    %1594 = vmatpush1.bf16.msra.mxu0 0
    %1595 = vmatprep.subr.bf16.mxu0 0
    %1596 = vmatpush1.bf16.msra.mxu0 0
    %1597 = vmatprep.subr.bf16.mxu0 0
    %1598 = vmatpush1.bf16.msra.mxu0 0
    %1599 = vmatprep.subr.bf16.mxu0 0
    %1600 = vmatpush1.bf16.msra.mxu0 0
    %1601 = vmatprep.subr.bf16.mxu0 0
    %1602 = vmatpush1.bf16.msra.mxu0 0
    %1603 = vmatprep.subr.bf16.mxu0 0
    %1604 = vmatpush1.bf16.msra.mxu0 0
    %1605 = vmatprep.subr.bf16.mxu0 0
    %1606 = vmatpush1.bf16.msra.mxu0 0
    %1607 = vmatprep.subr.bf16.mxu0 0
    %1608 = vmatpush1.bf16.msra.mxu0 0
    %1609 = vmatprep.subr.bf16.mxu0 0
    %1610 = vmatpush1.bf16.msra.mxu0 0
    %1611 = vmatprep.mubr.bf16.mxu0 0
    %1612 = vmatmul.mubr.bf16.gmra.mrb[0].mxu0 %v547
    %v1613 = vpop.f32.mrb[0].mxu0
    %v1614 = vadd.f32 %v1577, %v1613
    %v1615 = vpop.f32.mrb[0].mxu0
    %v1616 = vpop.f32.mrb[0].mxu0
    %v1617 = vadd.f32 %v1577, %v1616
    %v1618 = vpop.f32.mrb[0].mxu0
    %1619 = vdwg.mxu0
    %s1620 = scalar_lea.vmem %s23, 96
    %v1621 = vld [vmem:[%s1620] sm:$0xff]
    %v1622 = vld [vmem:[%s1620 + $0x8] sm:$0xff]
    %v1623 = vld [vmem:[%s1620 + $0x10] sm:$0xff]
    %v1624 = vld [vmem:[%s1620 + $0x18] sm:$0xff]
    %v1625 = vpack.c.bf16 %v1622, %v1621
    %v1626 = vpack.c.bf16 %v1624, %v1623
    %s1627 = scalar_lea.vmem %s29, 3
    %v1628 = vld [vmem:[%s1627] sm:$0x1]
    %v1630 = vlaneseq
    %v1631 = vshrl.u32 %v1630, 7
    %v1632 = vsub.s32 0, %v1631
    %v1633 = vrot.slane %v1628, %v1632
    %1635 = vmatprep.subr.bf16.mxu0 0
    %1636 = vmatpush1.bf16.msra.mxu0 %v1625
    %1637 = vmatprep.subr.bf16.mxu0 0
    %1638 = vmatpush1.bf16.msra.mxu0 %v1626
    %1639 = vmatprep.subr.bf16.mxu0 0
    %1640 = vmatpush1.bf16.msra.mxu0 0
    %1641 = vmatprep.subr.bf16.mxu0 0
    %1642 = vmatpush1.bf16.msra.mxu0 0
    %1643 = vmatprep.subr.bf16.mxu0 0
    %1644 = vmatpush1.bf16.msra.mxu0 0
    %1645 = vmatprep.subr.bf16.mxu0 0
    %1646 = vmatpush1.bf16.msra.mxu0 0
    %1647 = vmatprep.subr.bf16.mxu0 0
    %1648 = vmatpush1.bf16.msra.mxu0 0
    %1649 = vmatprep.subr.bf16.mxu0 0
    %1650 = vmatpush1.bf16.msra.mxu0 0
    %1651 = vmatprep.subr.bf16.mxu0 0
    %1652 = vmatpush1.bf16.msra.mxu0 0
    %1653 = vmatprep.subr.bf16.mxu0 0
    %1654 = vmatpush1.bf16.msra.mxu0 0
    %1655 = vmatprep.subr.bf16.mxu0 0
    %1656 = vmatpush1.bf16.msra.mxu0 0
    %1657 = vmatprep.subr.bf16.mxu0 0
    %1658 = vmatpush1.bf16.msra.mxu0 0
    %1659 = vmatprep.subr.bf16.mxu0 0
    %1660 = vmatpush1.bf16.msra.mxu0 0
    %1661 = vmatprep.subr.bf16.mxu0 0
    %1662 = vmatpush1.bf16.msra.mxu0 0
    %1663 = vmatprep.subr.bf16.mxu0 0
    %1664 = vmatpush1.bf16.msra.mxu0 0
    %1665 = vmatprep.subr.bf16.mxu0 0
    %1666 = vmatpush1.bf16.msra.mxu0 0
    %1667 = vmatprep.mubr.bf16.mxu0 0
    %1668 = vmatmul.mubr.bf16.gmra.mrb[0].mxu0 %v547
    %v1669 = vpop.f32.mrb[0].mxu0
    %v1670 = vadd.f32 %v1633, %v1669
    %v1671 = vpop.f32.mrb[0].mxu0
    %v1672 = vpop.f32.mrb[0].mxu0
    %v1673 = vadd.f32 %v1633, %v1672
    %v1674 = vpop.f32.mrb[0].mxu0
    %1675 = vdwg.mxu0
    %s1676 = scalar_lea.vmem %s25, 96
    %v1677 = vld [vmem:[%s1676] sm:$0xff]
    %v1678 = vld [vmem:[%s1676 + $0x8] sm:$0xff]
    %v1679 = vld [vmem:[%s1676 + $0x10] sm:$0xff]
    %v1680 = vld [vmem:[%s1676 + $0x18] sm:$0xff]
    %v1681 = vpack.c.bf16 %v1678, %v1677
    %v1682 = vpack.c.bf16 %v1680, %v1679
    %s1683 = scalar_lea.vmem %s31, 3
    %v1684 = vld [vmem:[%s1683] sm:$0x1]
    %v1686 = vlaneseq
    %v1687 = vshrl.u32 %v1686, 7
    %v1688 = vsub.s32 0, %v1687
    %v1689 = vrot.slane %v1684, %v1688
    %1691 = vmatprep.subr.bf16.mxu0 0
    %1692 = vmatpush1.bf16.msra.mxu0 %v1681
    %1693 = vmatprep.subr.bf16.mxu0 0
    %1694 = vmatpush1.bf16.msra.mxu0 %v1682
    %1695 = vmatprep.subr.bf16.mxu0 0
    %1696 = vmatpush1.bf16.msra.mxu0 0
    %1697 = vmatprep.subr.bf16.mxu0 0
    %1698 = vmatpush1.bf16.msra.mxu0 0
    %1699 = vmatprep.subr.bf16.mxu0 0
    %1700 = vmatpush1.bf16.msra.mxu0 0
    %1701 = vmatprep.subr.bf16.mxu0 0
    %1702 = vmatpush1.bf16.msra.mxu0 0
    %1703 = vmatprep.subr.bf16.mxu0 0
    %1704 = vmatpush1.bf16.msra.mxu0 0
    %1705 = vmatprep.subr.bf16.mxu0 0
    %1706 = vmatpush1.bf16.msra.mxu0 0
    %1707 = vmatprep.subr.bf16.mxu0 0
    %1708 = vmatpush1.bf16.msra.mxu0 0
    %1709 = vmatprep.subr.bf16.mxu0 0
    %1710 = vmatpush1.bf16.msra.mxu0 0
    %1711 = vmatprep.subr.bf16.mxu0 0
    %1712 = vmatpush1.bf16.msra.mxu0 0
    %1713 = vmatprep.subr.bf16.mxu0 0
    %1714 = vmatpush1.bf16.msra.mxu0 0
    %1715 = vmatprep.subr.bf16.mxu0 0
    %1716 = vmatpush1.bf16.msra.mxu0 0
    %1717 = vmatprep.subr.bf16.mxu0 0
    %1718 = vmatpush1.bf16.msra.mxu0 0
    %1719 = vmatprep.subr.bf16.mxu0 0
    %1720 = vmatpush1.bf16.msra.mxu0 0
    %1721 = vmatprep.subr.bf16.mxu0 0
    %1722 = vmatpush1.bf16.msra.mxu0 0
    %1723 = vmatprep.mubr.bf16.mxu0 0
    %1724 = vmatmul.mubr.bf16.gmra.mrb[0].mxu0 %v547
    %v1725 = vpop.f32.mrb[0].mxu0
    %v1726 = vadd.f32 %v1689, %v1725
    %v1727 = vpop.f32.mrb[0].mxu0
    %v1728 = vpop.f32.mrb[0].mxu0
    %v1729 = vadd.f32 %v1689, %v1728
    %v1730 = vpop.f32.mrb[0].mxu0
    %1731 = vdwg.mxu0
    %v1732 = vpack.c.bf16 %v1617, %v1614
    %v1733 = vpack.c.bf16 %v1673, %v1670
    %v1735 = vsel %vm700, %v1732, 0
    %v1738 = vsel %vm700, %v1733, 0
    %1740 = vmatprep.subr.bf16.mxu0 0
    %1741 = vmatpush1.bf16.xpose.msra.mxu0 %v1738
    %1742 = vmatprep.subr.bf16.mxu0 0
    %1743 = vmatpush1.bf16.xpose.msra.mxu0 0
    %1744 = vmatprep.subr.bf16.mxu0 0
    %1745 = vmatpush1.bf16.xpose.msra.mxu0 0
    %1746 = vmatprep.subr.bf16.mxu0 0
    %1747 = vmatpush1.bf16.xpose.msra.mxu0 0
    %1748 = vmatprep.subr.bf16.mxu0 0
    %1749 = vmatpush1.bf16.xpose.msra.mxu0 0
    %1750 = vmatprep.subr.bf16.mxu0 0
    %1751 = vmatpush1.bf16.xpose.msra.mxu0 0
    %1752 = vmatprep.subr.bf16.mxu0 0
    %1753 = vmatpush1.bf16.xpose.msra.mxu0 0
    %1754 = vmatprep.subr.bf16.mxu0 0
    %1755 = vmatpush1.bf16.xpose.msra.mxu0 0
    %1756 = vmatprep.subr.bf16.mxu0 0
    %1757 = vmatpush1.bf16.xpose.msra.mxu0 0
    %1758 = vmatprep.subr.bf16.mxu0 0
    %1759 = vmatpush1.bf16.xpose.msra.mxu0 0
    %1760 = vmatprep.subr.bf16.mxu0 0
    %1761 = vmatpush1.bf16.xpose.msra.mxu0 0
    %1762 = vmatprep.subr.bf16.mxu0 0
    %1763 = vmatpush1.bf16.xpose.msra.mxu0 0
    %1764 = vmatprep.subr.bf16.mxu0 0
    %1765 = vmatpush1.bf16.xpose.msra.mxu0 0
    %1766 = vmatprep.subr.bf16.mxu0 0
    %1767 = vmatpush1.bf16.xpose.msra.mxu0 0
    %1768 = vmatprep.subr.bf16.mxu0 0
    %1769 = vmatpush1.bf16.xpose.msra.mxu0 0
    %1770 = vmatprep.subr.bf16.mxu0 0
    %1771 = vmatpush1.bf16.xpose.msra.mxu0 0
    %1772 = vmatprep.mubr.bf16.mxu0 0
    %1773 = vmatmul.mubr.bf16.gmra.mrb[0].mxu0 %v1735
    %v1774 = vpop.f32.mrb[0].mxu0
    %v1775 = vadd.f32 0.0, %v1774
    %v1776 = vpop.f32.mrb[0].mxu0
    %v1777 = vpop.f32.mrb[0].mxu0
    %v1778 = vadd.f32 0.0, %v1777
    %v1779 = vpop.f32.mrb[0].mxu0
    %1780 = vdwg.mxu0
    %v1781 = vmul.f32 %v1775, 0.35355338
    %v1782 = vmul.f32 %v1778, 0.35355338
    %v1783 = vsel %vm529, %v1781, -1e+09
    %v1784 = vsel %vm530, %v1782, -1e+09
    %v1785 = vsel %vm752, %v1783, -inf
    %1786 = vmax.xlane.f32.xlu0 %v1785
    %v1787 = vpop.xlane.xlu0 %1786
    %v1788 = vsel %vm752, %v1784, -inf
    %1789 = vmax.xlane.f32.xlu0 %v1788
    %v1790 = vpop.xlane.xlu0 %1789
    %v1791 = vsub.f32 %v1783, %v1787
    %v1792 = vsub.f32 %v1784, %v1790
    %v1793 = vmul.f32 %v1791, 1.442695
    %v1794 = vpow.pop %v1793
    %v1795 = vmul.f32 %v1792, 1.442695
    %v1796 = vpow.pop %v1795
    %v1797 = vsel %vm752, %v1794, 0.0
    %1798 = vadd.xlane.f32.xlu0 %v1797
    %v1799 = vpop.xlane.xlu0 %1798
    %v1800 = vsel %vm752, %v1796, 0.0
    %1801 = vadd.xlane.f32.xlu0 %v1800
    %v1802 = vpop.xlane.xlu0 %1801
    %v1803 = vrcp.pop %v1799
    %v1804 = vrcp.pop %v1802
    %v1805 = vmul.f32 %v1794, %v1803
    %v1806 = vmul.f32 %v1796, %v1804
    %v1807 = vpack.c.bf16 %v1806, %v1805
    %v1808 = vpack.c.bf16 %v1729, %v1726
    %v1810 = vsel %vm752, %v1807, 0
    %1812 = vmatprep.subr.bf16.mxu0 0
    %1813 = vmatpush1.bf16.msra.mxu0 %v1808
    %1814 = vmatprep.subr.bf16.mxu0 0
    %1815 = vmatpush1.bf16.msra.mxu0 0
    %1816 = vmatprep.subr.bf16.mxu0 0
    %1817 = vmatpush1.bf16.msra.mxu0 0
    %1818 = vmatprep.subr.bf16.mxu0 0
    %1819 = vmatpush1.bf16.msra.mxu0 0
    %1820 = vmatprep.subr.bf16.mxu0 0
    %1821 = vmatpush1.bf16.msra.mxu0 0
    %1822 = vmatprep.subr.bf16.mxu0 0
    %1823 = vmatpush1.bf16.msra.mxu0 0
    %1824 = vmatprep.subr.bf16.mxu0 0
    %1825 = vmatpush1.bf16.msra.mxu0 0
    %1826 = vmatprep.subr.bf16.mxu0 0
    %1827 = vmatpush1.bf16.msra.mxu0 0
    %1828 = vmatprep.subr.bf16.mxu0 0
    %1829 = vmatpush1.bf16.msra.mxu0 0
    %1830 = vmatprep.subr.bf16.mxu0 0
    %1831 = vmatpush1.bf16.msra.mxu0 0
    %1832 = vmatprep.subr.bf16.mxu0 0
    %1833 = vmatpush1.bf16.msra.mxu0 0
    %1834 = vmatprep.subr.bf16.mxu0 0
    %1835 = vmatpush1.bf16.msra.mxu0 0
    %1836 = vmatprep.subr.bf16.mxu0 0
    %1837 = vmatpush1.bf16.msra.mxu0 0
    %1838 = vmatprep.subr.bf16.mxu0 0
    %1839 = vmatpush1.bf16.msra.mxu0 0
    %1840 = vmatprep.subr.bf16.mxu0 0
    %1841 = vmatpush1.bf16.msra.mxu0 0
    %1842 = vmatprep.subr.bf16.mxu0 0
    %1843 = vmatpush1.bf16.msra.mxu0 0
    %1844 = vmatprep.mubr.bf16.mxu0 0
    %1845 = vmatmul.mubr.bf16.gmra.mrb[0].mxu0 %v1810
    %v1846 = vpop.f32.mrb[0].mxu0
    %v1847 = vadd.f32 0.0, %v1846
    %v1848 = vpop.f32.mrb[0].mxu0
    %v1849 = vpop.f32.mrb[0].mxu0
    %v1850 = vadd.f32 0.0, %v1849
    %v1851 = vpop.f32.mrb[0].mxu0
    %1852 = vdwg.mxu0
    %s1853 = scalar_lea.vmem %s33, 24
    %v1854 = vld [vmem:[%s1853] sm:$0xff]
    %v1855 = vpack.c.bf16 %v1850, %v1847
    %v1856 = vpack.c.bf16 %v1854, %v1854
    %v1858 = vsel %vm700, %v1855, 0
    %v1861 = vsel %vm827, %v1856, 0
    %1863 = vmatprep.subr.bf16.mxu0 0
    %1864 = vmatpush1.bf16.msra.mxu0 %v1861
    %1865 = vmatprep.subr.bf16.mxu0 0
    %1866 = vmatpush1.bf16.msra.mxu0 0
    %1867 = vmatprep.subr.bf16.mxu0 0
    %1868 = vmatpush1.bf16.msra.mxu0 0
    %1869 = vmatprep.subr.bf16.mxu0 0
    %1870 = vmatpush1.bf16.msra.mxu0 0
    %1871 = vmatprep.subr.bf16.mxu0 0
    %1872 = vmatpush1.bf16.msra.mxu0 0
    %1873 = vmatprep.subr.bf16.mxu0 0
    %1874 = vmatpush1.bf16.msra.mxu0 0
    %1875 = vmatprep.subr.bf16.mxu0 0
    %1876 = vmatpush1.bf16.msra.mxu0 0
    %1877 = vmatprep.subr.bf16.mxu0 0
    %1878 = vmatpush1.bf16.msra.mxu0 0
    %1879 = vmatprep.subr.bf16.mxu0 0
    %1880 = vmatpush1.bf16.msra.mxu0 0
    %1881 = vmatprep.subr.bf16.mxu0 0
    %1882 = vmatpush1.bf16.msra.mxu0 0
    %1883 = vmatprep.subr.bf16.mxu0 0
    %1884 = vmatpush1.bf16.msra.mxu0 0
    %1885 = vmatprep.subr.bf16.mxu0 0
    %1886 = vmatpush1.bf16.msra.mxu0 0
    %1887 = vmatprep.subr.bf16.mxu0 0
    %1888 = vmatpush1.bf16.msra.mxu0 0
    %1889 = vmatprep.subr.bf16.mxu0 0
    %1890 = vmatpush1.bf16.msra.mxu0 0
    %1891 = vmatprep.subr.bf16.mxu0 0
    %1892 = vmatpush1.bf16.msra.mxu0 0
    %1893 = vmatprep.subr.bf16.mxu0 0
    %1894 = vmatpush1.bf16.msra.mxu0 0
    %1895 = vmatprep.mubr.bf16.mxu0 0
    %1896 = vmatmul.mubr.bf16.gmra.mrb[0].mxu0 %v1858
    %v1897 = vpop.f32.mrb[0].mxu0
    %v1898 = vadd.f32 0.0, %v1897
    %v1899 = vpop.f32.mrb[0].mxu0
    %v1900 = vpop.f32.mrb[0].mxu0
    %v1901 = vadd.f32 0.0, %v1900
    %v1902 = vpop.f32.mrb[0].mxu0
    %1903 = vdwg.mxu0
    %v1904 = vadd.f32 %v1562, %v1898
    %v1905 = vadd.f32 %v1563, %v1901
    %v1906 = vadd.f32 %v482, %v1904
    %v1907 = vadd.f32 %v485, %v1905
    %v1908 = vld [vmem:[%s37] sm:$0x1]
    %v1909 = vld [vmem:[%s39] sm:$0x1]
    %v1910 = vsel %vm313, %v1906, 0.0
    %1911 = vadd.xlane.f32.xlu0 %v1910
    %v1912 = vpop.xlane.xlu0 %1911
    %v1913 = vsel %vm313, %v1907, 0.0
    %1914 = vadd.xlane.f32.xlu0 %v1913
    %v1915 = vpop.xlane.xlu0 %1914
    %v1916 = vrcp.pop 32.0
    %v1917 = vmul.f32 %v1912, %v1916
    %v1918 = vmul.f32 %v1915, %v1916
    %v1919 = vsub.f32 %v1906, %v1917
    %v1920 = vsub.f32 %v1907, %v1918
    %v1921 = vmul.f32 %v1919, %v1919
    %v1922 = vmul.f32 %v1920, %v1920
    %v1923 = vsel %vm313, %v1921, 0.0
    %1924 = vadd.xlane.f32.xlu0 %v1923
    %v1925 = vpop.xlane.xlu0 %1924
    %v1926 = vsel %vm313, %v1922, 0.0
    %1927 = vadd.xlane.f32.xlu0 %v1926
    %v1928 = vpop.xlane.xlu0 %1927
    %v1929 = vmul.f32 %v1925, %v1916
    %v1930 = vmul.f32 %v1928, %v1916
    %v1931 = vadd.f32 %v1929, 1e-05
    %v1932 = vadd.f32 %v1930, 1e-05
    %v1933 = vrsqrt.pop %v1931
    %v1934 = vrsqrt.pop %v1932
    %v1935 = vmul.f32 %v1919, %v1933
    %v1936 = vmul.f32 %v1920, %v1934
    %v1938 = vlaneseq
    %v1939 = vshrl.u32 %v1938, 7
    %v1940 = vsub.s32 0, %v1939
    %v1941 = vrot.slane %v1908, %v1940
    %v1943 = vmul.f32 %v1935, %v1941
    %v1944 = vmul.f32 %v1936, %v1941
    %v1946 = vlaneseq
    %v1947 = vshrl.u32 %v1946, 7
    %v1948 = vsub.s32 0, %v1947
    %v1949 = vrot.slane %v1909, %v1948
    %v1951 = vadd.f32 %v1943, %v1949
    %v1952 = vadd.f32 %v1944, %v1949
    %v1953 = vld [vmem:[%s41] sm:$0xff]
    %v1954 = vld [vmem:[%s41 + $0x8] sm:$0xff]
    %v1955 = vld [vmem:[%s41 + $0x10] sm:$0xff]
    %v1956 = vld [vmem:[%s41 + $0x18] sm:$0xff]
    %v1957 = vpack.c.bf16 %v1952, %v1951
    %v1958 = vpack.c.bf16 %v1954, %v1953
    %v1959 = vpack.c.bf16 %v1956, %v1955
    %v1960 = vld [vmem:[%s43] sm:$0x1]
    %v1962 = vlaneseq
    %v1963 = vshrl.u32 %v1962, 7
    %v1964 = vsub.s32 0, %v1963
    %v1965 = vrot.slane %v1960, %v1964
    %v1968 = vsel %vm313, %v1957, 0
    %1970 = vmatprep.subr.bf16.mxu0 0
    %1971 = vmatpush1.bf16.msra.mxu0 %v1958
    %1972 = vmatprep.subr.bf16.mxu0 0
    %1973 = vmatpush1.bf16.msra.mxu0 %v1959
    %1974 = vmatprep.subr.bf16.mxu0 0
    %1975 = vmatpush1.bf16.msra.mxu0 0
    %1976 = vmatprep.subr.bf16.mxu0 0
    %1977 = vmatpush1.bf16.msra.mxu0 0
    %1978 = vmatprep.subr.bf16.mxu0 0
    %1979 = vmatpush1.bf16.msra.mxu0 0
    %1980 = vmatprep.subr.bf16.mxu0 0
    %1981 = vmatpush1.bf16.msra.mxu0 0
    %1982 = vmatprep.subr.bf16.mxu0 0
    %1983 = vmatpush1.bf16.msra.mxu0 0
    %1984 = vmatprep.subr.bf16.mxu0 0
    %1985 = vmatpush1.bf16.msra.mxu0 0
    %1986 = vmatprep.subr.bf16.mxu0 0
    %1987 = vmatpush1.bf16.msra.mxu0 0
    %1988 = vmatprep.subr.bf16.mxu0 0
    %1989 = vmatpush1.bf16.msra.mxu0 0
    %1990 = vmatprep.subr.bf16.mxu0 0
    %1991 = vmatpush1.bf16.msra.mxu0 0
    %1992 = vmatprep.subr.bf16.mxu0 0
    %1993 = vmatpush1.bf16.msra.mxu0 0
    %1994 = vmatprep.subr.bf16.mxu0 0
    %1995 = vmatpush1.bf16.msra.mxu0 0
    %1996 = vmatprep.subr.bf16.mxu0 0
    %1997 = vmatpush1.bf16.msra.mxu0 0
    %1998 = vmatprep.subr.bf16.mxu0 0
    %1999 = vmatpush1.bf16.msra.mxu0 0
    %2000 = vmatprep.subr.bf16.mxu0 0
    %2001 = vmatpush1.bf16.msra.mxu0 0
    %2002 = vmatprep.mubr.bf16.mxu0 0
    %2003 = vmatmul.mubr.bf16.gmra.mrb[0].mxu0 %v1968
    %v2004 = vpop.f32.mrb[0].mxu0
    %v2005 = vadd.f32 %v1965, %v2004
    %v2006 = vpop.f32.mrb[0].mxu0
    %v2007 = vpop.f32.mrb[0].mxu0
    %v2008 = vadd.f32 %v1965, %v2007
    %v2009 = vpop.f32.mrb[0].mxu0
    %2010 = vdwg.mxu0
    %v2011 = vmax.f32 %v2005, 0.0
    %v2012 = vmax.f32 %v2008, 0.0
    %v2013 = vld [vmem:[%s45] sm:$0xff]
    %v2014 = vld [vmem:[%s45 + $0x8] sm:$0xff]
    %v2015 = vld [vmem:[%s45 + $0x10] sm:$0xff]
    %v2016 = vld [vmem:[%s45 + $0x18] sm:$0xff]
    %v2017 = vld [vmem:[%s45 + $0x20] sm:$0xff]
    %v2018 = vld [vmem:[%s45 + $0x28] sm:$0xff]
    %v2019 = vld [vmem:[%s45 + $0x30] sm:$0xff]
    %v2020 = vld [vmem:[%s45 + $0x38] sm:$0xff]
    %v2021 = vpack.c.bf16 %v2012, %v2011
    %v2022 = vpack.c.bf16 %v2014, %v2013
    %v2023 = vpack.c.bf16 %v2016, %v2015
    %v2024 = vpack.c.bf16 %v2018, %v2017
    %v2025 = vpack.c.bf16 %v2020, %v2019
    %v2026 = vld [vmem:[%s47] sm:$0x1]
    %v2028 = vlaneseq
    %v2029 = vshrl.u32 %v2028, 7
    %v2030 = vsub.s32 0, %v2029
    %v2031 = vrot.slane %v2026, %v2030
    %v2034 = vsel %vm380, %v2021, 0
    %2036 = vmatprep.subr.bf16.mxu0 0
    %2037 = vmatpush1.bf16.msra.mxu0 %v2022
    %2038 = vmatprep.subr.bf16.mxu0 0
    %2039 = vmatpush1.bf16.msra.mxu0 %v2023
    %2040 = vmatprep.subr.bf16.mxu0 0
    %2041 = vmatpush1.bf16.msra.mxu0 %v2024
    %2042 = vmatprep.subr.bf16.mxu0 0
    %2043 = vmatpush1.bf16.msra.mxu0 %v2025
    %2044 = vmatprep.subr.bf16.mxu0 0
    %2045 = vmatpush1.bf16.msra.mxu0 0
    %2046 = vmatprep.subr.bf16.mxu0 0
    %2047 = vmatpush1.bf16.msra.mxu0 0
    %2048 = vmatprep.subr.bf16.mxu0 0
    %2049 = vmatpush1.bf16.msra.mxu0 0
    %2050 = vmatprep.subr.bf16.mxu0 0
    %2051 = vmatpush1.bf16.msra.mxu0 0
    %2052 = vmatprep.subr.bf16.mxu0 0
    %2053 = vmatpush1.bf16.msra.mxu0 0
    %2054 = vmatprep.subr.bf16.mxu0 0
    %2055 = vmatpush1.bf16.msra.mxu0 0
    %2056 = vmatprep.subr.bf16.mxu0 0
    %2057 = vmatpush1.bf16.msra.mxu0 0
    %2058 = vmatprep.subr.bf16.mxu0 0
    %2059 = vmatpush1.bf16.msra.mxu0 0
    %2060 = vmatprep.subr.bf16.mxu0 0
    %2061 = vmatpush1.bf16.msra.mxu0 0
    %2062 = vmatprep.subr.bf16.mxu0 0
    %2063 = vmatpush1.bf16.msra.mxu0 0
    %2064 = vmatprep.subr.bf16.mxu0 0
    %2065 = vmatpush1.bf16.msra.mxu0 0
    %2066 = vmatprep.subr.bf16.mxu0 0
    %2067 = vmatpush1.bf16.msra.mxu0 0
    %2068 = vmatprep.mubr.bf16.mxu0 0
    %2069 = vmatmul.mubr.bf16.gmra.mrb[0].mxu0 %v2034
    %v2070 = vpop.f32.mrb[0].mxu0
    %v2071 = vadd.f32 %v2031, %v2070
    %v2072 = vpop.f32.mrb[0].mxu0
    %v2073 = vpop.f32.mrb[0].mxu0
    %v2074 = vadd.f32 %v2031, %v2073
    %v2075 = vpop.f32.mrb[0].mxu0
    %2076 = vdwg.mxu0
    %v2077 = vadd.f32 %v1951, %v2071
    %v2078 = vadd.f32 %v1952, %v2074
    %v2079 = vld [vmem:[%s49] sm:$0x1]
    %v2080 = vld [vmem:[%s51] sm:$0x1]
    %v2081 = vsel %vm313, %v2077, 0.0
    %2082 = vadd.xlane.f32.xlu0 %v2081
    %v2083 = vpop.xlane.xlu0 %2082
    %v2084 = vsel %vm313, %v2078, 0.0
    %2085 = vadd.xlane.f32.xlu0 %v2084
    %v2086 = vpop.xlane.xlu0 %2085
    %v2087 = vmul.f32 %v2083, %v1916
    %v2088 = vmul.f32 %v2086, %v1916
    %v2089 = vsub.f32 %v2077, %v2087
    %v2090 = vsub.f32 %v2078, %v2088
    %v2091 = vmul.f32 %v2089, %v2089
    %v2092 = vmul.f32 %v2090, %v2090
    %v2093 = vsel %vm313, %v2091, 0.0
    %2094 = vadd.xlane.f32.xlu0 %v2093
    %v2095 = vpop.xlane.xlu0 %2094
    %v2096 = vsel %vm313, %v2092, 0.0
    %2097 = vadd.xlane.f32.xlu0 %v2096
    %v2098 = vpop.xlane.xlu0 %2097
    %v2099 = vmul.f32 %v2095, %v1916
    %v2100 = vmul.f32 %v2098, %v1916
    %v2101 = vadd.f32 %v2099, 1e-05
    %v2102 = vadd.f32 %v2100, 1e-05
    %v2103 = vrsqrt.pop %v2101
    %v2104 = vrsqrt.pop %v2102
    %v2105 = vmul.f32 %v2089, %v2103
    %v2106 = vmul.f32 %v2090, %v2104
    %v2108 = vlaneseq
    %v2109 = vshrl.u32 %v2108, 7
    %v2110 = vsub.s32 0, %v2109
    %v2111 = vrot.slane %v2079, %v2110
    %v2113 = vmul.f32 %v2105, %v2111
    %v2114 = vmul.f32 %v2106, %v2111
    %v2116 = vlaneseq
    %v2117 = vshrl.u32 %v2116, 7
    %v2118 = vsub.s32 0, %v2117
    %v2119 = vrot.slane %v2080, %v2118
    %v2121 = vadd.f32 %v2113, %v2119
    %v2122 = vadd.f32 %v2114, %v2119
    %v2123 = vld [vmem:[%s67] sm:$0x1]
    %v2124 = vld [vmem:[%s53] sm:$0xff]
    %v2125 = vld [vmem:[%s53 + $0x8] sm:$0xff]
    %v2126 = vld [vmem:[%s53 + $0x10] sm:$0xff]
    %v2127 = vld [vmem:[%s53 + $0x18] sm:$0xff]
    %v2128 = vpack.c.bf16 %v2122, %v2121
    %v2129 = vpack.c.bf16 %v2125, %v2124
    %v2130 = vpack.c.bf16 %v2127, %v2126
    %v2131 = vld [vmem:[%s59] sm:$0x1]
    %v2133 = vlaneseq
    %v2134 = vshrl.u32 %v2133, 7
    %v2135 = vsub.s32 0, %v2134
    %v2136 = vrot.slane %v2131, %v2135
    %v2139 = vsel %vm313, %v2128, 0
    %2141 = vmatprep.subr.bf16.mxu0 0
    %2142 = vmatpush1.bf16.msra.mxu0 %v2129
    %2143 = vmatprep.subr.bf16.mxu0 0
    %2144 = vmatpush1.bf16.msra.mxu0 %v2130
    %2145 = vmatprep.subr.bf16.mxu0 0
    %2146 = vmatpush1.bf16.msra.mxu0 0
    %2147 = vmatprep.subr.bf16.mxu0 0
    %2148 = vmatpush1.bf16.msra.mxu0 0
    %2149 = vmatprep.subr.bf16.mxu0 0
    %2150 = vmatpush1.bf16.msra.mxu0 0
    %2151 = vmatprep.subr.bf16.mxu0 0
    %2152 = vmatpush1.bf16.msra.mxu0 0
    %2153 = vmatprep.subr.bf16.mxu0 0
    %2154 = vmatpush1.bf16.msra.mxu0 0
    %2155 = vmatprep.subr.bf16.mxu0 0
    %2156 = vmatpush1.bf16.msra.mxu0 0
    %2157 = vmatprep.subr.bf16.mxu0 0
    %2158 = vmatpush1.bf16.msra.mxu0 0
    %2159 = vmatprep.subr.bf16.mxu0 0
    %2160 = vmatpush1.bf16.msra.mxu0 0
    %2161 = vmatprep.subr.bf16.mxu0 0
    %2162 = vmatpush1.bf16.msra.mxu0 0
    %2163 = vmatprep.subr.bf16.mxu0 0
    %2164 = vmatpush1.bf16.msra.mxu0 0
    %2165 = vmatprep.subr.bf16.mxu0 0
    %2166 = vmatpush1.bf16.msra.mxu0 0
    %2167 = vmatprep.subr.bf16.mxu0 0
    %2168 = vmatpush1.bf16.msra.mxu0 0
    %2169 = vmatprep.subr.bf16.mxu0 0
    %2170 = vmatpush1.bf16.msra.mxu0 0
    %2171 = vmatprep.subr.bf16.mxu0 0
    %2172 = vmatpush1.bf16.msra.mxu0 0
    %2173 = vmatprep.mubr.bf16.mxu0 0
    %2174 = vmatmul.mubr.bf16.gmra.mrb[0].mxu0 %v2139
    %v2175 = vpop.f32.mrb[0].mxu0
    %v2176 = vadd.f32 %v2136, %v2175
    %v2177 = vpop.f32.mrb[0].mxu0
    %v2178 = vpop.f32.mrb[0].mxu0
    %v2179 = vadd.f32 %v2136, %v2178
    %v2180 = vpop.f32.mrb[0].mxu0
    %2181 = vdwg.mxu0
    %v2182 = vld [vmem:[%s55] sm:$0xff]
    %v2183 = vld [vmem:[%s55 + $0x8] sm:$0xff]
    %v2184 = vld [vmem:[%s55 + $0x10] sm:$0xff]
    %v2185 = vld [vmem:[%s55 + $0x18] sm:$0xff]
    %v2186 = vpack.c.bf16 %v2183, %v2182
    %v2187 = vpack.c.bf16 %v2185, %v2184
    %v2188 = vld [vmem:[%s61] sm:$0x1]
    %v2190 = vlaneseq
    %v2191 = vshrl.u32 %v2190, 7
    %v2192 = vsub.s32 0, %v2191
    %v2193 = vrot.slane %v2188, %v2192
    %2195 = vmatprep.subr.bf16.mxu0 0
    %2196 = vmatpush1.bf16.msra.mxu0 %v2186
    %2197 = vmatprep.subr.bf16.mxu0 0
    %2198 = vmatpush1.bf16.msra.mxu0 %v2187
    %2199 = vmatprep.subr.bf16.mxu0 0
    %2200 = vmatpush1.bf16.msra.mxu0 0
    %2201 = vmatprep.subr.bf16.mxu0 0
    %2202 = vmatpush1.bf16.msra.mxu0 0
    %2203 = vmatprep.subr.bf16.mxu0 0
    %2204 = vmatpush1.bf16.msra.mxu0 0
    %2205 = vmatprep.subr.bf16.mxu0 0
    %2206 = vmatpush1.bf16.msra.mxu0 0
    %2207 = vmatprep.subr.bf16.mxu0 0
    %2208 = vmatpush1.bf16.msra.mxu0 0
    %2209 = vmatprep.subr.bf16.mxu0 0
    %2210 = vmatpush1.bf16.msra.mxu0 0
    %2211 = vmatprep.subr.bf16.mxu0 0
    %2212 = vmatpush1.bf16.msra.mxu0 0
    %2213 = vmatprep.subr.bf16.mxu0 0
    %2214 = vmatpush1.bf16.msra.mxu0 0
    %2215 = vmatprep.subr.bf16.mxu0 0
    %2216 = vmatpush1.bf16.msra.mxu0 0
    %2217 = vmatprep.subr.bf16.mxu0 0
    %2218 = vmatpush1.bf16.msra.mxu0 0
    %2219 = vmatprep.subr.bf16.mxu0 0
    %2220 = vmatpush1.bf16.msra.mxu0 0
    %2221 = vmatprep.subr.bf16.mxu0 0
    %2222 = vmatpush1.bf16.msra.mxu0 0
    %2223 = vmatprep.subr.bf16.mxu0 0
    %2224 = vmatpush1.bf16.msra.mxu0 0
    %2225 = vmatprep.subr.bf16.mxu0 0
    %2226 = vmatpush1.bf16.msra.mxu0 0
    %2227 = vmatprep.mubr.bf16.mxu0 0
    %2228 = vmatmul.mubr.bf16.gmra.mrb[0].mxu0 %v2139
    %v2229 = vpop.f32.mrb[0].mxu0
    %v2230 = vadd.f32 %v2193, %v2229
    %v2231 = vpop.f32.mrb[0].mxu0
    %v2232 = vpop.f32.mrb[0].mxu0
    %v2233 = vadd.f32 %v2193, %v2232
    %v2234 = vpop.f32.mrb[0].mxu0
    %2235 = vdwg.mxu0
    %v2236 = vld [vmem:[%s57] sm:$0xff]
    %v2237 = vld [vmem:[%s57 + $0x8] sm:$0xff]
    %v2238 = vld [vmem:[%s57 + $0x10] sm:$0xff]
    %v2239 = vld [vmem:[%s57 + $0x18] sm:$0xff]
    %v2240 = vpack.c.bf16 %v2237, %v2236
    %v2241 = vpack.c.bf16 %v2239, %v2238
    %v2242 = vld [vmem:[%s63] sm:$0x1]
    %v2244 = vlaneseq
    %v2245 = vshrl.u32 %v2244, 7
    %v2246 = vsub.s32 0, %v2245
    %v2247 = vrot.slane %v2242, %v2246
    %2249 = vmatprep.subr.bf16.mxu0 0
    %2250 = vmatpush1.bf16.msra.mxu0 %v2240
    %2251 = vmatprep.subr.bf16.mxu0 0
    %2252 = vmatpush1.bf16.msra.mxu0 %v2241
    %2253 = vmatprep.subr.bf16.mxu0 0
    %2254 = vmatpush1.bf16.msra.mxu0 0
    %2255 = vmatprep.subr.bf16.mxu0 0
    %2256 = vmatpush1.bf16.msra.mxu0 0
    %2257 = vmatprep.subr.bf16.mxu0 0
    %2258 = vmatpush1.bf16.msra.mxu0 0
    %2259 = vmatprep.subr.bf16.mxu0 0
    %2260 = vmatpush1.bf16.msra.mxu0 0
    %2261 = vmatprep.subr.bf16.mxu0 0
    %2262 = vmatpush1.bf16.msra.mxu0 0
    %2263 = vmatprep.subr.bf16.mxu0 0
    %2264 = vmatpush1.bf16.msra.mxu0 0
    %2265 = vmatprep.subr.bf16.mxu0 0
    %2266 = vmatpush1.bf16.msra.mxu0 0
    %2267 = vmatprep.subr.bf16.mxu0 0
    %2268 = vmatpush1.bf16.msra.mxu0 0
    %2269 = vmatprep.subr.bf16.mxu0 0
    %2270 = vmatpush1.bf16.msra.mxu0 0
    %2271 = vmatprep.subr.bf16.mxu0 0
    %2272 = vmatpush1.bf16.msra.mxu0 0
    %2273 = vmatprep.subr.bf16.mxu0 0
    %2274 = vmatpush1.bf16.msra.mxu0 0
    %2275 = vmatprep.subr.bf16.mxu0 0
    %2276 = vmatpush1.bf16.msra.mxu0 0
    %2277 = vmatprep.subr.bf16.mxu0 0
    %2278 = vmatpush1.bf16.msra.mxu0 0
    %2279 = vmatprep.subr.bf16.mxu0 0
    %2280 = vmatpush1.bf16.msra.mxu0 0
    %2281 = vmatprep.mubr.bf16.mxu0 0
    %2282 = vmatmul.mubr.bf16.gmra.mrb[0].mxu0 %v2139
    %v2283 = vpop.f32.mrb[0].mxu0
    %v2284 = vadd.f32 %v2247, %v2283
    %v2285 = vpop.f32.mrb[0].mxu0
    %v2286 = vpop.f32.mrb[0].mxu0
    %v2287 = vadd.f32 %v2247, %v2286
    %v2288 = vpop.f32.mrb[0].mxu0
    %2289 = vdwg.mxu0
    %v2290 = vpack.c.bf16 %v2179, %v2176
    %v2291 = vpack.c.bf16 %v2233, %v2230
    %v2293 = vsel %vm700, %v2290, 0
    %v2296 = vsel %vm700, %v2291, 0
    %2298 = vmatprep.subr.bf16.mxu0 0
    %2299 = vmatpush1.bf16.xpose.msra.mxu0 %v2296
    %2300 = vmatprep.subr.bf16.mxu0 0
    %2301 = vmatpush1.bf16.xpose.msra.mxu0 0
    %2302 = vmatprep.subr.bf16.mxu0 0
    %2303 = vmatpush1.bf16.xpose.msra.mxu0 0
    %2304 = vmatprep.subr.bf16.mxu0 0
    %2305 = vmatpush1.bf16.xpose.msra.mxu0 0
    %2306 = vmatprep.subr.bf16.mxu0 0
    %2307 = vmatpush1.bf16.xpose.msra.mxu0 0
    %2308 = vmatprep.subr.bf16.mxu0 0
    %2309 = vmatpush1.bf16.xpose.msra.mxu0 0
    %2310 = vmatprep.subr.bf16.mxu0 0
    %2311 = vmatpush1.bf16.xpose.msra.mxu0 0
    %2312 = vmatprep.subr.bf16.mxu0 0
    %2313 = vmatpush1.bf16.xpose.msra.mxu0 0
    %2314 = vmatprep.subr.bf16.mxu0 0
    %2315 = vmatpush1.bf16.xpose.msra.mxu0 0
    %2316 = vmatprep.subr.bf16.mxu0 0
    %2317 = vmatpush1.bf16.xpose.msra.mxu0 0
    %2318 = vmatprep.subr.bf16.mxu0 0
    %2319 = vmatpush1.bf16.xpose.msra.mxu0 0
    %2320 = vmatprep.subr.bf16.mxu0 0
    %2321 = vmatpush1.bf16.xpose.msra.mxu0 0
    %2322 = vmatprep.subr.bf16.mxu0 0
    %2323 = vmatpush1.bf16.xpose.msra.mxu0 0
    %2324 = vmatprep.subr.bf16.mxu0 0
    %2325 = vmatpush1.bf16.xpose.msra.mxu0 0
    %2326 = vmatprep.subr.bf16.mxu0 0
    %2327 = vmatpush1.bf16.xpose.msra.mxu0 0
    %2328 = vmatprep.subr.bf16.mxu0 0
    %2329 = vmatpush1.bf16.xpose.msra.mxu0 0
    %2330 = vmatprep.mubr.bf16.mxu0 0
    %2331 = vmatmul.mubr.bf16.gmra.mrb[0].mxu0 %v2293
    %v2332 = vpop.f32.mrb[0].mxu0
    %v2333 = vadd.f32 0.0, %v2332
    %v2334 = vpop.f32.mrb[0].mxu0
    %v2335 = vpop.f32.mrb[0].mxu0
    %v2336 = vadd.f32 0.0, %v2335
    %v2337 = vpop.f32.mrb[0].mxu0
    %2338 = vdwg.mxu0
    %v2339 = vmul.f32 %v2333, 0.35355338
    %v2340 = vmul.f32 %v2336, 0.35355338
    %v2341 = vsel %vm529, %v2339, -1e+09
    %v2342 = vsel %vm530, %v2340, -1e+09
    %v2343 = vsel %vm752, %v2341, -inf
    %2344 = vmax.xlane.f32.xlu0 %v2343
    %v2345 = vpop.xlane.xlu0 %2344
    %v2346 = vsel %vm752, %v2342, -inf
    %2347 = vmax.xlane.f32.xlu0 %v2346
    %v2348 = vpop.xlane.xlu0 %2347
    %v2349 = vsub.f32 %v2341, %v2345
    %v2350 = vsub.f32 %v2342, %v2348
    %v2351 = vmul.f32 %v2349, 1.442695
    %v2352 = vpow.pop %v2351
    %v2353 = vmul.f32 %v2350, 1.442695
    %v2354 = vpow.pop %v2353
    %v2355 = vsel %vm752, %v2352, 0.0
    %2356 = vadd.xlane.f32.xlu0 %v2355
    %v2357 = vpop.xlane.xlu0 %2356
    %v2358 = vsel %vm752, %v2354, 0.0
    %2359 = vadd.xlane.f32.xlu0 %v2358
    %v2360 = vpop.xlane.xlu0 %2359
    %v2361 = vrcp.pop %v2357
    %v2362 = vrcp.pop %v2360
    %v2363 = vmul.f32 %v2352, %v2361
    %v2364 = vmul.f32 %v2354, %v2362
    %v2365 = vpack.c.bf16 %v2364, %v2363
    %v2366 = vpack.c.bf16 %v2287, %v2284
    %v2368 = vsel %vm752, %v2365, 0
    %2370 = vmatprep.subr.bf16.mxu0 0
    %2371 = vmatpush1.bf16.msra.mxu0 %v2366
    %2372 = vmatprep.subr.bf16.mxu0 0
    %2373 = vmatpush1.bf16.msra.mxu0 0
    %2374 = vmatprep.subr.bf16.mxu0 0
    %2375 = vmatpush1.bf16.msra.mxu0 0
    %2376 = vmatprep.subr.bf16.mxu0 0
    %2377 = vmatpush1.bf16.msra.mxu0 0
    %2378 = vmatprep.subr.bf16.mxu0 0
    %2379 = vmatpush1.bf16.msra.mxu0 0
    %2380 = vmatprep.subr.bf16.mxu0 0
    %2381 = vmatpush1.bf16.msra.mxu0 0
    %2382 = vmatprep.subr.bf16.mxu0 0
    %2383 = vmatpush1.bf16.msra.mxu0 0
    %2384 = vmatprep.subr.bf16.mxu0 0
    %2385 = vmatpush1.bf16.msra.mxu0 0
    %2386 = vmatprep.subr.bf16.mxu0 0
    %2387 = vmatpush1.bf16.msra.mxu0 0
    %2388 = vmatprep.subr.bf16.mxu0 0
    %2389 = vmatpush1.bf16.msra.mxu0 0
    %2390 = vmatprep.subr.bf16.mxu0 0
    %2391 = vmatpush1.bf16.msra.mxu0 0
    %2392 = vmatprep.subr.bf16.mxu0 0
    %2393 = vmatpush1.bf16.msra.mxu0 0
    %2394 = vmatprep.subr.bf16.mxu0 0
    %2395 = vmatpush1.bf16.msra.mxu0 0
    %2396 = vmatprep.subr.bf16.mxu0 0
    %2397 = vmatpush1.bf16.msra.mxu0 0
    %2398 = vmatprep.subr.bf16.mxu0 0
    %2399 = vmatpush1.bf16.msra.mxu0 0
    %2400 = vmatprep.subr.bf16.mxu0 0
    %2401 = vmatpush1.bf16.msra.mxu0 0
    %2402 = vmatprep.mubr.bf16.mxu0 0
    %2403 = vmatmul.mubr.bf16.gmra.mrb[0].mxu0 %v2368
    %v2404 = vpop.f32.mrb[0].mxu0
    %v2405 = vadd.f32 0.0, %v2404
    %v2406 = vpop.f32.mrb[0].mxu0
    %v2407 = vpop.f32.mrb[0].mxu0
    %v2408 = vadd.f32 0.0, %v2407
    %v2409 = vpop.f32.mrb[0].mxu0
    %2410 = vdwg.mxu0
    %v2411 = vld [vmem:[%s65] sm:$0xff]
    %v2412 = vpack.c.bf16 %v2408, %v2405
    %v2413 = vpack.c.bf16 %v2411, %v2411
    %v2415 = vsel %vm700, %v2412, 0
    %v2418 = vsel %vm827, %v2413, 0
    %2420 = vmatprep.subr.bf16.mxu0 0
    %2421 = vmatpush1.bf16.msra.mxu0 %v2418
    %2422 = vmatprep.subr.bf16.mxu0 0
    %2423 = vmatpush1.bf16.msra.mxu0 0
    %2424 = vmatprep.subr.bf16.mxu0 0
    %2425 = vmatpush1.bf16.msra.mxu0 0
    %2426 = vmatprep.subr.bf16.mxu0 0
    %2427 = vmatpush1.bf16.msra.mxu0 0
    %2428 = vmatprep.subr.bf16.mxu0 0
    %2429 = vmatpush1.bf16.msra.mxu0 0
    %2430 = vmatprep.subr.bf16.mxu0 0
    %2431 = vmatpush1.bf16.msra.mxu0 0
    %2432 = vmatprep.subr.bf16.mxu0 0
    %2433 = vmatpush1.bf16.msra.mxu0 0
    %2434 = vmatprep.subr.bf16.mxu0 0
    %2435 = vmatpush1.bf16.msra.mxu0 0
    %2436 = vmatprep.subr.bf16.mxu0 0
    %2437 = vmatpush1.bf16.msra.mxu0 0
    %2438 = vmatprep.subr.bf16.mxu0 0
    %2439 = vmatpush1.bf16.msra.mxu0 0
    %2440 = vmatprep.subr.bf16.mxu0 0
    %2441 = vmatpush1.bf16.msra.mxu0 0
    %2442 = vmatprep.subr.bf16.mxu0 0
    %2443 = vmatpush1.bf16.msra.mxu0 0
    %2444 = vmatprep.subr.bf16.mxu0 0
    %2445 = vmatpush1.bf16.msra.mxu0 0
    %2446 = vmatprep.subr.bf16.mxu0 0
    %2447 = vmatpush1.bf16.msra.mxu0 0
    %2448 = vmatprep.subr.bf16.mxu0 0
    %2449 = vmatpush1.bf16.msra.mxu0 0
    %2450 = vmatprep.subr.bf16.mxu0 0
    %2451 = vmatpush1.bf16.msra.mxu0 0
    %2452 = vmatprep.mubr.bf16.mxu0 0
    %2453 = vmatmul.mubr.bf16.gmra.mrb[0].mxu0 %v2415
    %v2454 = vpop.f32.mrb[0].mxu0
    %v2455 = vadd.f32 0.0, %v2454
    %v2456 = vpop.f32.mrb[0].mxu0
    %v2457 = vpop.f32.mrb[0].mxu0
    %v2458 = vadd.f32 0.0, %v2457
    %v2459 = vpop.f32.mrb[0].mxu0
    %2460 = vdwg.mxu0
    %v2462 = vlaneseq
    %v2463 = vshrl.u32 %v2462, 7
    %v2464 = vsub.s32 0, %v2463
    %v2465 = vrot.slane %v2123, %v2464
    %v2467 = vadd.f32 %v2465, %v2455
    %v2468 = vadd.f32 %v2465, %v2458
    %s2469 = scalar_lea.vmem %s53, 32
    %v2470 = vld [vmem:[%s2469] sm:$0xff]
    %v2471 = vld [vmem:[%s2469 + $0x8] sm:$0xff]
    %v2472 = vld [vmem:[%s2469 + $0x10] sm:$0xff]
    %v2473 = vld [vmem:[%s2469 + $0x18] sm:$0xff]
    %v2474 = vpack.c.bf16 %v2471, %v2470
    %v2475 = vpack.c.bf16 %v2473, %v2472
    %s2476 = scalar_lea.vmem %s59, 1
    %v2477 = vld [vmem:[%s2476] sm:$0x1]
    %v2479 = vlaneseq
    %v2480 = vshrl.u32 %v2479, 7
    %v2481 = vsub.s32 0, %v2480
    %v2482 = vrot.slane %v2477, %v2481
    %2484 = vmatprep.subr.bf16.mxu0 0
    %2485 = vmatpush1.bf16.msra.mxu0 %v2474
    %2486 = vmatprep.subr.bf16.mxu0 0
    %2487 = vmatpush1.bf16.msra.mxu0 %v2475
    %2488 = vmatprep.subr.bf16.mxu0 0
    %2489 = vmatpush1.bf16.msra.mxu0 0
    %2490 = vmatprep.subr.bf16.mxu0 0
    %2491 = vmatpush1.bf16.msra.mxu0 0
    %2492 = vmatprep.subr.bf16.mxu0 0
    %2493 = vmatpush1.bf16.msra.mxu0 0
    %2494 = vmatprep.subr.bf16.mxu0 0
    %2495 = vmatpush1.bf16.msra.mxu0 0
    %2496 = vmatprep.subr.bf16.mxu0 0
    %2497 = vmatpush1.bf16.msra.mxu0 0
    %2498 = vmatprep.subr.bf16.mxu0 0
    %2499 = vmatpush1.bf16.msra.mxu0 0
    %2500 = vmatprep.subr.bf16.mxu0 0
    %2501 = vmatpush1.bf16.msra.mxu0 0
    %2502 = vmatprep.subr.bf16.mxu0 0
    %2503 = vmatpush1.bf16.msra.mxu0 0
    %2504 = vmatprep.subr.bf16.mxu0 0
    %2505 = vmatpush1.bf16.msra.mxu0 0
    %2506 = vmatprep.subr.bf16.mxu0 0
    %2507 = vmatpush1.bf16.msra.mxu0 0
    %2508 = vmatprep.subr.bf16.mxu0 0
    %2509 = vmatpush1.bf16.msra.mxu0 0
    %2510 = vmatprep.subr.bf16.mxu0 0
    %2511 = vmatpush1.bf16.msra.mxu0 0
    %2512 = vmatprep.subr.bf16.mxu0 0
    %2513 = vmatpush1.bf16.msra.mxu0 0
    %2514 = vmatprep.subr.bf16.mxu0 0
    %2515 = vmatpush1.bf16.msra.mxu0 0
    %2516 = vmatprep.mubr.bf16.mxu0 0
    %2517 = vmatmul.mubr.bf16.gmra.mrb[0].mxu0 %v2139
    %v2518 = vpop.f32.mrb[0].mxu0
    %v2519 = vadd.f32 %v2482, %v2518
    %v2520 = vpop.f32.mrb[0].mxu0
    %v2521 = vpop.f32.mrb[0].mxu0
    %v2522 = vadd.f32 %v2482, %v2521
    %v2523 = vpop.f32.mrb[0].mxu0
    %2524 = vdwg.mxu0
    %s2525 = scalar_lea.vmem %s55, 32
    %v2526 = vld [vmem:[%s2525] sm:$0xff]
    %v2527 = vld [vmem:[%s2525 + $0x8] sm:$0xff]
    %v2528 = vld [vmem:[%s2525 + $0x10] sm:$0xff]
    %v2529 = vld [vmem:[%s2525 + $0x18] sm:$0xff]
    %v2530 = vpack.c.bf16 %v2527, %v2526
    %v2531 = vpack.c.bf16 %v2529, %v2528
    %s2532 = scalar_lea.vmem %s61, 1
    %v2533 = vld [vmem:[%s2532] sm:$0x1]
    %v2535 = vlaneseq
    %v2536 = vshrl.u32 %v2535, 7
    %v2537 = vsub.s32 0, %v2536
    %v2538 = vrot.slane %v2533, %v2537
    %2540 = vmatprep.subr.bf16.mxu0 0
    %2541 = vmatpush1.bf16.msra.mxu0 %v2530
    %2542 = vmatprep.subr.bf16.mxu0 0
    %2543 = vmatpush1.bf16.msra.mxu0 %v2531
    %2544 = vmatprep.subr.bf16.mxu0 0
    %2545 = vmatpush1.bf16.msra.mxu0 0
    %2546 = vmatprep.subr.bf16.mxu0 0
    %2547 = vmatpush1.bf16.msra.mxu0 0
    %2548 = vmatprep.subr.bf16.mxu0 0
    %2549 = vmatpush1.bf16.msra.mxu0 0
    %2550 = vmatprep.subr.bf16.mxu0 0
    %2551 = vmatpush1.bf16.msra.mxu0 0
    %2552 = vmatprep.subr.bf16.mxu0 0
    %2553 = vmatpush1.bf16.msra.mxu0 0
    %2554 = vmatprep.subr.bf16.mxu0 0
    %2555 = vmatpush1.bf16.msra.mxu0 0
    %2556 = vmatprep.subr.bf16.mxu0 0
    %2557 = vmatpush1.bf16.msra.mxu0 0
    %2558 = vmatprep.subr.bf16.mxu0 0
    %2559 = vmatpush1.bf16.msra.mxu0 0
    %2560 = vmatprep.subr.bf16.mxu0 0
    %2561 = vmatpush1.bf16.msra.mxu0 0
    %2562 = vmatprep.subr.bf16.mxu0 0
    %2563 = vmatpush1.bf16.msra.mxu0 0
    %2564 = vmatprep.subr.bf16.mxu0 0
    %2565 = vmatpush1.bf16.msra.mxu0 0
    %2566 = vmatprep.subr.bf16.mxu0 0
    %2567 = vmatpush1.bf16.msra.mxu0 0
    %2568 = vmatprep.subr.bf16.mxu0 0
    %2569 = vmatpush1.bf16.msra.mxu0 0
    %2570 = vmatprep.subr.bf16.mxu0 0
    %2571 = vmatpush1.bf16.msra.mxu0 0
    %2572 = vmatprep.mubr.bf16.mxu0 0
    %2573 = vmatmul.mubr.bf16.gmra.mrb[0].mxu0 %v2139
    %v2574 = vpop.f32.mrb[0].mxu0
    %v2575 = vadd.f32 %v2538, %v2574
    %v2576 = vpop.f32.mrb[0].mxu0
    %v2577 = vpop.f32.mrb[0].mxu0
    %v2578 = vadd.f32 %v2538, %v2577
    %v2579 = vpop.f32.mrb[0].mxu0
    %2580 = vdwg.mxu0
    %s2581 = scalar_lea.vmem %s57, 32
    %v2582 = vld [vmem:[%s2581] sm:$0xff]
    %v2583 = vld [vmem:[%s2581 + $0x8] sm:$0xff]
    %v2584 = vld [vmem:[%s2581 + $0x10] sm:$0xff]
    %v2585 = vld [vmem:[%s2581 + $0x18] sm:$0xff]
    %v2586 = vpack.c.bf16 %v2583, %v2582
    %v2587 = vpack.c.bf16 %v2585, %v2584
    %s2588 = scalar_lea.vmem %s63, 1
    %v2589 = vld [vmem:[%s2588] sm:$0x1]
    %v2591 = vlaneseq
    %v2592 = vshrl.u32 %v2591, 7
    %v2593 = vsub.s32 0, %v2592
    %v2594 = vrot.slane %v2589, %v2593
    %2596 = vmatprep.subr.bf16.mxu0 0
    %2597 = vmatpush1.bf16.msra.mxu0 %v2586
    %2598 = vmatprep.subr.bf16.mxu0 0
    %2599 = vmatpush1.bf16.msra.mxu0 %v2587
    %2600 = vmatprep.subr.bf16.mxu0 0
    %2601 = vmatpush1.bf16.msra.mxu0 0
    %2602 = vmatprep.subr.bf16.mxu0 0
    %2603 = vmatpush1.bf16.msra.mxu0 0
    %2604 = vmatprep.subr.bf16.mxu0 0
    %2605 = vmatpush1.bf16.msra.mxu0 0
    %2606 = vmatprep.subr.bf16.mxu0 0
    %2607 = vmatpush1.bf16.msra.mxu0 0
    %2608 = vmatprep.subr.bf16.mxu0 0
    %2609 = vmatpush1.bf16.msra.mxu0 0
    %2610 = vmatprep.subr.bf16.mxu0 0
    %2611 = vmatpush1.bf16.msra.mxu0 0
    %2612 = vmatprep.subr.bf16.mxu0 0
    %2613 = vmatpush1.bf16.msra.mxu0 0
    %2614 = vmatprep.subr.bf16.mxu0 0
    %2615 = vmatpush1.bf16.msra.mxu0 0
    %2616 = vmatprep.subr.bf16.mxu0 0
    %2617 = vmatpush1.bf16.msra.mxu0 0
    %2618 = vmatprep.subr.bf16.mxu0 0
    %2619 = vmatpush1.bf16.msra.mxu0 0
    %2620 = vmatprep.subr.bf16.mxu0 0
    %2621 = vmatpush1.bf16.msra.mxu0 0
    %2622 = vmatprep.subr.bf16.mxu0 0
    %2623 = vmatpush1.bf16.msra.mxu0 0
    %2624 = vmatprep.subr.bf16.mxu0 0
    %2625 = vmatpush1.bf16.msra.mxu0 0
    %2626 = vmatprep.subr.bf16.mxu0 0
    %2627 = vmatpush1.bf16.msra.mxu0 0
    %2628 = vmatprep.mubr.bf16.mxu0 0
    %2629 = vmatmul.mubr.bf16.gmra.mrb[0].mxu0 %v2139
    %v2630 = vpop.f32.mrb[0].mxu0
    %v2631 = vadd.f32 %v2594, %v2630
    %v2632 = vpop.f32.mrb[0].mxu0
    %v2633 = vpop.f32.mrb[0].mxu0
    %v2634 = vadd.f32 %v2594, %v2633
    %v2635 = vpop.f32.mrb[0].mxu0
    %2636 = vdwg.mxu0
    %v2637 = vpack.c.bf16 %v2522, %v2519
    %v2638 = vpack.c.bf16 %v2578, %v2575
    %v2640 = vsel %vm700, %v2637, 0
    %v2643 = vsel %vm700, %v2638, 0
    %2645 = vmatprep.subr.bf16.mxu0 0
    %2646 = vmatpush1.bf16.xpose.msra.mxu0 %v2643
    %2647 = vmatprep.subr.bf16.mxu0 0
    %2648 = vmatpush1.bf16.xpose.msra.mxu0 0
    %2649 = vmatprep.subr.bf16.mxu0 0
    %2650 = vmatpush1.bf16.xpose.msra.mxu0 0
    %2651 = vmatprep.subr.bf16.mxu0 0
    %2652 = vmatpush1.bf16.xpose.msra.mxu0 0
    %2653 = vmatprep.subr.bf16.mxu0 0
    %2654 = vmatpush1.bf16.xpose.msra.mxu0 0
    %2655 = vmatprep.subr.bf16.mxu0 0
    %2656 = vmatpush1.bf16.xpose.msra.mxu0 0
    %2657 = vmatprep.subr.bf16.mxu0 0
    %2658 = vmatpush1.bf16.xpose.msra.mxu0 0
    %2659 = vmatprep.subr.bf16.mxu0 0
    %2660 = vmatpush1.bf16.xpose.msra.mxu0 0
    %2661 = vmatprep.subr.bf16.mxu0 0
    %2662 = vmatpush1.bf16.xpose.msra.mxu0 0
    %2663 = vmatprep.subr.bf16.mxu0 0
    %2664 = vmatpush1.bf16.xpose.msra.mxu0 0
    %2665 = vmatprep.subr.bf16.mxu0 0
    %2666 = vmatpush1.bf16.xpose.msra.mxu0 0
    %2667 = vmatprep.subr.bf16.mxu0 0
    %2668 = vmatpush1.bf16.xpose.msra.mxu0 0
    %2669 = vmatprep.subr.bf16.mxu0 0
    %2670 = vmatpush1.bf16.xpose.msra.mxu0 0
    %2671 = vmatprep.subr.bf16.mxu0 0
    %2672 = vmatpush1.bf16.xpose.msra.mxu0 0
    %2673 = vmatprep.subr.bf16.mxu0 0
    %2674 = vmatpush1.bf16.xpose.msra.mxu0 0
    %2675 = vmatprep.subr.bf16.mxu0 0
    %2676 = vmatpush1.bf16.xpose.msra.mxu0 0
    %2677 = vmatprep.mubr.bf16.mxu0 0
    %2678 = vmatmul.mubr.bf16.gmra.mrb[0].mxu0 %v2640
    %v2679 = vpop.f32.mrb[0].mxu0
    %v2680 = vadd.f32 0.0, %v2679
    %v2681 = vpop.f32.mrb[0].mxu0
    %v2682 = vpop.f32.mrb[0].mxu0
    %v2683 = vadd.f32 0.0, %v2682
    %v2684 = vpop.f32.mrb[0].mxu0
    %2685 = vdwg.mxu0
    %v2686 = vmul.f32 %v2680, 0.35355338
    %v2687 = vmul.f32 %v2683, 0.35355338
    %v2688 = vsel %vm529, %v2686, -1e+09
    %v2689 = vsel %vm530, %v2687, -1e+09
    %v2690 = vsel %vm752, %v2688, -inf
    %2691 = vmax.xlane.f32.xlu0 %v2690
    %v2692 = vpop.xlane.xlu0 %2691
    %v2693 = vsel %vm752, %v2689, -inf
    %2694 = vmax.xlane.f32.xlu0 %v2693
    %v2695 = vpop.xlane.xlu0 %2694
    %v2696 = vsub.f32 %v2688, %v2692
    %v2697 = vsub.f32 %v2689, %v2695
    %v2698 = vmul.f32 %v2696, 1.442695
    %v2699 = vpow.pop %v2698
    %v2700 = vmul.f32 %v2697, 1.442695
    %v2701 = vpow.pop %v2700
    %v2702 = vsel %vm752, %v2699, 0.0
    %2703 = vadd.xlane.f32.xlu0 %v2702
    %v2704 = vpop.xlane.xlu0 %2703
    %v2705 = vsel %vm752, %v2701, 0.0
    %2706 = vadd.xlane.f32.xlu0 %v2705
    %v2707 = vpop.xlane.xlu0 %2706
    %v2708 = vrcp.pop %v2704
    %v2709 = vrcp.pop %v2707
    %v2710 = vmul.f32 %v2699, %v2708
    %v2711 = vmul.f32 %v2701, %v2709
    %v2712 = vpack.c.bf16 %v2711, %v2710
    %v2713 = vpack.c.bf16 %v2634, %v2631
    %v2715 = vsel %vm752, %v2712, 0
    %2717 = vmatprep.subr.bf16.mxu0 0
    %2718 = vmatpush1.bf16.msra.mxu0 %v2713
    %2719 = vmatprep.subr.bf16.mxu0 0
    %2720 = vmatpush1.bf16.msra.mxu0 0
    %2721 = vmatprep.subr.bf16.mxu0 0
    %2722 = vmatpush1.bf16.msra.mxu0 0
    %2723 = vmatprep.subr.bf16.mxu0 0
    %2724 = vmatpush1.bf16.msra.mxu0 0
    %2725 = vmatprep.subr.bf16.mxu0 0
    %2726 = vmatpush1.bf16.msra.mxu0 0
    %2727 = vmatprep.subr.bf16.mxu0 0
    %2728 = vmatpush1.bf16.msra.mxu0 0
    %2729 = vmatprep.subr.bf16.mxu0 0
    %2730 = vmatpush1.bf16.msra.mxu0 0
    %2731 = vmatprep.subr.bf16.mxu0 0
    %2732 = vmatpush1.bf16.msra.mxu0 0
    %2733 = vmatprep.subr.bf16.mxu0 0
    %2734 = vmatpush1.bf16.msra.mxu0 0
    %2735 = vmatprep.subr.bf16.mxu0 0
    %2736 = vmatpush1.bf16.msra.mxu0 0
    %2737 = vmatprep.subr.bf16.mxu0 0
    %2738 = vmatpush1.bf16.msra.mxu0 0
    %2739 = vmatprep.subr.bf16.mxu0 0
    %2740 = vmatpush1.bf16.msra.mxu0 0
    %2741 = vmatprep.subr.bf16.mxu0 0
    %2742 = vmatpush1.bf16.msra.mxu0 0
    %2743 = vmatprep.subr.bf16.mxu0 0
    %2744 = vmatpush1.bf16.msra.mxu0 0
    %2745 = vmatprep.subr.bf16.mxu0 0
    %2746 = vmatpush1.bf16.msra.mxu0 0
    %2747 = vmatprep.subr.bf16.mxu0 0
    %2748 = vmatpush1.bf16.msra.mxu0 0
    %2749 = vmatprep.mubr.bf16.mxu0 0
    %2750 = vmatmul.mubr.bf16.gmra.mrb[0].mxu0 %v2715
    %v2751 = vpop.f32.mrb[0].mxu0
    %v2752 = vadd.f32 0.0, %v2751
    %v2753 = vpop.f32.mrb[0].mxu0
    %v2754 = vpop.f32.mrb[0].mxu0
    %v2755 = vadd.f32 0.0, %v2754
    %v2756 = vpop.f32.mrb[0].mxu0
    %2757 = vdwg.mxu0
    %s2758 = scalar_lea.vmem %s65, 8
    %v2759 = vld [vmem:[%s2758] sm:$0xff]
    %v2760 = vpack.c.bf16 %v2755, %v2752
    %v2761 = vpack.c.bf16 %v2759, %v2759
    %v2763 = vsel %vm700, %v2760, 0
    %v2766 = vsel %vm827, %v2761, 0
    %2768 = vmatprep.subr.bf16.mxu0 0
    %2769 = vmatpush1.bf16.msra.mxu0 %v2766
    %2770 = vmatprep.subr.bf16.mxu0 0
    %2771 = vmatpush1.bf16.msra.mxu0 0
    %2772 = vmatprep.subr.bf16.mxu0 0
    %2773 = vmatpush1.bf16.msra.mxu0 0
    %2774 = vmatprep.subr.bf16.mxu0 0
    %2775 = vmatpush1.bf16.msra.mxu0 0
    %2776 = vmatprep.subr.bf16.mxu0 0
    %2777 = vmatpush1.bf16.msra.mxu0 0
    %2778 = vmatprep.subr.bf16.mxu0 0
    %2779 = vmatpush1.bf16.msra.mxu0 0
    %2780 = vmatprep.subr.bf16.mxu0 0
    %2781 = vmatpush1.bf16.msra.mxu0 0
    %2782 = vmatprep.subr.bf16.mxu0 0
    %2783 = vmatpush1.bf16.msra.mxu0 0
    %2784 = vmatprep.subr.bf16.mxu0 0
    %2785 = vmatpush1.bf16.msra.mxu0 0
    %2786 = vmatprep.subr.bf16.mxu0 0
    %2787 = vmatpush1.bf16.msra.mxu0 0
    %2788 = vmatprep.subr.bf16.mxu0 0
    %2789 = vmatpush1.bf16.msra.mxu0 0
    %2790 = vmatprep.subr.bf16.mxu0 0
    %2791 = vmatpush1.bf16.msra.mxu0 0
    %2792 = vmatprep.subr.bf16.mxu0 0
    %2793 = vmatpush1.bf16.msra.mxu0 0
    %2794 = vmatprep.subr.bf16.mxu0 0
    %2795 = vmatpush1.bf16.msra.mxu0 0
    %2796 = vmatprep.subr.bf16.mxu0 0
    %2797 = vmatpush1.bf16.msra.mxu0 0
    %2798 = vmatprep.subr.bf16.mxu0 0
    %2799 = vmatpush1.bf16.msra.mxu0 0
    %2800 = vmatprep.mubr.bf16.mxu0 0
    %2801 = vmatmul.mubr.bf16.gmra.mrb[0].mxu0 %v2763
    %v2802 = vpop.f32.mrb[0].mxu0
    %v2803 = vadd.f32 0.0, %v2802
    %v2804 = vpop.f32.mrb[0].mxu0
    %v2805 = vpop.f32.mrb[0].mxu0
    %v2806 = vadd.f32 0.0, %v2805
    %v2807 = vpop.f32.mrb[0].mxu0
    %2808 = vdwg.mxu0
    %v2809 = vadd.f32 %v2467, %v2803
    %v2810 = vadd.f32 %v2468, %v2806
    %s2811 = scalar_lea.vmem %s53, 64
    %v2812 = vld [vmem:[%s2811] sm:$0xff]
    %v2813 = vld [vmem:[%s2811 + $0x8] sm:$0xff]
    %v2814 = vld [vmem:[%s2811 + $0x10] sm:$0xff]
    %v2815 = vld [vmem:[%s2811 + $0x18] sm:$0xff]
    %v2816 = vpack.c.bf16 %v2813, %v2812
    %v2817 = vpack.c.bf16 %v2815, %v2814
    %s2818 = scalar_lea.vmem %s59, 2
    %v2819 = vld [vmem:[%s2818] sm:$0x1]
    %v2821 = vlaneseq
    %v2822 = vshrl.u32 %v2821, 7
    %v2823 = vsub.s32 0, %v2822
    %v2824 = vrot.slane %v2819, %v2823
    %2826 = vmatprep.subr.bf16.mxu0 0
    %2827 = vmatpush1.bf16.msra.mxu0 %v2816
    %2828 = vmatprep.subr.bf16.mxu0 0
    %2829 = vmatpush1.bf16.msra.mxu0 %v2817
    %2830 = vmatprep.subr.bf16.mxu0 0
    %2831 = vmatpush1.bf16.msra.mxu0 0
    %2832 = vmatprep.subr.bf16.mxu0 0
    %2833 = vmatpush1.bf16.msra.mxu0 0
    %2834 = vmatprep.subr.bf16.mxu0 0
    %2835 = vmatpush1.bf16.msra.mxu0 0
    %2836 = vmatprep.subr.bf16.mxu0 0
    %2837 = vmatpush1.bf16.msra.mxu0 0
    %2838 = vmatprep.subr.bf16.mxu0 0
    %2839 = vmatpush1.bf16.msra.mxu0 0
    %2840 = vmatprep.subr.bf16.mxu0 0
    %2841 = vmatpush1.bf16.msra.mxu0 0
    %2842 = vmatprep.subr.bf16.mxu0 0
    %2843 = vmatpush1.bf16.msra.mxu0 0
    %2844 = vmatprep.subr.bf16.mxu0 0
    %2845 = vmatpush1.bf16.msra.mxu0 0
    %2846 = vmatprep.subr.bf16.mxu0 0
    %2847 = vmatpush1.bf16.msra.mxu0 0
    %2848 = vmatprep.subr.bf16.mxu0 0
    %2849 = vmatpush1.bf16.msra.mxu0 0
    %2850 = vmatprep.subr.bf16.mxu0 0
    %2851 = vmatpush1.bf16.msra.mxu0 0
    %2852 = vmatprep.subr.bf16.mxu0 0
    %2853 = vmatpush1.bf16.msra.mxu0 0
    %2854 = vmatprep.subr.bf16.mxu0 0
    %2855 = vmatpush1.bf16.msra.mxu0 0
    %2856 = vmatprep.subr.bf16.mxu0 0
    %2857 = vmatpush1.bf16.msra.mxu0 0
    %2858 = vmatprep.mubr.bf16.mxu0 0
    %2859 = vmatmul.mubr.bf16.gmra.mrb[0].mxu0 %v2139
    %v2860 = vpop.f32.mrb[0].mxu0
    %v2861 = vadd.f32 %v2824, %v2860
    %v2862 = vpop.f32.mrb[0].mxu0
    %v2863 = vpop.f32.mrb[0].mxu0
    %v2864 = vadd.f32 %v2824, %v2863
    %v2865 = vpop.f32.mrb[0].mxu0
    %2866 = vdwg.mxu0
    %s2867 = scalar_lea.vmem %s55, 64
    %v2868 = vld [vmem:[%s2867] sm:$0xff]
    %v2869 = vld [vmem:[%s2867 + $0x8] sm:$0xff]
    %v2870 = vld [vmem:[%s2867 + $0x10] sm:$0xff]
    %v2871 = vld [vmem:[%s2867 + $0x18] sm:$0xff]
    %v2872 = vpack.c.bf16 %v2869, %v2868
    %v2873 = vpack.c.bf16 %v2871, %v2870
    %s2874 = scalar_lea.vmem %s61, 2
    %v2875 = vld [vmem:[%s2874] sm:$0x1]
    %v2877 = vlaneseq
    %v2878 = vshrl.u32 %v2877, 7
    %v2879 = vsub.s32 0, %v2878
    %v2880 = vrot.slane %v2875, %v2879
    %2882 = vmatprep.subr.bf16.mxu0 0
    %2883 = vmatpush1.bf16.msra.mxu0 %v2872
    %2884 = vmatprep.subr.bf16.mxu0 0
    %2885 = vmatpush1.bf16.msra.mxu0 %v2873
    %2886 = vmatprep.subr.bf16.mxu0 0
    %2887 = vmatpush1.bf16.msra.mxu0 0
    %2888 = vmatprep.subr.bf16.mxu0 0
    %2889 = vmatpush1.bf16.msra.mxu0 0
    %2890 = vmatprep.subr.bf16.mxu0 0
    %2891 = vmatpush1.bf16.msra.mxu0 0
    %2892 = vmatprep.subr.bf16.mxu0 0
    %2893 = vmatpush1.bf16.msra.mxu0 0
    %2894 = vmatprep.subr.bf16.mxu0 0
    %2895 = vmatpush1.bf16.msra.mxu0 0
    %2896 = vmatprep.subr.bf16.mxu0 0
    %2897 = vmatpush1.bf16.msra.mxu0 0
    %2898 = vmatprep.subr.bf16.mxu0 0
    %2899 = vmatpush1.bf16.msra.mxu0 0
    %2900 = vmatprep.subr.bf16.mxu0 0
    %2901 = vmatpush1.bf16.msra.mxu0 0
    %2902 = vmatprep.subr.bf16.mxu0 0
    %2903 = vmatpush1.bf16.msra.mxu0 0
    %2904 = vmatprep.subr.bf16.mxu0 0
    %2905 = vmatpush1.bf16.msra.mxu0 0
    %2906 = vmatprep.subr.bf16.mxu0 0
    %2907 = vmatpush1.bf16.msra.mxu0 0
    %2908 = vmatprep.subr.bf16.mxu0 0
    %2909 = vmatpush1.bf16.msra.mxu0 0
    %2910 = vmatprep.subr.bf16.mxu0 0
    %2911 = vmatpush1.bf16.msra.mxu0 0
    %2912 = vmatprep.subr.bf16.mxu0 0
    %2913 = vmatpush1.bf16.msra.mxu0 0
    %2914 = vmatprep.mubr.bf16.mxu0 0
    %2915 = vmatmul.mubr.bf16.gmra.mrb[0].mxu0 %v2139
    %v2916 = vpop.f32.mrb[0].mxu0
    %v2917 = vadd.f32 %v2880, %v2916
    %v2918 = vpop.f32.mrb[0].mxu0
    %v2919 = vpop.f32.mrb[0].mxu0
    %v2920 = vadd.f32 %v2880, %v2919
    %v2921 = vpop.f32.mrb[0].mxu0
    %2922 = vdwg.mxu0
    %s2923 = scalar_lea.vmem %s57, 64
    %v2924 = vld [vmem:[%s2923] sm:$0xff]
    %v2925 = vld [vmem:[%s2923 + $0x8] sm:$0xff]
    %v2926 = vld [vmem:[%s2923 + $0x10] sm:$0xff]
    %v2927 = vld [vmem:[%s2923 + $0x18] sm:$0xff]
    %v2928 = vpack.c.bf16 %v2925, %v2924
    %v2929 = vpack.c.bf16 %v2927, %v2926
    %s2930 = scalar_lea.vmem %s63, 2
    %v2931 = vld [vmem:[%s2930] sm:$0x1]
    %v2933 = vlaneseq
    %v2934 = vshrl.u32 %v2933, 7
    %v2935 = vsub.s32 0, %v2934
    %v2936 = vrot.slane %v2931, %v2935
    %2938 = vmatprep.subr.bf16.mxu0 0
    %2939 = vmatpush1.bf16.msra.mxu0 %v2928
    %2940 = vmatprep.subr.bf16.mxu0 0
    %2941 = vmatpush1.bf16.msra.mxu0 %v2929
    %2942 = vmatprep.subr.bf16.mxu0 0
    %2943 = vmatpush1.bf16.msra.mxu0 0
    %2944 = vmatprep.subr.bf16.mxu0 0
    %2945 = vmatpush1.bf16.msra.mxu0 0
    %2946 = vmatprep.subr.bf16.mxu0 0
    %2947 = vmatpush1.bf16.msra.mxu0 0
    %2948 = vmatprep.subr.bf16.mxu0 0
    %2949 = vmatpush1.bf16.msra.mxu0 0
    %2950 = vmatprep.subr.bf16.mxu0 0
    %2951 = vmatpush1.bf16.msra.mxu0 0
    %2952 = vmatprep.subr.bf16.mxu0 0
    %2953 = vmatpush1.bf16.msra.mxu0 0
    %2954 = vmatprep.subr.bf16.mxu0 0
    %2955 = vmatpush1.bf16.msra.mxu0 0
    %2956 = vmatprep.subr.bf16.mxu0 0
    %2957 = vmatpush1.bf16.msra.mxu0 0
    %2958 = vmatprep.subr.bf16.mxu0 0
    %2959 = vmatpush1.bf16.msra.mxu0 0
    %2960 = vmatprep.subr.bf16.mxu0 0
    %2961 = vmatpush1.bf16.msra.mxu0 0
    %2962 = vmatprep.subr.bf16.mxu0 0
    %2963 = vmatpush1.bf16.msra.mxu0 0
    %2964 = vmatprep.subr.bf16.mxu0 0
    %2965 = vmatpush1.bf16.msra.mxu0 0
    %2966 = vmatprep.subr.bf16.mxu0 0
    %2967 = vmatpush1.bf16.msra.mxu0 0
    %2968 = vmatprep.subr.bf16.mxu0 0
    %2969 = vmatpush1.bf16.msra.mxu0 0
    %2970 = vmatprep.mubr.bf16.mxu0 0
    %2971 = vmatmul.mubr.bf16.gmra.mrb[0].mxu0 %v2139
    %v2972 = vpop.f32.mrb[0].mxu0
    %v2973 = vadd.f32 %v2936, %v2972
    %v2974 = vpop.f32.mrb[0].mxu0
    %v2975 = vpop.f32.mrb[0].mxu0
    %v2976 = vadd.f32 %v2936, %v2975
    %v2977 = vpop.f32.mrb[0].mxu0
    %2978 = vdwg.mxu0
    %v2979 = vpack.c.bf16 %v2864, %v2861
    %v2980 = vpack.c.bf16 %v2920, %v2917
    %v2982 = vsel %vm700, %v2979, 0
    %v2985 = vsel %vm700, %v2980, 0
    %2987 = vmatprep.subr.bf16.mxu0 0
    %2988 = vmatpush1.bf16.xpose.msra.mxu0 %v2985
    %2989 = vmatprep.subr.bf16.mxu0 0
    %2990 = vmatpush1.bf16.xpose.msra.mxu0 0
    %2991 = vmatprep.subr.bf16.mxu0 0
    %2992 = vmatpush1.bf16.xpose.msra.mxu0 0
    %2993 = vmatprep.subr.bf16.mxu0 0
    %2994 = vmatpush1.bf16.xpose.msra.mxu0 0
    %2995 = vmatprep.subr.bf16.mxu0 0
    %2996 = vmatpush1.bf16.xpose.msra.mxu0 0
    %2997 = vmatprep.subr.bf16.mxu0 0
    %2998 = vmatpush1.bf16.xpose.msra.mxu0 0
    %2999 = vmatprep.subr.bf16.mxu0 0
    %3000 = vmatpush1.bf16.xpose.msra.mxu0 0
    %3001 = vmatprep.subr.bf16.mxu0 0
    %3002 = vmatpush1.bf16.xpose.msra.mxu0 0
    %3003 = vmatprep.subr.bf16.mxu0 0
    %3004 = vmatpush1.bf16.xpose.msra.mxu0 0
    %3005 = vmatprep.subr.bf16.mxu0 0
    %3006 = vmatpush1.bf16.xpose.msra.mxu0 0
    %3007 = vmatprep.subr.bf16.mxu0 0
    %3008 = vmatpush1.bf16.xpose.msra.mxu0 0
    %3009 = vmatprep.subr.bf16.mxu0 0
    %3010 = vmatpush1.bf16.xpose.msra.mxu0 0
    %3011 = vmatprep.subr.bf16.mxu0 0
    %3012 = vmatpush1.bf16.xpose.msra.mxu0 0
    %3013 = vmatprep.subr.bf16.mxu0 0
    %3014 = vmatpush1.bf16.xpose.msra.mxu0 0
    %3015 = vmatprep.subr.bf16.mxu0 0
    %3016 = vmatpush1.bf16.xpose.msra.mxu0 0
    %3017 = vmatprep.subr.bf16.mxu0 0
    %3018 = vmatpush1.bf16.xpose.msra.mxu0 0
    %3019 = vmatprep.mubr.bf16.mxu0 0
    %3020 = vmatmul.mubr.bf16.gmra.mrb[0].mxu0 %v2982
    %v3021 = vpop.f32.mrb[0].mxu0
    %v3022 = vadd.f32 0.0, %v3021
    %v3023 = vpop.f32.mrb[0].mxu0
    %v3024 = vpop.f32.mrb[0].mxu0
    %v3025 = vadd.f32 0.0, %v3024
    %v3026 = vpop.f32.mrb[0].mxu0
    %3027 = vdwg.mxu0
    %v3028 = vmul.f32 %v3022, 0.35355338
    %v3029 = vmul.f32 %v3025, 0.35355338
    %v3030 = vsel %vm529, %v3028, -1e+09
    %v3031 = vsel %vm530, %v3029, -1e+09
    %v3032 = vsel %vm752, %v3030, -inf
    %3033 = vmax.xlane.f32.xlu0 %v3032
    %v3034 = vpop.xlane.xlu0 %3033
    %v3035 = vsel %vm752, %v3031, -inf
    %3036 = vmax.xlane.f32.xlu0 %v3035
    %v3037 = vpop.xlane.xlu0 %3036
    %v3038 = vsub.f32 %v3030, %v3034
    %v3039 = vsub.f32 %v3031, %v3037
    %v3040 = vmul.f32 %v3038, 1.442695
    %v3041 = vpow.pop %v3040
    %v3042 = vmul.f32 %v3039, 1.442695
    %v3043 = vpow.pop %v3042
    %v3044 = vsel %vm752, %v3041, 0.0
    %3045 = vadd.xlane.f32.xlu0 %v3044
    %v3046 = vpop.xlane.xlu0 %3045
    %v3047 = vsel %vm752, %v3043, 0.0
    %3048 = vadd.xlane.f32.xlu0 %v3047
    %v3049 = vpop.xlane.xlu0 %3048
    %v3050 = vrcp.pop %v3046
    %v3051 = vrcp.pop %v3049
    %v3052 = vmul.f32 %v3041, %v3050
    %v3053 = vmul.f32 %v3043, %v3051
    %v3054 = vpack.c.bf16 %v3053, %v3052
    %v3055 = vpack.c.bf16 %v2976, %v2973
    %v3057 = vsel %vm752, %v3054, 0
    %3059 = vmatprep.subr.bf16.mxu0 0
    %3060 = vmatpush1.bf16.msra.mxu0 %v3055
    %3061 = vmatprep.subr.bf16.mxu0 0
    %3062 = vmatpush1.bf16.msra.mxu0 0
    %3063 = vmatprep.subr.bf16.mxu0 0
    %3064 = vmatpush1.bf16.msra.mxu0 0
    %3065 = vmatprep.subr.bf16.mxu0 0
    %3066 = vmatpush1.bf16.msra.mxu0 0
    %3067 = vmatprep.subr.bf16.mxu0 0
    %3068 = vmatpush1.bf16.msra.mxu0 0
    %3069 = vmatprep.subr.bf16.mxu0 0
    %3070 = vmatpush1.bf16.msra.mxu0 0
    %3071 = vmatprep.subr.bf16.mxu0 0
    %3072 = vmatpush1.bf16.msra.mxu0 0
    %3073 = vmatprep.subr.bf16.mxu0 0
    %3074 = vmatpush1.bf16.msra.mxu0 0
    %3075 = vmatprep.subr.bf16.mxu0 0
    %3076 = vmatpush1.bf16.msra.mxu0 0
    %3077 = vmatprep.subr.bf16.mxu0 0
    %3078 = vmatpush1.bf16.msra.mxu0 0
    %3079 = vmatprep.subr.bf16.mxu0 0
    %3080 = vmatpush1.bf16.msra.mxu0 0
    %3081 = vmatprep.subr.bf16.mxu0 0
    %3082 = vmatpush1.bf16.msra.mxu0 0
    %3083 = vmatprep.subr.bf16.mxu0 0
    %3084 = vmatpush1.bf16.msra.mxu0 0
    %3085 = vmatprep.subr.bf16.mxu0 0
    %3086 = vmatpush1.bf16.msra.mxu0 0
    %3087 = vmatprep.subr.bf16.mxu0 0
    %3088 = vmatpush1.bf16.msra.mxu0 0
    %3089 = vmatprep.subr.bf16.mxu0 0
    %3090 = vmatpush1.bf16.msra.mxu0 0
    %3091 = vmatprep.mubr.bf16.mxu0 0
    %3092 = vmatmul.mubr.bf16.gmra.mrb[0].mxu0 %v3057
    %v3093 = vpop.f32.mrb[0].mxu0
    %v3094 = vadd.f32 0.0, %v3093
    %v3095 = vpop.f32.mrb[0].mxu0
    %v3096 = vpop.f32.mrb[0].mxu0
    %v3097 = vadd.f32 0.0, %v3096
    %v3098 = vpop.f32.mrb[0].mxu0
    %3099 = vdwg.mxu0
    %s3100 = scalar_lea.vmem %s65, 16
    %v3101 = vld [vmem:[%s3100] sm:$0xff]
    %v3102 = vpack.c.bf16 %v3097, %v3094
    %v3103 = vpack.c.bf16 %v3101, %v3101
    %v3105 = vsel %vm700, %v3102, 0
    %v3108 = vsel %vm827, %v3103, 0
    %3110 = vmatprep.subr.bf16.mxu0 0
    %3111 = vmatpush1.bf16.msra.mxu0 %v3108
    %3112 = vmatprep.subr.bf16.mxu0 0
    %3113 = vmatpush1.bf16.msra.mxu0 0
    %3114 = vmatprep.subr.bf16.mxu0 0
    %3115 = vmatpush1.bf16.msra.mxu0 0
    %3116 = vmatprep.subr.bf16.mxu0 0
    %3117 = vmatpush1.bf16.msra.mxu0 0
    %3118 = vmatprep.subr.bf16.mxu0 0
    %3119 = vmatpush1.bf16.msra.mxu0 0
    %3120 = vmatprep.subr.bf16.mxu0 0
    %3121 = vmatpush1.bf16.msra.mxu0 0
    %3122 = vmatprep.subr.bf16.mxu0 0
    %3123 = vmatpush1.bf16.msra.mxu0 0
    %3124 = vmatprep.subr.bf16.mxu0 0
    %3125 = vmatpush1.bf16.msra.mxu0 0
    %3126 = vmatprep.subr.bf16.mxu0 0
    %3127 = vmatpush1.bf16.msra.mxu0 0
    %3128 = vmatprep.subr.bf16.mxu0 0
    %3129 = vmatpush1.bf16.msra.mxu0 0
    %3130 = vmatprep.subr.bf16.mxu0 0
    %3131 = vmatpush1.bf16.msra.mxu0 0
    %3132 = vmatprep.subr.bf16.mxu0 0
    %3133 = vmatpush1.bf16.msra.mxu0 0
    %3134 = vmatprep.subr.bf16.mxu0 0
    %3135 = vmatpush1.bf16.msra.mxu0 0
    %3136 = vmatprep.subr.bf16.mxu0 0
    %3137 = vmatpush1.bf16.msra.mxu0 0
    %3138 = vmatprep.subr.bf16.mxu0 0
    %3139 = vmatpush1.bf16.msra.mxu0 0
    %3140 = vmatprep.subr.bf16.mxu0 0
    %3141 = vmatpush1.bf16.msra.mxu0 0
    %3142 = vmatprep.mubr.bf16.mxu0 0
    %3143 = vmatmul.mubr.bf16.gmra.mrb[0].mxu0 %v3105
    %v3144 = vpop.f32.mrb[0].mxu0
    %v3145 = vadd.f32 0.0, %v3144
    %v3146 = vpop.f32.mrb[0].mxu0
    %v3147 = vpop.f32.mrb[0].mxu0
    %v3148 = vadd.f32 0.0, %v3147
    %v3149 = vpop.f32.mrb[0].mxu0
    %3150 = vdwg.mxu0
    %v3151 = vadd.f32 %v2809, %v3145
    %v3152 = vadd.f32 %v2810, %v3148
    %s3153 = scalar_lea.vmem %s53, 96
    %v3154 = vld [vmem:[%s3153] sm:$0xff]
    %v3155 = vld [vmem:[%s3153 + $0x8] sm:$0xff]
    %v3156 = vld [vmem:[%s3153 + $0x10] sm:$0xff]
    %v3157 = vld [vmem:[%s3153 + $0x18] sm:$0xff]
    %v3158 = vpack.c.bf16 %v3155, %v3154
    %v3159 = vpack.c.bf16 %v3157, %v3156
    %s3160 = scalar_lea.vmem %s59, 3
    %v3161 = vld [vmem:[%s3160] sm:$0x1]
    %v3163 = vlaneseq
    %v3164 = vshrl.u32 %v3163, 7
    %v3165 = vsub.s32 0, %v3164
    %v3166 = vrot.slane %v3161, %v3165
    %3168 = vmatprep.subr.bf16.mxu0 0
    %3169 = vmatpush1.bf16.msra.mxu0 %v3158
    %3170 = vmatprep.subr.bf16.mxu0 0
    %3171 = vmatpush1.bf16.msra.mxu0 %v3159
    %3172 = vmatprep.subr.bf16.mxu0 0
    %3173 = vmatpush1.bf16.msra.mxu0 0
    %3174 = vmatprep.subr.bf16.mxu0 0
    %3175 = vmatpush1.bf16.msra.mxu0 0
    %3176 = vmatprep.subr.bf16.mxu0 0
    %3177 = vmatpush1.bf16.msra.mxu0 0
    %3178 = vmatprep.subr.bf16.mxu0 0
    %3179 = vmatpush1.bf16.msra.mxu0 0
    %3180 = vmatprep.subr.bf16.mxu0 0
    %3181 = vmatpush1.bf16.msra.mxu0 0
    %3182 = vmatprep.subr.bf16.mxu0 0
    %3183 = vmatpush1.bf16.msra.mxu0 0
    %3184 = vmatprep.subr.bf16.mxu0 0
    %3185 = vmatpush1.bf16.msra.mxu0 0
    %3186 = vmatprep.subr.bf16.mxu0 0
    %3187 = vmatpush1.bf16.msra.mxu0 0
    %3188 = vmatprep.subr.bf16.mxu0 0
    %3189 = vmatpush1.bf16.msra.mxu0 0
    %3190 = vmatprep.subr.bf16.mxu0 0
    %3191 = vmatpush1.bf16.msra.mxu0 0
    %3192 = vmatprep.subr.bf16.mxu0 0
    %3193 = vmatpush1.bf16.msra.mxu0 0
    %3194 = vmatprep.subr.bf16.mxu0 0
    %3195 = vmatpush1.bf16.msra.mxu0 0
    %3196 = vmatprep.subr.bf16.mxu0 0
    %3197 = vmatpush1.bf16.msra.mxu0 0
    %3198 = vmatprep.subr.bf16.mxu0 0
    %3199 = vmatpush1.bf16.msra.mxu0 0
    %3200 = vmatprep.mubr.bf16.mxu0 0
    %3201 = vmatmul.mubr.bf16.gmra.mrb[0].mxu0 %v2139
    %v3202 = vpop.f32.mrb[0].mxu0
    %v3203 = vadd.f32 %v3166, %v3202
    %v3204 = vpop.f32.mrb[0].mxu0
    %v3205 = vpop.f32.mrb[0].mxu0
    %v3206 = vadd.f32 %v3166, %v3205
    %v3207 = vpop.f32.mrb[0].mxu0
    %3208 = vdwg.mxu0
    %s3209 = scalar_lea.vmem %s55, 96
    %v3210 = vld [vmem:[%s3209] sm:$0xff]
    %v3211 = vld [vmem:[%s3209 + $0x8] sm:$0xff]
    %v3212 = vld [vmem:[%s3209 + $0x10] sm:$0xff]
    %v3213 = vld [vmem:[%s3209 + $0x18] sm:$0xff]
    %v3214 = vpack.c.bf16 %v3211, %v3210
    %v3215 = vpack.c.bf16 %v3213, %v3212
    %s3216 = scalar_lea.vmem %s61, 3
    %v3217 = vld [vmem:[%s3216] sm:$0x1]
    %v3219 = vlaneseq
    %v3220 = vshrl.u32 %v3219, 7
    %v3221 = vsub.s32 0, %v3220
    %v3222 = vrot.slane %v3217, %v3221
    %3224 = vmatprep.subr.bf16.mxu0 0
    %3225 = vmatpush1.bf16.msra.mxu0 %v3214
    %3226 = vmatprep.subr.bf16.mxu0 0
    %3227 = vmatpush1.bf16.msra.mxu0 %v3215
    %3228 = vmatprep.subr.bf16.mxu0 0
    %3229 = vmatpush1.bf16.msra.mxu0 0
    %3230 = vmatprep.subr.bf16.mxu0 0
    %3231 = vmatpush1.bf16.msra.mxu0 0
    %3232 = vmatprep.subr.bf16.mxu0 0
    %3233 = vmatpush1.bf16.msra.mxu0 0
    %3234 = vmatprep.subr.bf16.mxu0 0
    %3235 = vmatpush1.bf16.msra.mxu0 0
    %3236 = vmatprep.subr.bf16.mxu0 0
    %3237 = vmatpush1.bf16.msra.mxu0 0
    %3238 = vmatprep.subr.bf16.mxu0 0
    %3239 = vmatpush1.bf16.msra.mxu0 0
    %3240 = vmatprep.subr.bf16.mxu0 0
    %3241 = vmatpush1.bf16.msra.mxu0 0
    %3242 = vmatprep.subr.bf16.mxu0 0
    %3243 = vmatpush1.bf16.msra.mxu0 0
    %3244 = vmatprep.subr.bf16.mxu0 0
    %3245 = vmatpush1.bf16.msra.mxu0 0
    %3246 = vmatprep.subr.bf16.mxu0 0
    %3247 = vmatpush1.bf16.msra.mxu0 0
    %3248 = vmatprep.subr.bf16.mxu0 0
    %3249 = vmatpush1.bf16.msra.mxu0 0
    %3250 = vmatprep.subr.bf16.mxu0 0
    %3251 = vmatpush1.bf16.msra.mxu0 0
    %3252 = vmatprep.subr.bf16.mxu0 0
    %3253 = vmatpush1.bf16.msra.mxu0 0
    %3254 = vmatprep.subr.bf16.mxu0 0
    %3255 = vmatpush1.bf16.msra.mxu0 0
    %3256 = vmatprep.mubr.bf16.mxu0 0
    %3257 = vmatmul.mubr.bf16.gmra.mrb[0].mxu0 %v2139
    %v3258 = vpop.f32.mrb[0].mxu0
    %v3259 = vadd.f32 %v3222, %v3258
    %v3260 = vpop.f32.mrb[0].mxu0
    %v3261 = vpop.f32.mrb[0].mxu0
    %v3262 = vadd.f32 %v3222, %v3261
    %v3263 = vpop.f32.mrb[0].mxu0
    %3264 = vdwg.mxu0
    %s3265 = scalar_lea.vmem %s57, 96
    %v3266 = vld [vmem:[%s3265] sm:$0xff]
    %v3267 = vld [vmem:[%s3265 + $0x8] sm:$0xff]
    %v3268 = vld [vmem:[%s3265 + $0x10] sm:$0xff]
    %v3269 = vld [vmem:[%s3265 + $0x18] sm:$0xff]
    %v3270 = vpack.c.bf16 %v3267, %v3266
    %v3271 = vpack.c.bf16 %v3269, %v3268
    %s3272 = scalar_lea.vmem %s63, 3
    %v3273 = vld [vmem:[%s3272] sm:$0x1]
    %v3275 = vlaneseq
    %v3276 = vshrl.u32 %v3275, 7
    %v3277 = vsub.s32 0, %v3276
    %v3278 = vrot.slane %v3273, %v3277
    %3280 = vmatprep.subr.bf16.mxu0 0
    %3281 = vmatpush1.bf16.msra.mxu0 %v3270
    %3282 = vmatprep.subr.bf16.mxu0 0
    %3283 = vmatpush1.bf16.msra.mxu0 %v3271
    %3284 = vmatprep.subr.bf16.mxu0 0
    %3285 = vmatpush1.bf16.msra.mxu0 0
    %3286 = vmatprep.subr.bf16.mxu0 0
    %3287 = vmatpush1.bf16.msra.mxu0 0
    %3288 = vmatprep.subr.bf16.mxu0 0
    %3289 = vmatpush1.bf16.msra.mxu0 0
    %3290 = vmatprep.subr.bf16.mxu0 0
    %3291 = vmatpush1.bf16.msra.mxu0 0
    %3292 = vmatprep.subr.bf16.mxu0 0
    %3293 = vmatpush1.bf16.msra.mxu0 0
    %3294 = vmatprep.subr.bf16.mxu0 0
    %3295 = vmatpush1.bf16.msra.mxu0 0
    %3296 = vmatprep.subr.bf16.mxu0 0
    %3297 = vmatpush1.bf16.msra.mxu0 0
    %3298 = vmatprep.subr.bf16.mxu0 0
    %3299 = vmatpush1.bf16.msra.mxu0 0
    %3300 = vmatprep.subr.bf16.mxu0 0
    %3301 = vmatpush1.bf16.msra.mxu0 0
    %3302 = vmatprep.subr.bf16.mxu0 0
    %3303 = vmatpush1.bf16.msra.mxu0 0
    %3304 = vmatprep.subr.bf16.mxu0 0
    %3305 = vmatpush1.bf16.msra.mxu0 0
    %3306 = vmatprep.subr.bf16.mxu0 0
    %3307 = vmatpush1.bf16.msra.mxu0 0
    %3308 = vmatprep.subr.bf16.mxu0 0
    %3309 = vmatpush1.bf16.msra.mxu0 0
    %3310 = vmatprep.subr.bf16.mxu0 0
    %3311 = vmatpush1.bf16.msra.mxu0 0
    %3312 = vmatprep.mubr.bf16.mxu0 0
    %3313 = vmatmul.mubr.bf16.gmra.mrb[0].mxu0 %v2139
    %v3314 = vpop.f32.mrb[0].mxu0
    %v3315 = vadd.f32 %v3278, %v3314
    %v3316 = vpop.f32.mrb[0].mxu0
    %v3317 = vpop.f32.mrb[0].mxu0
    %v3318 = vadd.f32 %v3278, %v3317
    %v3319 = vpop.f32.mrb[0].mxu0
    %3320 = vdwg.mxu0
    %v3321 = vpack.c.bf16 %v3206, %v3203
    %v3322 = vpack.c.bf16 %v3262, %v3259
    %v3324 = vsel %vm700, %v3321, 0
    %v3327 = vsel %vm700, %v3322, 0
    %3329 = vmatprep.subr.bf16.mxu0 0
    %3330 = vmatpush1.bf16.xpose.msra.mxu0 %v3327
    %3331 = vmatprep.subr.bf16.mxu0 0
    %3332 = vmatpush1.bf16.xpose.msra.mxu0 0
    %3333 = vmatprep.subr.bf16.mxu0 0
    %3334 = vmatpush1.bf16.xpose.msra.mxu0 0
    %3335 = vmatprep.subr.bf16.mxu0 0
    %3336 = vmatpush1.bf16.xpose.msra.mxu0 0
    %3337 = vmatprep.subr.bf16.mxu0 0
    %3338 = vmatpush1.bf16.xpose.msra.mxu0 0
    %3339 = vmatprep.subr.bf16.mxu0 0
    %3340 = vmatpush1.bf16.xpose.msra.mxu0 0
    %3341 = vmatprep.subr.bf16.mxu0 0
    %3342 = vmatpush1.bf16.xpose.msra.mxu0 0
    %3343 = vmatprep.subr.bf16.mxu0 0
    %3344 = vmatpush1.bf16.xpose.msra.mxu0 0
    %3345 = vmatprep.subr.bf16.mxu0 0
    %3346 = vmatpush1.bf16.xpose.msra.mxu0 0
    %3347 = vmatprep.subr.bf16.mxu0 0
    %3348 = vmatpush1.bf16.xpose.msra.mxu0 0
    %3349 = vmatprep.subr.bf16.mxu0 0
    %3350 = vmatpush1.bf16.xpose.msra.mxu0 0
    %3351 = vmatprep.subr.bf16.mxu0 0
    %3352 = vmatpush1.bf16.xpose.msra.mxu0 0
    %3353 = vmatprep.subr.bf16.mxu0 0
    %3354 = vmatpush1.bf16.xpose.msra.mxu0 0
    %3355 = vmatprep.subr.bf16.mxu0 0
    %3356 = vmatpush1.bf16.xpose.msra.mxu0 0
    %3357 = vmatprep.subr.bf16.mxu0 0
    %3358 = vmatpush1.bf16.xpose.msra.mxu0 0
    %3359 = vmatprep.subr.bf16.mxu0 0
    %3360 = vmatpush1.bf16.xpose.msra.mxu0 0
    %3361 = vmatprep.mubr.bf16.mxu0 0
    %3362 = vmatmul.mubr.bf16.gmra.mrb[0].mxu0 %v3324
    %v3363 = vpop.f32.mrb[0].mxu0
    %v3364 = vadd.f32 0.0, %v3363
    %v3365 = vpop.f32.mrb[0].mxu0
    %v3366 = vpop.f32.mrb[0].mxu0
    %v3367 = vadd.f32 0.0, %v3366
    %v3368 = vpop.f32.mrb[0].mxu0
    %3369 = vdwg.mxu0
    %v3370 = vmul.f32 %v3364, 0.35355338
    %v3371 = vmul.f32 %v3367, 0.35355338
    %v3372 = vsel %vm529, %v3370, -1e+09
    %v3373 = vsel %vm530, %v3371, -1e+09
    %v3374 = vsel %vm752, %v3372, -inf
    %3375 = vmax.xlane.f32.xlu0 %v3374
    %v3376 = vpop.xlane.xlu0 %3375
    %v3377 = vsel %vm752, %v3373, -inf
    %3378 = vmax.xlane.f32.xlu0 %v3377
    %v3379 = vpop.xlane.xlu0 %3378
    %v3380 = vsub.f32 %v3372, %v3376
    %v3381 = vsub.f32 %v3373, %v3379
    %v3382 = vmul.f32 %v3380, 1.442695
    %v3383 = vpow.pop %v3382
    %v3384 = vmul.f32 %v3381, 1.442695
    %v3385 = vpow.pop %v3384
    %v3386 = vsel %vm752, %v3383, 0.0
    %3387 = vadd.xlane.f32.xlu0 %v3386
    %v3388 = vpop.xlane.xlu0 %3387
    %v3389 = vsel %vm752, %v3385, 0.0
    %3390 = vadd.xlane.f32.xlu0 %v3389
    %v3391 = vpop.xlane.xlu0 %3390
    %v3392 = vrcp.pop %v3388
    %v3393 = vrcp.pop %v3391
    %v3394 = vmul.f32 %v3383, %v3392
    %v3395 = vmul.f32 %v3385, %v3393
    %v3396 = vpack.c.bf16 %v3395, %v3394
    %v3397 = vpack.c.bf16 %v3318, %v3315
    %v3399 = vsel %vm752, %v3396, 0
    %3401 = vmatprep.subr.bf16.mxu0 0
    %3402 = vmatpush1.bf16.msra.mxu0 %v3397
    %3403 = vmatprep.subr.bf16.mxu0 0
    %3404 = vmatpush1.bf16.msra.mxu0 0
    %3405 = vmatprep.subr.bf16.mxu0 0
    %3406 = vmatpush1.bf16.msra.mxu0 0
    %3407 = vmatprep.subr.bf16.mxu0 0
    %3408 = vmatpush1.bf16.msra.mxu0 0
    %3409 = vmatprep.subr.bf16.mxu0 0
    %3410 = vmatpush1.bf16.msra.mxu0 0
    %3411 = vmatprep.subr.bf16.mxu0 0
    %3412 = vmatpush1.bf16.msra.mxu0 0
    %3413 = vmatprep.subr.bf16.mxu0 0
    %3414 = vmatpush1.bf16.msra.mxu0 0
    %3415 = vmatprep.subr.bf16.mxu0 0
    %3416 = vmatpush1.bf16.msra.mxu0 0
    %3417 = vmatprep.subr.bf16.mxu0 0
    %3418 = vmatpush1.bf16.msra.mxu0 0
    %3419 = vmatprep.subr.bf16.mxu0 0
    %3420 = vmatpush1.bf16.msra.mxu0 0
    %3421 = vmatprep.subr.bf16.mxu0 0
    %3422 = vmatpush1.bf16.msra.mxu0 0
    %3423 = vmatprep.subr.bf16.mxu0 0
    %3424 = vmatpush1.bf16.msra.mxu0 0
    %3425 = vmatprep.subr.bf16.mxu0 0
    %3426 = vmatpush1.bf16.msra.mxu0 0
    %3427 = vmatprep.subr.bf16.mxu0 0
    %3428 = vmatpush1.bf16.msra.mxu0 0
    %3429 = vmatprep.subr.bf16.mxu0 0
    %3430 = vmatpush1.bf16.msra.mxu0 0
    %3431 = vmatprep.subr.bf16.mxu0 0
    %3432 = vmatpush1.bf16.msra.mxu0 0
    %3433 = vmatprep.mubr.bf16.mxu0 0
    %3434 = vmatmul.mubr.bf16.gmra.mrb[0].mxu0 %v3399
    %v3435 = vpop.f32.mrb[0].mxu0
    %v3436 = vadd.f32 0.0, %v3435
    %v3437 = vpop.f32.mrb[0].mxu0
    %v3438 = vpop.f32.mrb[0].mxu0
    %v3439 = vadd.f32 0.0, %v3438
    %v3440 = vpop.f32.mrb[0].mxu0
    %3441 = vdwg.mxu0
    %s3442 = scalar_lea.vmem %s65, 24
    %v3443 = vld [vmem:[%s3442] sm:$0xff]
    %v3444 = vpack.c.bf16 %v3439, %v3436
    %v3445 = vpack.c.bf16 %v3443, %v3443
    %v3447 = vsel %vm700, %v3444, 0
    %v3450 = vsel %vm827, %v3445, 0
    %3452 = vmatprep.subr.bf16.mxu0 0
    %3453 = vmatpush1.bf16.msra.mxu0 %v3450
    %3454 = vmatprep.subr.bf16.mxu0 0
    %3455 = vmatpush1.bf16.msra.mxu0 0
    %3456 = vmatprep.subr.bf16.mxu0 0
    %3457 = vmatpush1.bf16.msra.mxu0 0
    %3458 = vmatprep.subr.bf16.mxu0 0
    %3459 = vmatpush1.bf16.msra.mxu0 0
    %3460 = vmatprep.subr.bf16.mxu0 0
    %3461 = vmatpush1.bf16.msra.mxu0 0
    %3462 = vmatprep.subr.bf16.mxu0 0
    %3463 = vmatpush1.bf16.msra.mxu0 0
    %3464 = vmatprep.subr.bf16.mxu0 0
    %3465 = vmatpush1.bf16.msra.mxu0 0
    %3466 = vmatprep.subr.bf16.mxu0 0
    %3467 = vmatpush1.bf16.msra.mxu0 0
    %3468 = vmatprep.subr.bf16.mxu0 0
    %3469 = vmatpush1.bf16.msra.mxu0 0
    %3470 = vmatprep.subr.bf16.mxu0 0
    %3471 = vmatpush1.bf16.msra.mxu0 0
    %3472 = vmatprep.subr.bf16.mxu0 0
    %3473 = vmatpush1.bf16.msra.mxu0 0
    %3474 = vmatprep.subr.bf16.mxu0 0
    %3475 = vmatpush1.bf16.msra.mxu0 0
    %3476 = vmatprep.subr.bf16.mxu0 0
    %3477 = vmatpush1.bf16.msra.mxu0 0
    %3478 = vmatprep.subr.bf16.mxu0 0
    %3479 = vmatpush1.bf16.msra.mxu0 0
    %3480 = vmatprep.subr.bf16.mxu0 0
    %3481 = vmatpush1.bf16.msra.mxu0 0
    %3482 = vmatprep.subr.bf16.mxu0 0
    %3483 = vmatpush1.bf16.msra.mxu0 0
    %3484 = vmatprep.mubr.bf16.mxu0 0
    %3485 = vmatmul.mubr.bf16.gmra.mrb[0].mxu0 %v3447
    %v3486 = vpop.f32.mrb[0].mxu0
    %v3487 = vadd.f32 0.0, %v3486
    %v3488 = vpop.f32.mrb[0].mxu0
    %v3489 = vpop.f32.mrb[0].mxu0
    %v3490 = vadd.f32 0.0, %v3489
    %v3491 = vpop.f32.mrb[0].mxu0
    %3492 = vdwg.mxu0
    %v3493 = vadd.f32 %v3151, %v3487
    %v3494 = vadd.f32 %v3152, %v3490
    %v3495 = vadd.f32 %v2121, %v3493
    %v3496 = vadd.f32 %v2122, %v3494
    %v3497 = vld [vmem:[%s69] sm:$0x1]
    %v3498 = vld [vmem:[%s71] sm:$0x1]
    %v3499 = vsel %vm313, %v3495, 0.0
    %3500 = vadd.xlane.f32.xlu0 %v3499
    %v3501 = vpop.xlane.xlu0 %3500
    %v3502 = vsel %vm313, %v3496, 0.0
    %3503 = vadd.xlane.f32.xlu0 %v3502
    %v3504 = vpop.xlane.xlu0 %3503
    %v3505 = vmul.f32 %v3501, %v1916
    %v3506 = vmul.f32 %v3504, %v1916
    %v3507 = vsub.f32 %v3495, %v3505
    %v3508 = vsub.f32 %v3496, %v3506
    %v3509 = vmul.f32 %v3507, %v3507
    %v3510 = vmul.f32 %v3508, %v3508
    %v3511 = vsel %vm313, %v3509, 0.0
    %3512 = vadd.xlane.f32.xlu0 %v3511
    %v3513 = vpop.xlane.xlu0 %3512
    %v3514 = vsel %vm313, %v3510, 0.0
    %3515 = vadd.xlane.f32.xlu0 %v3514
    %v3516 = vpop.xlane.xlu0 %3515
    %v3517 = vmul.f32 %v3513, %v1916
    %v3518 = vmul.f32 %v3516, %v1916
    %v3519 = vadd.f32 %v3517, 1e-05
    %v3520 = vadd.f32 %v3518, 1e-05
    %v3521 = vrsqrt.pop %v3519
    %v3522 = vrsqrt.pop %v3520
    %v3523 = vmul.f32 %v3507, %v3521
    %v3524 = vmul.f32 %v3508, %v3522
    %v3526 = vlaneseq
    %v3527 = vshrl.u32 %v3526, 7
    %v3528 = vsub.s32 0, %v3527
    %v3529 = vrot.slane %v3497, %v3528
    %v3531 = vmul.f32 %v3523, %v3529
    %v3532 = vmul.f32 %v3524, %v3529
    %v3534 = vlaneseq
    %v3535 = vshrl.u32 %v3534, 7
    %v3536 = vsub.s32 0, %v3535
    %v3537 = vrot.slane %v3498, %v3536
    %v3539 = vadd.f32 %v3531, %v3537
    %v3540 = vadd.f32 %v3532, %v3537
    %v3541 = vld [vmem:[%s73] sm:$0xff]
    %v3542 = vld [vmem:[%s73 + $0x8] sm:$0xff]
    %v3543 = vld [vmem:[%s73 + $0x10] sm:$0xff]
    %v3544 = vld [vmem:[%s73 + $0x18] sm:$0xff]
    %v3545 = vpack.c.bf16 %v3540, %v3539
    %v3546 = vpack.c.bf16 %v3542, %v3541
    %v3547 = vpack.c.bf16 %v3544, %v3543
    %v3548 = vld [vmem:[%s75] sm:$0x1]
    %v3550 = vlaneseq
    %v3551 = vshrl.u32 %v3550, 7
    %v3552 = vsub.s32 0, %v3551
    %v3553 = vrot.slane %v3548, %v3552
    %v3556 = vsel %vm313, %v3545, 0
    %3558 = vmatprep.subr.bf16.mxu0 0
    %3559 = vmatpush1.bf16.msra.mxu0 %v3546
    %3560 = vmatprep.subr.bf16.mxu0 0
    %3561 = vmatpush1.bf16.msra.mxu0 %v3547
    %3562 = vmatprep.subr.bf16.mxu0 0
    %3563 = vmatpush1.bf16.msra.mxu0 0
    %3564 = vmatprep.subr.bf16.mxu0 0
    %3565 = vmatpush1.bf16.msra.mxu0 0
    %3566 = vmatprep.subr.bf16.mxu0 0
    %3567 = vmatpush1.bf16.msra.mxu0 0
    %3568 = vmatprep.subr.bf16.mxu0 0
    %3569 = vmatpush1.bf16.msra.mxu0 0
    %3570 = vmatprep.subr.bf16.mxu0 0
    %3571 = vmatpush1.bf16.msra.mxu0 0
    %3572 = vmatprep.subr.bf16.mxu0 0
    %3573 = vmatpush1.bf16.msra.mxu0 0
    %3574 = vmatprep.subr.bf16.mxu0 0
    %3575 = vmatpush1.bf16.msra.mxu0 0
    %3576 = vmatprep.subr.bf16.mxu0 0
    %3577 = vmatpush1.bf16.msra.mxu0 0
    %3578 = vmatprep.subr.bf16.mxu0 0
    %3579 = vmatpush1.bf16.msra.mxu0 0
    %3580 = vmatprep.subr.bf16.mxu0 0
    %3581 = vmatpush1.bf16.msra.mxu0 0
    %3582 = vmatprep.subr.bf16.mxu0 0
    %3583 = vmatpush1.bf16.msra.mxu0 0
    %3584 = vmatprep.subr.bf16.mxu0 0
    %3585 = vmatpush1.bf16.msra.mxu0 0
    %3586 = vmatprep.subr.bf16.mxu0 0
    %3587 = vmatpush1.bf16.msra.mxu0 0
    %3588 = vmatprep.subr.bf16.mxu0 0
    %3589 = vmatpush1.bf16.msra.mxu0 0
    %3590 = vmatprep.mubr.bf16.mxu0 0
    %3591 = vmatmul.mubr.bf16.gmra.mrb[0].mxu0 %v3556
    %v3592 = vpop.f32.mrb[0].mxu0
    %v3593 = vadd.f32 %v3553, %v3592
    %v3594 = vpop.f32.mrb[0].mxu0
    %v3595 = vpop.f32.mrb[0].mxu0
    %v3596 = vadd.f32 %v3553, %v3595
    %v3597 = vpop.f32.mrb[0].mxu0
    %3598 = vdwg.mxu0
    %v3599 = vmax.f32 %v3593, 0.0
    %v3600 = vmax.f32 %v3596, 0.0
    %v3601 = vld [vmem:[%s77] sm:$0xff]
    %v3602 = vld [vmem:[%s77 + $0x8] sm:$0xff]
    %v3603 = vld [vmem:[%s77 + $0x10] sm:$0xff]
    %v3604 = vld [vmem:[%s77 + $0x18] sm:$0xff]
    %v3605 = vld [vmem:[%s77 + $0x20] sm:$0xff]
    %v3606 = vld [vmem:[%s77 + $0x28] sm:$0xff]
    %v3607 = vld [vmem:[%s77 + $0x30] sm:$0xff]
    %v3608 = vld [vmem:[%s77 + $0x38] sm:$0xff]
    %v3609 = vpack.c.bf16 %v3600, %v3599
    %v3610 = vpack.c.bf16 %v3602, %v3601
    %v3611 = vpack.c.bf16 %v3604, %v3603
    %v3612 = vpack.c.bf16 %v3606, %v3605
    %v3613 = vpack.c.bf16 %v3608, %v3607
    %v3614 = vld [vmem:[%s79] sm:$0x1]
    %v3616 = vlaneseq
    %v3617 = vshrl.u32 %v3616, 7
    %v3618 = vsub.s32 0, %v3617
    %v3619 = vrot.slane %v3614, %v3618
    %v3622 = vsel %vm380, %v3609, 0
    %3624 = vmatprep.subr.bf16.mxu0 0
    %3625 = vmatpush1.bf16.msra.mxu0 %v3610
    %3626 = vmatprep.subr.bf16.mxu0 0
    %3627 = vmatpush1.bf16.msra.mxu0 %v3611
    %3628 = vmatprep.subr.bf16.mxu0 0
    %3629 = vmatpush1.bf16.msra.mxu0 %v3612
    %3630 = vmatprep.subr.bf16.mxu0 0
    %3631 = vmatpush1.bf16.msra.mxu0 %v3613
    %3632 = vmatprep.subr.bf16.mxu0 0
    %3633 = vmatpush1.bf16.msra.mxu0 0
    %3634 = vmatprep.subr.bf16.mxu0 0
    %3635 = vmatpush1.bf16.msra.mxu0 0
    %3636 = vmatprep.subr.bf16.mxu0 0
    %3637 = vmatpush1.bf16.msra.mxu0 0
    %3638 = vmatprep.subr.bf16.mxu0 0
    %3639 = vmatpush1.bf16.msra.mxu0 0
    %3640 = vmatprep.subr.bf16.mxu0 0
    %3641 = vmatpush1.bf16.msra.mxu0 0
    %3642 = vmatprep.subr.bf16.mxu0 0
    %3643 = vmatpush1.bf16.msra.mxu0 0
    %3644 = vmatprep.subr.bf16.mxu0 0
    %3645 = vmatpush1.bf16.msra.mxu0 0
    %3646 = vmatprep.subr.bf16.mxu0 0
    %3647 = vmatpush1.bf16.msra.mxu0 0
    %3648 = vmatprep.subr.bf16.mxu0 0
    %3649 = vmatpush1.bf16.msra.mxu0 0
    %3650 = vmatprep.subr.bf16.mxu0 0
    %3651 = vmatpush1.bf16.msra.mxu0 0
    %3652 = vmatprep.subr.bf16.mxu0 0
    %3653 = vmatpush1.bf16.msra.mxu0 0
    %3654 = vmatprep.subr.bf16.mxu0 0
    %3655 = vmatpush1.bf16.msra.mxu0 0
    %3656 = vmatprep.mubr.bf16.mxu0 0
    %3657 = vmatmul.mubr.bf16.gmra.mrb[0].mxu0 %v3622
    %v3658 = vpop.f32.mrb[0].mxu0
    %v3659 = vadd.f32 %v3619, %v3658
    %v3660 = vpop.f32.mrb[0].mxu0
    %v3661 = vpop.f32.mrb[0].mxu0
    %v3662 = vadd.f32 %v3619, %v3661
    %v3663 = vpop.f32.mrb[0].mxu0
    %3664 = vdwg.mxu0
    %v3665 = vadd.f32 %v3539, %v3659
    %v3666 = vadd.f32 %v3540, %v3662
    %v3667 = vld [vmem:[%s81] sm:$0x1]
    %v3668 = vld [vmem:[%s83] sm:$0x1]
    %v3669 = vsel %vm313, %v3665, 0.0
    %3670 = vadd.xlane.f32.xlu0 %v3669
    %v3671 = vpop.xlane.xlu0 %3670
    %v3672 = vsel %vm313, %v3666, 0.0
    %3673 = vadd.xlane.f32.xlu0 %v3672
    %v3674 = vpop.xlane.xlu0 %3673
    %v3675 = vmul.f32 %v3671, %v1916
    %v3676 = vmul.f32 %v3674, %v1916
    %v3677 = vsub.f32 %v3665, %v3675
    %v3678 = vsub.f32 %v3666, %v3676
    %v3679 = vmul.f32 %v3677, %v3677
    %v3680 = vmul.f32 %v3678, %v3678
    %v3681 = vsel %vm313, %v3679, 0.0
    %3682 = vadd.xlane.f32.xlu0 %v3681
    %v3683 = vpop.xlane.xlu0 %3682
    %v3684 = vsel %vm313, %v3680, 0.0
    %3685 = vadd.xlane.f32.xlu0 %v3684
    %v3686 = vpop.xlane.xlu0 %3685
    %v3687 = vmul.f32 %v3683, %v1916
    %v3688 = vmul.f32 %v3686, %v1916
    %v3689 = vadd.f32 %v3687, 1e-05
    %v3690 = vadd.f32 %v3688, 1e-05
    %v3691 = vrsqrt.pop %v3689
    %v3692 = vrsqrt.pop %v3690
    %v3693 = vmul.f32 %v3677, %v3691
    %v3694 = vmul.f32 %v3678, %v3692
    %v3696 = vlaneseq
    %v3697 = vshrl.u32 %v3696, 7
    %v3698 = vsub.s32 0, %v3697
    %v3699 = vrot.slane %v3667, %v3698
    %v3701 = vmul.f32 %v3693, %v3699
    %v3702 = vmul.f32 %v3694, %v3699
    %v3704 = vlaneseq
    %v3705 = vshrl.u32 %v3704, 7
    %v3706 = vsub.s32 0, %v3705
    %v3707 = vrot.slane %v3668, %v3706
    %v3709 = vadd.f32 %v3701, %v3707
    %v3710 = vadd.f32 %v3702, %v3707
    %v3711 = vld [vmem:[%s85] sm:$0xff]
    %v3712 = vld [vmem:[%s85 + $0x8] sm:$0xff]
    %v3713 = vld [vmem:[%s85 + $0x10] sm:$0xff]
    %v3714 = vld [vmem:[%s85 + $0x18] sm:$0xff]
    %v3715 = vpack.c.bf16 %v3710, %v3709
    %v3716 = vpack.c.bf16 %v3712, %v3711
    %v3717 = vpack.c.bf16 %v3714, %v3713
    %v3718 = vld [vmem:[%s87] sm:$0xff]
    %v3719 = vld [vmem:[%s87 + $0x8] sm:$0xff]
    %v3720 = vld [vmem:[%s87 + $0x10] sm:$0xff]
    %v3721 = vld [vmem:[%s87 + $0x18] sm:$0xff]
    %v3722 = vpack.c.bf16 %v422, %v419
    %v3723 = vpack.c.bf16 %v3719, %v3718
    %v3724 = vpack.c.bf16 %v3721, %v3720
    %v3726 = vsel %vm313, %v3722, 0
    %3728 = vmatprep.subr.bf16.mxu0 0
    %3729 = vmatpush1.bf16.msra.mxu0 %v3723
    %3730 = vmatprep.subr.bf16.mxu0 0
    %3731 = vmatpush1.bf16.msra.mxu0 %v3724
    %3732 = vmatprep.subr.bf16.mxu0 0
    %3733 = vmatpush1.bf16.msra.mxu0 0
    %3734 = vmatprep.subr.bf16.mxu0 0
    %3735 = vmatpush1.bf16.msra.mxu0 0
    %3736 = vmatprep.subr.bf16.mxu0 0
    %3737 = vmatpush1.bf16.msra.mxu0 0
    %3738 = vmatprep.subr.bf16.mxu0 0
    %3739 = vmatpush1.bf16.msra.mxu0 0
    %3740 = vmatprep.subr.bf16.mxu0 0
    %3741 = vmatpush1.bf16.msra.mxu0 0
    %3742 = vmatprep.subr.bf16.mxu0 0
    %3743 = vmatpush1.bf16.msra.mxu0 0
    %3744 = vmatprep.subr.bf16.mxu0 0
    %3745 = vmatpush1.bf16.msra.mxu0 0
    %3746 = vmatprep.subr.bf16.mxu0 0
    %3747 = vmatpush1.bf16.msra.mxu0 0
    %3748 = vmatprep.subr.bf16.mxu0 0
    %3749 = vmatpush1.bf16.msra.mxu0 0
    %3750 = vmatprep.subr.bf16.mxu0 0
    %3751 = vmatpush1.bf16.msra.mxu0 0
    %3752 = vmatprep.subr.bf16.mxu0 0
    %3753 = vmatpush1.bf16.msra.mxu0 0
    %3754 = vmatprep.subr.bf16.mxu0 0
    %3755 = vmatpush1.bf16.msra.mxu0 0
    %3756 = vmatprep.subr.bf16.mxu0 0
    %3757 = vmatpush1.bf16.msra.mxu0 0
    %3758 = vmatprep.subr.bf16.mxu0 0
    %3759 = vmatpush1.bf16.msra.mxu0 0
    %3760 = vmatprep.mubr.bf16.mxu0 0
    %3761 = vmatmul.mubr.bf16.gmra.mrb[0].mxu0 %v3726
    %v3762 = vpop.f32.mrb[0].mxu0
    %v3763 = vadd.f32 0.0, %v3762
    %v3764 = vpop.f32.mrb[0].mxu0
    %v3765 = vpop.f32.mrb[0].mxu0
    %v3766 = vadd.f32 0.0, %v3765
    %v3767 = vpop.f32.mrb[0].mxu0
    %3768 = vdwg.mxu0
    %v3770 = vsel %vm313, %v3715, 0
    %3772 = vmatprep.subr.bf16.mxu0 0
    %3773 = vmatpush1.bf16.msra.mxu0 %v3716
    %3774 = vmatprep.subr.bf16.mxu0 0
    %3775 = vmatpush1.bf16.msra.mxu0 %v3717
    %3776 = vmatprep.subr.bf16.mxu0 0
    %3777 = vmatpush1.bf16.msra.mxu0 0
    %3778 = vmatprep.subr.bf16.mxu0 0
    %3779 = vmatpush1.bf16.msra.mxu0 0
    %3780 = vmatprep.subr.bf16.mxu0 0
    %3781 = vmatpush1.bf16.msra.mxu0 0
    %3782 = vmatprep.subr.bf16.mxu0 0
    %3783 = vmatpush1.bf16.msra.mxu0 0
    %3784 = vmatprep.subr.bf16.mxu0 0
    %3785 = vmatpush1.bf16.msra.mxu0 0
    %3786 = vmatprep.subr.bf16.mxu0 0
    %3787 = vmatpush1.bf16.msra.mxu0 0
    %3788 = vmatprep.subr.bf16.mxu0 0
    %3789 = vmatpush1.bf16.msra.mxu0 0
    %3790 = vmatprep.subr.bf16.mxu0 0
    %3791 = vmatpush1.bf16.msra.mxu0 0
    %3792 = vmatprep.subr.bf16.mxu0 0
    %3793 = vmatpush1.bf16.msra.mxu0 0
    %3794 = vmatprep.subr.bf16.mxu0 0
    %3795 = vmatpush1.bf16.msra.mxu0 0
    %3796 = vmatprep.subr.bf16.mxu0 0
    %3797 = vmatpush1.bf16.msra.mxu0 0
    %3798 = vmatprep.subr.bf16.mxu0 0
    %3799 = vmatpush1.bf16.msra.mxu0 0
    %3800 = vmatprep.subr.bf16.mxu0 0
    %3801 = vmatpush1.bf16.msra.mxu0 0
    %3802 = vmatprep.subr.bf16.mxu0 0
    %3803 = vmatpush1.bf16.msra.mxu0 0
    %3804 = vmatprep.mubr.bf16.mxu0 0
    %3805 = vmatmul.mubr.bf16.gmra.mrb[0].mxu0 %v3770
    %v3806 = vpop.f32.mrb[0].mxu0
    %v3807 = vadd.f32 %v3763, %v3806
    %v3808 = vpop.f32.mrb[0].mxu0
    %v3809 = vpop.f32.mrb[0].mxu0
    %v3810 = vadd.f32 %v3766, %v3809
    %v3811 = vpop.f32.mrb[0].mxu0
    %3812 = vdwg.mxu0
    %v3813 = vld [vmem:[#allocation2] sm:$0x1]
    %v3815 = vlaneseq
    %v3816 = vshrl.u32 %v3815, 7
    %v3817 = vsub.s32 0, %v3816
    %v3818 = vrot.slane %v3813, %v3817
    %v3820 = vadd.f32 %v3807, %v3818
    %v3821 = vadd.f32 %v3810, %v3818
    %v3822 = vmax.f32 %v3820, 0.0
    %v3823 = vmax.f32 %v3821, 0.0
    %v3824 = vld [vmem:[%s91] sm:$0xff]
    %v3825 = vld [vmem:[%s91 + $0x8] sm:$0xff]
    %v3826 = vld [vmem:[%s91 + $0x10] sm:$0xff]
    %v3827 = vld [vmem:[%s91 + $0x18] sm:$0xff]
    %v3828 = vld [vmem:[%s91 + $0x20] sm:$0xff]
    %v3829 = vld [vmem:[%s91 + $0x28] sm:$0xff]
    %v3830 = vld [vmem:[%s91 + $0x30] sm:$0xff]
    %v3831 = vld [vmem:[%s91 + $0x38] sm:$0xff]
    %v3832 = vld [vmem:[%s91 + $0x40] sm:$0xff]
    %v3833 = vld [vmem:[%s91 + $0x48] sm:$0xff]
    %v3834 = vld [vmem:[%s91 + $0x50] sm:$0xff]
    %v3835 = vld [vmem:[%s91 + $0x58] sm:$0xff]
    %v3836 = vld [vmem:[%s91 + $0x60] sm:$0xff]
    %v3837 = vld [vmem:[%s91 + $0x68] sm:$0xff]
    %v3838 = vld [vmem:[%s91 + $0x70] sm:$0xff]
    %v3839 = vld [vmem:[%s91 + $0x78] sm:$0xff]
    %v3840 = vpack.c.bf16 %v3823, %v3822
    %v3841 = vpack.c.bf16 %v3825, %v3824
    %v3842 = vpack.c.bf16 %v3827, %v3826
    %v3843 = vpack.c.bf16 %v3829, %v3828
    %v3844 = vpack.c.bf16 %v3831, %v3830
    %v3845 = vpack.c.bf16 %v3833, %v3832
    %v3846 = vpack.c.bf16 %v3835, %v3834
    %v3847 = vpack.c.bf16 %v3837, %v3836
    %v3848 = vpack.c.bf16 %v3839, %v3838
    %v3849 = vld [vmem:[#allocation4] sm:$0x1]
    %v3851 = vlaneseq
    %v3852 = vshrl.u32 %v3851, 7
    %v3853 = vsub.s32 0, %v3852
    %v3854 = vrot.slane %v3849, %v3853
    %3856 = vmatprep.subr.bf16.mxu0 0
    %3857 = vmatpush1.bf16.msra.mxu0 %v3841
    %3858 = vmatprep.subr.bf16.mxu0 0
    %3859 = vmatpush1.bf16.msra.mxu0 %v3842
    %3860 = vmatprep.subr.bf16.mxu0 0
    %3861 = vmatpush1.bf16.msra.mxu0 %v3843
    %3862 = vmatprep.subr.bf16.mxu0 0
    %3863 = vmatpush1.bf16.msra.mxu0 %v3844
    %3864 = vmatprep.subr.bf16.mxu0 0
    %3865 = vmatpush1.bf16.msra.mxu0 %v3845
    %3866 = vmatprep.subr.bf16.mxu0 0
    %3867 = vmatpush1.bf16.msra.mxu0 %v3846
    %3868 = vmatprep.subr.bf16.mxu0 0
    %3869 = vmatpush1.bf16.msra.mxu0 %v3847
    %3870 = vmatprep.subr.bf16.mxu0 0
    %3871 = vmatpush1.bf16.msra.mxu0 %v3848
    %3872 = vmatprep.subr.bf16.mxu0 0
    %3873 = vmatpush1.bf16.msra.mxu0 0
    %3874 = vmatprep.subr.bf16.mxu0 0
    %3875 = vmatpush1.bf16.msra.mxu0 0
    %3876 = vmatprep.subr.bf16.mxu0 0
    %3877 = vmatpush1.bf16.msra.mxu0 0
    %3878 = vmatprep.subr.bf16.mxu0 0
    %3879 = vmatpush1.bf16.msra.mxu0 0
    %3880 = vmatprep.subr.bf16.mxu0 0
    %3881 = vmatpush1.bf16.msra.mxu0 0
    %3882 = vmatprep.subr.bf16.mxu0 0
    %3883 = vmatpush1.bf16.msra.mxu0 0
    %3884 = vmatprep.subr.bf16.mxu0 0
    %3885 = vmatpush1.bf16.msra.mxu0 0
    %3886 = vmatprep.subr.bf16.mxu0 0
    %3887 = vmatpush1.bf16.msra.mxu0 0
    %3888 = vmatprep.mubr.bf16.mxu0 0
    %3889 = vmatmul.mubr.bf16.gmra.mrb[0].mxu0 %v3840
    %v3890 = vpop.f32.mrb[0].mxu0
    %v3891 = vadd.f32 %v3854, %v3890
    %v3892 = vpop.f32.mrb[0].mxu0
    %v3893 = vpop.f32.mrb[0].mxu0
    %v3894 = vadd.f32 %v3854, %v3893
    %v3895 = vpop.f32.mrb[0].mxu0
    %3896 = vdwg.mxu0
    %v3897 = vmax.f32 %v3891, 0.0
    %v3898 = vmax.f32 %v3894, 0.0
    %v3899 = vld [vmem:[%s95] sm:$0xff]
    %v3900 = vld [vmem:[%s95 + $0x8] sm:$0xff]
    %v3901 = vld [vmem:[%s95 + $0x10] sm:$0xff]
    %v3902 = vld [vmem:[%s95 + $0x18] sm:$0xff]
    %v3903 = vld [vmem:[%s95 + $0x20] sm:$0xff]
    %v3904 = vld [vmem:[%s95 + $0x28] sm:$0xff]
    %v3905 = vld [vmem:[%s95 + $0x30] sm:$0xff]
    %v3906 = vld [vmem:[%s95 + $0x38] sm:$0xff]
    %v3907 = vld [vmem:[%s95 + $0x40] sm:$0xff]
    %v3908 = vld [vmem:[%s95 + $0x48] sm:$0xff]
    %v3909 = vld [vmem:[%s95 + $0x50] sm:$0xff]
    %v3910 = vld [vmem:[%s95 + $0x58] sm:$0xff]
    %v3911 = vld [vmem:[%s95 + $0x60] sm:$0xff]
    %v3912 = vld [vmem:[%s95 + $0x68] sm:$0xff]
    %v3913 = vld [vmem:[%s95 + $0x70] sm:$0xff]
    %v3914 = vld [vmem:[%s95 + $0x78] sm:$0xff]
    %v3915 = vpack.c.bf16 %v3898, %v3897
    %v3916 = vpack.c.bf16 %v3900, %v3899
    %v3917 = vpack.c.bf16 %v3902, %v3901
    %v3918 = vpack.c.bf16 %v3904, %v3903
    %v3919 = vpack.c.bf16 %v3906, %v3905
    %v3920 = vpack.c.bf16 %v3908, %v3907
    %v3921 = vpack.c.bf16 %v3910, %v3909
    %v3922 = vpack.c.bf16 %v3912, %v3911
    %v3923 = vpack.c.bf16 %v3914, %v3913
    %v3924 = vld [vmem:[#allocation6] sm:$0x1]
    %v3926 = vlaneseq
    %v3927 = vshrl.u32 %v3926, 7
    %v3928 = vsub.s32 0, %v3927
    %v3929 = vrot.slane %v3924, %v3928
    %3931 = vmatprep.subr.bf16.mxu0 0
    %3932 = vmatpush1.bf16.msra.mxu0 %v3916
    %3933 = vmatprep.subr.bf16.mxu0 0
    %3934 = vmatpush1.bf16.msra.mxu0 %v3917
    %3935 = vmatprep.subr.bf16.mxu0 0
    %3936 = vmatpush1.bf16.msra.mxu0 %v3918
    %3937 = vmatprep.subr.bf16.mxu0 0
    %3938 = vmatpush1.bf16.msra.mxu0 %v3919
    %3939 = vmatprep.subr.bf16.mxu0 0
    %3940 = vmatpush1.bf16.msra.mxu0 %v3920
    %3941 = vmatprep.subr.bf16.mxu0 0
    %3942 = vmatpush1.bf16.msra.mxu0 %v3921
    %3943 = vmatprep.subr.bf16.mxu0 0
    %3944 = vmatpush1.bf16.msra.mxu0 %v3922
    %3945 = vmatprep.subr.bf16.mxu0 0
    %3946 = vmatpush1.bf16.msra.mxu0 %v3923
    %3947 = vmatprep.subr.bf16.mxu0 0
    %3948 = vmatpush1.bf16.msra.mxu0 0
    %3949 = vmatprep.subr.bf16.mxu0 0
    %3950 = vmatpush1.bf16.msra.mxu0 0
    %3951 = vmatprep.subr.bf16.mxu0 0
    %3952 = vmatpush1.bf16.msra.mxu0 0
    %3953 = vmatprep.subr.bf16.mxu0 0
    %3954 = vmatpush1.bf16.msra.mxu0 0
    %3955 = vmatprep.subr.bf16.mxu0 0
    %3956 = vmatpush1.bf16.msra.mxu0 0
    %3957 = vmatprep.subr.bf16.mxu0 0
    %3958 = vmatpush1.bf16.msra.mxu0 0
    %3959 = vmatprep.subr.bf16.mxu0 0
    %3960 = vmatpush1.bf16.msra.mxu0 0
    %3961 = vmatprep.subr.bf16.mxu0 0
    %3962 = vmatpush1.bf16.msra.mxu0 0
    %3963 = vmatprep.mubr.bf16.mxu0 0
    %3964 = vmatmul.mubr.bf16.gmra.mrb[0].mxu0 %v3915
    %v3965 = vpop.f32.mrb[0].mxu0
    %v3966 = vadd.f32 %v3929, %v3965
    %v3967 = vpop.f32.mrb[0].mxu0
    %v3968 = vpop.f32.mrb[0].mxu0
    %v3969 = vadd.f32 %v3929, %v3968
    %v3970 = vpop.f32.mrb[0].mxu0
    %3971 = vdwg.mxu0
    %3972 = vst [vmem:[%s99] sm:$0xff] %v3966
    %3973 = vst [vmem:[%s99 + $0x8] sm:$0xff] %v3969
    // Predicated region
    $region210: #{self_attention_encoder.1} parent=1 // pred_check
      _
    $region211: #{self_attention_encoder.1} parent=1 // pred_check_branch
      %3975 = sbr.rel (0) target = $region213
    $region212: #{self_attention_encoder.1} parent=1 // pred_region
      _
    $region213: #{self_attention_encoder.1} parent=1 // pred_fallthru
      _
    // Predicated region
    $region214: #{self_attention_encoder.1} parent=1 // pred_check
      _
    $region215: #{self_attention_encoder.1} parent=1 // pred_check_branch
      %3977 = sbr.rel (0) target = $region217
    $region216: #{self_attention_encoder.1} parent=1 // pred_region
      _
    $region217: #{self_attention_encoder.1} parent=1 // pred_fallthru
      _
    %3978 = vsyncpa [#allocation3], 1
    %3979 = vsyncpa [#allocation5], 1

</llo_original>
